<compile_context>
chip_gen: v7x
topology: tpu7x:2x2x1
jax: 0.10.0
libtpu: 0.0.40
codegen_flags: <defaults>
</compile_context>

<pallas_src>
import functools

import jax
import jax.numpy as jnp
from jax.experimental import pallas as pl
from jax.experimental.pallas import tpu as pltpu


# ---------------------------------------------------------------------------
# Fused kernel: MLP -> in-VMEM permutation -> adjoint-VOM matmul
# ---------------------------------------------------------------------------
def _patch_decoder_kernel(x_ref, w1_ref, b1_ref, w2p_ref, b2p_ref, ptsp_ref,
                          o_ref, *, n_patches, n_out, patch_size, batch_tile,
                          compute_dtype):
    P, ps = n_patches, patch_size

    # decoder_model, layer 1: (bt*P, d_lat) @ (d_lat, H) -> f32 (bt*P, H)
    h = jnp.dot(x_ref[...], w1_ref[...], preferred_element_type=jnp.float32)
    h = h + b1_ref[...]
    h = jax.nn.gelu(h)  # tanh-approx GELU (EUP); see header note re. erf GELU

    # decoder_model, layer 2 with columns pre-permuted to (s, o) order:
    #   y[p, s*n_out + o] = decoder_model(x[p])[o*ps + s]
    y = jnp.dot(h.astype(compute_dtype), w2p_ref[...],
                preferred_element_type=jnp.float32)
    y = y + b2p_ref[...]

    pt = ptsp_ref[...]  # (ps, P, n_dof), pt[s, p, d] = P^T[p*ps + s, d]

    for i in range(batch_tile):              # static unroll, batch_tile small
        y_i = y[i * P:(i + 1) * P, :]        # (P, n_out*ps)   sublane slice
        y_t = y_i.T                          # (n_out*ps, P)   2-D XLU transpose
        y3 = y_t.reshape(ps, n_out, P)       # sublane split; lane dim unchanged
        # out[o, d] = sum_{s,p} y[p, o*ps + s] * P^T[p*ps + s, d]
        part = jnp.einsum('sop,spd->sod', y3.astype(compute_dtype), pt,
                          preferred_element_type=jnp.float32)  # (ps, n_out, n_dof)
        o_ref[i] = jnp.sum(part, axis=0).astype(o_ref.dtype)   # (n_out, n_dof)


# ---------------------------------------------------------------------------
# Pallas wrapper
# ---------------------------------------------------------------------------
def patch_decoder_forward(x, w1, b1, w2_perm, b2_perm, pt_sp, *, n_out,
                          patch_size, batch_tile=2,
                          compute_dtype=jnp.float32,
                          vmem_limit_bytes=32 * 1024 * 1024):
    squeeze = x.ndim == 2
    if squeeze:
        x = x[None]
    B, P, d_lat = x.shape
    H = w1.shape[1]
    d_out = w2_perm.shape[1]
    ps, _, n_dof = pt_sp.shape
    assert ps == patch_size and d_out == n_out * patch_size
    out_dtype = x.dtype

    bt = max(1, min(batch_tile, B))
    n_blocks = (B + bt - 1) // bt
    Bp = n_blocks * bt
    if Bp != B:  # pad batch instead of requiring divisibility
        x = jnp.concatenate([x, jnp.zeros((Bp - B, P, d_lat), x.dtype)], axis=0)

    cd = compute_dtype
    x2d = x.reshape(Bp * P, d_lat).astype(cd)

    kernel = functools.partial(
        _patch_decoder_kernel, n_patches=P, n_out=n_out, patch_size=patch_size,
        batch_tile=bt, compute_dtype=cd)

    out = pl.pallas_call(
        kernel,
        out_shape=jax.ShapeDtypeStruct((Bp, n_out, n_dof), out_dtype),
        grid_spec=pltpu.PrefetchScalarGridSpec(
            num_scalar_prefetch=0,
            grid=(n_blocks,),
            in_specs=[
                pl.BlockSpec((bt * P, d_lat), lambda i: (i, 0)),
                # Constant operands (index_map always (0, 0)): DMA'd once and
                # kept resident. At real sizes, pl.Buffered(1) or pl.ANY +
                # manual DMA would also drop their double-buffer footprint.
                pl.BlockSpec((d_lat, H), lambda i: (0, 0)),
                pl.BlockSpec((1, H), lambda i: (0, 0)),
                pl.BlockSpec((H, d_out), lambda i: (0, 0)),
                pl.BlockSpec((1, d_out), lambda i: (0, 0)),
                pl.BlockSpec((ps, P, n_dof), lambda i: (0, 0, 0)),
            ],
            out_specs=pl.BlockSpec((bt, n_out, n_dof), lambda i: (i, 0, 0)),
        ),
        compiler_params=pltpu.CompilerParams(
            dimension_semantics=("parallel",),
            vmem_limit_bytes=vmem_limit_bytes,
        ),
    )(x2d, w1.astype(cd), b1.astype(cd), w2_perm.astype(cd),
      b2_perm.astype(cd), pt_sp.astype(cd))

    out = out[:B]
    return out[0] if squeeze else out


# ---------------------------------------------------------------------------
# PatchDecoder (synthetic parameters, deterministic init)
# ---------------------------------------------------------------------------
class PatchDecoderPallas:
    def __init__(self, *, d_lat, n_patches, patch_size, n_out, n_dof, hidden,
                 key, compute_dtype=jnp.float32, batch_tile=2):
        self.d_lat, self.n_patches, self.patch_size = d_lat, n_patches, patch_size
        self.n_out, self.n_dof, self.hidden = n_out, n_dof, hidden
        self.compute_dtype = compute_dtype
        self.batch_tile = batch_tile

        k1, k2, k3, k4, k5 = jax.random.split(key, 5)
        d_out = n_out * patch_size
        n_points = n_patches * patch_size
        # decoder_model: Linear(d_lat, hidden) -> GELU -> Linear(hidden, n_out*patch_size)
        self.w1 = jax.random.normal(k1, (d_lat, hidden), jnp.float32) / jnp.sqrt(d_lat)
        self.b1 = jax.random.normal(k2, (1, hidden), jnp.float32) * 0.01
        self.w2 = jax.random.normal(k3, (hidden, d_out), jnp.float32) / jnp.sqrt(hidden)
        self.b2 = jax.random.normal(k4, (1, d_out), jnp.float32) * 0.01
        # adjoint of projection to VOM: dense (n_points, n_dof) matrix
        self.p_t = jax.random.normal(k5, (n_points, n_dof), jnp.float32) / jnp.sqrt(n_points)

        # One-time folding of the (0,2,1,3) permutation into the parameters:
        #  * W2/b2 columns reordered (o, s) -> (s, o)
        #  * P^T rows exposed as [s, p, :] = P^T[p*ps + s, :]
        self.w2_perm = (self.w2.reshape(hidden, n_out, patch_size)
                        .transpose(0, 2, 1).reshape(hidden, d_out))
        self.b2_perm = (self.b2.reshape(1, n_out, patch_size)
                        .transpose(0, 2, 1).reshape(1, d_out))
        self.pt_sp = (self.p_t.reshape(n_patches, patch_size, n_dof)
                      .transpose(1, 0, 2))  # (ps, P, n_dof)

    def __call__(self, x):
        return patch_decoder_forward(
            x, self.w1, self.b1, self.w2_perm, self.b2_perm, self.pt_sp,
            n_out=self.n_out, patch_size=self.patch_size,
            batch_tile=self.batch_tile, compute_dtype=self.compute_dtype)

    # pure-JAX reference (original op order / unpermuted params) for validation
    def reference(self, x):
        squeeze = x.ndim == 2
        if squeeze:
            x = x[None]
        B, P, _ = x.shape
        h = jax.nn.gelu(x.reshape(B * P, -1) @ self.w1 + self.b1)
        y = (h @ self.w2 + self.b2).reshape(B, P, self.n_out, self.patch_size)
        y = jnp.transpose(y, (0, 2, 1, 3)).reshape(B * self.n_out, -1)
        out = (y @ self.p_t).reshape(B, self.n_out, self.n_dof)
        return out[0] if squeeze else out


# ---------------------------------------------------------------------------
if __name__ == "__main__":
    key = jax.random.PRNGKey(0)
    k_param, k_x = jax.random.split(key)

    B = 4
    n_patches = 16
    d_lat = 32
    hidden = 128       # lane-dense
    n_out = 8
    patch_size = 16    # n_out*patch_size = 128 (lane-dense), n_points = 256
    n_dof = 256        # lane-dense output

    model = PatchDecoderPallas(
        d_lat=d_lat, n_patches=n_patches, patch_size=patch_size,
        n_out=n_out, n_dof=n_dof, hidden=hidden, key=k_param,
        compute_dtype=jnp.float32, batch_tile=2)

    x = jax.random.normal(k_x, (B, n_patches, d_lat), jnp.float32)

    out = jax.block_until_ready(model(x))
    ref = model.reference(x)
    assert out.shape == (B, n_out, n_dof)
    assert jnp.allclose(out, ref, atol=1e-4, rtol=1e-4)

    # 2-D input path (single sample)
    out2d = jax.block_until_ready(model(x[0]))
    assert out2d.shape == (n_out, n_dof)
    assert jnp.allclose(out2d, model.reference(x[0]), atol=1e-4, rtol=1e-4)

    # bf16 MXU compute with f32 accumulation (same deterministic params)
    model_bf16 = PatchDecoderPallas(
        d_lat=d_lat, n_patches=n_patches, patch_size=patch_size,
        n_out=n_out, n_dof=n_dof, hidden=hidden, key=k_param,
        compute_dtype=jnp.bfloat16, batch_tile=2)
    out_bf16 = jax.block_until_ready(model_bf16(x))
    assert out_bf16.shape == (B, n_out, n_dof)
    assert jnp.allclose(out_bf16, ref, atol=2e-1, rtol=5e-2)

    print("KERNEL_OK")
</pallas_src>

<mosaic_0001>
module attributes {stable_mosaic.version = 11 : i64} {
  func.func @_patch_decoder_kernel(%arg0: i32, %arg1: memref<32x32xf32, #tpu.memory_space<vmem>>, %arg2: memref<32x128xf32, #tpu.memory_space<vmem>>, %arg3: memref<1x128xf32, #tpu.memory_space<vmem>>, %arg4: memref<128x128xf32, #tpu.memory_space<vmem>>, %arg5: memref<1x128xf32, #tpu.memory_space<vmem>>, %arg6: memref<16x16x256xf32, #tpu.memory_space<vmem>>, %arg7: memref<2x8x256xf32, #tpu.memory_space<vmem>>) attributes {dimension_semantics = [#tpu.dimension_semantics<parallel>], iteration_bounds = array<i64: 2>, scalar_prefetch = 0 : i64, scratch_operands = 0 : i64, tpu.core_type = #tpu.core_type<tc>, window_params = [{transform_indices = @transform_0, window_bounds = array<i64: 32, 32>}, {pipeline_mode = #tpu.pipeline_mode<synchronous>, transform_indices = @transform_1, window_bounds = array<i64: 32, 128>}, {pipeline_mode = #tpu.pipeline_mode<synchronous>, transform_indices = @transform_2, window_bounds = array<i64: 1, 128>}, {pipeline_mode = #tpu.pipeline_mode<synchronous>, transform_indices = @transform_3, window_bounds = array<i64: 128, 128>}, {pipeline_mode = #tpu.pipeline_mode<synchronous>, transform_indices = @transform_4, window_bounds = array<i64: 1, 128>}, {pipeline_mode = #tpu.pipeline_mode<synchronous>, transform_indices = @transform_5, window_bounds = array<i64: 16, 16, 256>}, {transform_indices = @transform_6, window_bounds = array<i64: 2, 8, 256>}]} {
    %c0 = arith.constant 0 : index
    %c0_0 = arith.constant 0 : index
    %0 = vector.load %arg1[%c0, %c0_0] : memref<32x32xf32, #tpu.memory_space<vmem>>, vector<32x32xf32>
    %c0_1 = arith.constant 0 : index
    %c0_2 = arith.constant 0 : index
    %1 = vector.load %arg2[%c0_1, %c0_2] : memref<32x128xf32, #tpu.memory_space<vmem>>, vector<32x128xf32>
    %cst = arith.constant dense<0.000000e+00> : vector<32x128xf32>
    %2 = tpu.matmul %0, %1, %cst {dimension_numbers = #tpu.dot_dimension_numbers<[1], [0], [0], [1], [0, 0, 1, 1], [], []>} : vector<32x32xf32>, vector<32x128xf32>, vector<32x128xf32> -> vector<32x128xf32>
    %c0_3 = arith.constant 0 : index
    %c0_4 = arith.constant 0 : index
    %3 = vector.load %arg3[%c0_3, %c0_4] : memref<1x128xf32, #tpu.memory_space<vmem>>, vector<1x128xf32>
    %4 = vector.broadcast %3 : vector<1x128xf32> to vector<32x128xf32>
    %5 = arith.addf %2, %4 : vector<32x128xf32>
    %6 = arith.mulf %5, %5 : vector<32x128xf32>
    %7 = arith.mulf %5, %6 : vector<32x128xf32>
    %cst_5 = arith.constant 4.471500e-02 : f32
    %8 = vector.broadcast %cst_5 : f32 to vector<32x128xf32>
    %9 = arith.mulf %8, %7 : vector<32x128xf32>
    %10 = arith.addf %5, %9 : vector<32x128xf32>
    %cst_6 = arith.constant 0.797884583 : f32
    %11 = vector.broadcast %cst_6 : f32 to vector<32x128xf32>
    %12 = arith.mulf %11, %10 : vector<32x128xf32>
    %13 = math.tanh %12 : vector<32x128xf32>
    %cst_7 = arith.constant 1.000000e+00 : f32
    %14 = vector.broadcast %cst_7 : f32 to vector<32x128xf32>
    %15 = arith.addf %14, %13 : vector<32x128xf32>
    %cst_8 = arith.constant 5.000000e-01 : f32
    %16 = vector.broadcast %cst_8 : f32 to vector<32x128xf32>
    %17 = arith.mulf %16, %15 : vector<32x128xf32>
    %18 = arith.mulf %5, %17 : vector<32x128xf32>
    %c0_9 = arith.constant 0 : index
    %c0_10 = arith.constant 0 : index
    %19 = vector.load %arg4[%c0_9, %c0_10] : memref<128x128xf32, #tpu.memory_space<vmem>>, vector<128x128xf32>
    %cst_11 = arith.constant dense<0.000000e+00> : vector<32x128xf32>
    %20 = tpu.matmul %18, %19, %cst_11 {dimension_numbers = #tpu.dot_dimension_numbers<[1], [0], [0], [1], [0, 0, 1, 1], [], []>} : vector<32x128xf32>, vector<128x128xf32>, vector<32x128xf32> -> vector<32x128xf32>
    %c0_12 = arith.constant 0 : index
    %c0_13 = arith.constant 0 : index
    %21 = vector.load %arg5[%c0_12, %c0_13] : memref<1x128xf32, #tpu.memory_space<vmem>>, vector<1x128xf32>
    %22 = vector.broadcast %21 : vector<1x128xf32> to vector<32x128xf32>
    %23 = arith.addf %20, %22 : vector<32x128xf32>
    %c0_14 = arith.constant 0 : index
    %c0_15 = arith.constant 0 : index
    %c0_16 = arith.constant 0 : index
    %24 = vector.load %arg6[%c0_14, %c0_15, %c0_16] : memref<16x16x256xf32, #tpu.memory_space<vmem>>, vector<16x16x256xf32>
    %25 = vector.extract_strided_slice %23 {offsets = [0, 0], sizes = [16, 128], strides = [1, 1]} : vector<32x128xf32> to vector<16x128xf32>
    %26 = tpu.transpose %25, [1, 0] : vector<16x128xf32> -> vector<128x16xf32>
    %27 = vector.shape_cast %26 : vector<128x16xf32> to vector<16x8x16xf32>
    "tpu.trace_start"() <{level = 10 : i32, message = "sop,spd->sod"}> : () -> ()
    %cst_17 = arith.constant dense<0.000000e+00> : vector<16x8x256xf32>
    %28 = tpu.matmul %27, %24, %cst_17 {dimension_numbers = #tpu.dot_dimension_numbers<[2], [1], [1], [2], [0, 0, 0, 1, 1, 2], [0], [0]>} : vector<16x8x16xf32>, vector<16x16x256xf32>, vector<16x8x256xf32> -> vector<16x8x256xf32>
    "tpu.trace_stop"() : () -> ()
    %cst_18 = arith.constant dense<0.000000e+00> : vector<8x256xf32>
    %29 = vector.multi_reduction <add>, %28, %cst_18 [0] : vector<16x8x256xf32> to vector<8x256xf32>
    %c0_19 = arith.constant 0 : index
    %c0_20 = arith.constant 0 : index
    %c0_21 = arith.constant 0 : index
    %30 = vector.load %arg7[%c0_19, %c0_20, %c0_21] : memref<2x8x256xf32, #tpu.memory_space<vmem>>, vector<1x8x256xf32>
    %31 = vector.shape_cast %30 : vector<1x8x256xf32> to vector<8x256xf32>
    %32 = vector.shape_cast %29 : vector<8x256xf32> to vector<1x8x256xf32>
    tpu.vector_store %arg7[%c0_19, %c0_20, %c0_21], %32 {strides = array<i32>} : memref<2x8x256xf32, #tpu.memory_space<vmem>>, vector<1x8x256xf32>,
    %33 = vector.extract_strided_slice %23 {offsets = [16, 0], sizes = [16, 128], strides = [1, 1]} : vector<32x128xf32> to vector<16x128xf32>
    %34 = tpu.transpose %33, [1, 0] : vector<16x128xf32> -> vector<128x16xf32>
    %35 = vector.shape_cast %34 : vector<128x16xf32> to vector<16x8x16xf32>
    "tpu.trace_start"() <{level = 10 : i32, message = "sop,spd->sod"}> : () -> ()
    %cst_22 = arith.constant dense<0.000000e+00> : vector<16x8x256xf32>
    %36 = tpu.matmul %35, %24, %cst_22 {dimension_numbers = #tpu.dot_dimension_numbers<[2], [1], [1], [2], [0, 0, 0, 1, 1, 2], [0], [0]>} : vector<16x8x16xf32>, vector<16x16x256xf32>, vector<16x8x256xf32> -> vector<16x8x256xf32>
    "tpu.trace_stop"() : () -> ()
    %cst_23 = arith.constant dense<0.000000e+00> : vector<8x256xf32>
    %37 = vector.multi_reduction <add>, %36, %cst_23 [0] : vector<16x8x256xf32> to vector<8x256xf32>
    %c1 = arith.constant 1 : index
    %c0_24 = arith.constant 0 : index
    %c0_25 = arith.constant 0 : index
    %38 = vector.load %arg7[%c1, %c0_24, %c0_25] : memref<2x8x256xf32, #tpu.memory_space<vmem>>, vector<1x8x256xf32>
    %39 = vector.shape_cast %38 : vector<1x8x256xf32> to vector<8x256xf32>
    %40 = vector.shape_cast %37 : vector<8x256xf32> to vector<1x8x256xf32>
    tpu.vector_store %arg7[%c1, %c0_24, %c0_25], %40 {strides = array<i32>} : memref<2x8x256xf32, #tpu.memory_space<vmem>>, vector<1x8x256xf32>,
    return
  }
  func.func @transform_0(%arg0: i32) -> (i32, i32) {
    %c0_i32 = arith.constant 0 : i32
    %c0_i32_0 = arith.constant 0 : i32
    return %arg0, %c0_i32 : i32, i32
  }
  func.func @transform_1(%arg0: i32) -> (i32, i32) {
    %c0_i32 = arith.constant 0 : i32
    %c0_i32_0 = arith.constant 0 : i32
    %c0_i32_1 = arith.constant 0 : i32
    return %c0_i32, %c0_i32_0 : i32, i32
  }
  func.func @transform_2(%arg0: i32) -> (i32, i32) {
    %c0_i32 = arith.constant 0 : i32
    %c0_i32_0 = arith.constant 0 : i32
    %c0_i32_1 = arith.constant 0 : i32
    return %c0_i32, %c0_i32_0 : i32, i32
  }
  func.func @transform_3(%arg0: i32) -> (i32, i32) {
    %c0_i32 = arith.constant 0 : i32
    %c0_i32_0 = arith.constant 0 : i32
    %c0_i32_1 = arith.constant 0 : i32
    return %c0_i32, %c0_i32_0 : i32, i32
  }
  func.func @transform_4(%arg0: i32) -> (i32, i32) {
    %c0_i32 = arith.constant 0 : i32
    %c0_i32_0 = arith.constant 0 : i32
    %c0_i32_1 = arith.constant 0 : i32
    return %c0_i32, %c0_i32_0 : i32, i32
  }
  func.func @transform_5(%arg0: i32) -> (i32, i32, i32) {
    %c0_i32 = arith.constant 0 : i32
    %c0_i32_0 = arith.constant 0 : i32
    %c0_i32_1 = arith.constant 0 : i32
    %c0_i32_2 = arith.constant 0 : i32
    return %c0_i32, %c0_i32_0, %c0_i32_1 : i32, i32, i32
  }
  func.func @transform_6(%arg0: i32) -> (i32, i32, i32) {
    %c0_i32 = arith.constant 0 : i32
    %c0_i32_0 = arith.constant 0 : i32
    %c0_i32_1 = arith.constant 0 : i32
    return %arg0, %c0_i32, %c0_i32_0 : i32, i32, i32
  }
}

</mosaic_0001>

<llo_original>
// kernel: tpu_custom_call.1
$region0: #{tpu_custom_call.1}
  #allocation0 [shape = 'u32[]', space=smem, size = 0x4, offset = 0x4, fixed_abs, tag = 'smem constant byte address 0x4 - core index']
  #allocation1 [shape = 'u32[144,128]{1,0:T(1,128)}', space=vmem, size = 0x12000, scoped, tag = 'internal scratch']
  %s0 = inlined_call_operand.vmem [shape: f32[64,32], index: 0, kind: input, shape index: {}]
  %s1 = inlined_call_operand.vmem [shape: f32[32,128], index: 1, kind: input, shape index: {}]
  %s2 = inlined_call_operand.vmem [shape: f32[1,128], index: 2, kind: input, shape index: {}]
  %s3 = inlined_call_operand.hbm [shape: f32[128,128], index: 3, kind: input, shape index: {}]
  %s4 = inlined_call_operand.vmem [shape: f32[1,128], index: 4, kind: input, shape index: {}]
  %s5 = inlined_call_operand.hbm [shape: f32[16,16,256], index: 5, kind: input, shape index: {}]
  %s6 = inlined_call_operand.hbm [shape: f32[4,8,256], index: 6, kind: output, shape index: {}]
  %s7 = sld [smem:[#allocation0]]
  $region65: #{tpu_custom_call.1} parent=0
    _
  %s9 = ssub.s32 1, %s7
  %s10 = scalar_select 0, %s9, %s7
  $region1: #{tpu_custom_call.1} parent=0
    #allocation2 [shape = 'u8[65536]{0}', space=vmem, size = 0x10000, scoped, tag = 'input window, operand 3, single buffered']
    #allocation3 [shape = 's32[2]{0}', space=sflag, size = 0x8, scoped, tag = 'scoped memory for tpu_custom_call.1']
    #allocation4 [shape = 's32[2]{0}', space=sflag, size = 0x8, scoped, tag = 'scoped memory for tpu_custom_call.1']
    #allocation5 [shape = 'u8[262144]{0}', space=vmem, size = 0x40000, scoped, tag = 'input window, operand 5, single buffered']
    #allocation6 [shape = 's32[1]{0}', space=sflag, size = 0x4, scoped, tag = 'scoped memory for tpu_custom_call.1']
    #allocation7 [shape = 'u8[32768]{0}', space=vmem, size = 0x8000, scoped, tag = 'output window, operand 0']
    %11 = vsyncpa [#allocation3], 0
    %12 = vsyncpa [#allocation6], 0
    %13 = vsyncpa [#allocation4], 0
    %s14 = scalar_lea.sflag [#allocation4], 1
    %15 = vsyncpa %s14, 0
    loop: start=0, step=1, limit=4
    $region2: #{tpu_custom_call.1} parent=1 // loop_pre_header
      _
    $region3: #{tpu_custom_call.1} parent=1 // loop_header
      %s17 = sphi 0, %s21
      %p18 = scmp.ge.s32.totalorder %s17, 4
      %s27 = sphi 0, %s29
      %s30 = sphi 0, %s27
      %s31 = sphi 0, %s30
      %s47 = sphi 0, %s31
      %s51 = sphi 0, %s51
      %s53 = sphi 0, %s51
      %s54 = sphi 0, %s53
      %s68 = sphi 0, %s54
      %s72 = sphi 0, %s72
      %s74 = sphi 0, %s72
      %s75 = sphi 0, %s74
      %s89 = sphi 0, %s75
      %s93 = sphi 0, %s93
      %s95 = sphi 0, %s93
      %s96 = sphi 0, %s95
      %s110 = sphi 0, %s96
      %s114 = sphi 0, %s114
      %s116 = sphi 0, %s114
      %s117 = sphi 0, %s116
      %s131 = sphi 0, %s117
      %s135 = sphi 0, %s135
      %s137 = sphi 0, %s135
      %s138 = sphi 0, %s137
      %s152 = sphi 0, %s138
      %s158 = sphi 0, %s160
      %s161 = sphi 0, %s158
      %s162 = sphi 0, %s161
      %s178 = sphi 0, %s162
    $region4: #{tpu_custom_call.1} parent=1 // loop_header_branch
      %20 = sbr.rel (%p18) target = $region8
    $region5: #{tpu_custom_call.1} parent=1 // loop_body
      %s22 = ssub.s32 %s17, 1
      %s23 = ssub.s32 %s17, 2
      %s24 = sadd.s32 %s17, 1
      %s25 = ssub.s32 %s17, %s24
      %p26 = scmp.eq.s32.totalorder %s25, 0
      %s28 = sadd.s32 %s27, 1
      %s29 = scalar_select %p26, %s27, %s28
      %p32 = pneg %p26
      %p33 = scmp.eq.s32.totalorder %s17, 1
      %p34 = por %p32, %p33
      %p35 = scmp.ne.s32.totalorder %s27, %s30
      %p36 = scmp.eq.s32.totalorder %s17, 0
      %p37 = por %p35, %p36
      %p38 = scmp.ne.s32.totalorder %s27, %s30
      %p39 = scmp.eq.s32.totalorder %s22, 1
      %p40 = por %p38, %p39
      %p41 = scmp.ne.s32.totalorder %s30, %s31
      %p42 = scmp.eq.s32.totalorder %s22, 0
      %p43 = por %p41, %p42
      %p44 = scmp.ne.s32.totalorder %s30, %s31
      %p45 = scmp.eq.s32.totalorder %s23, 1
      %p46 = por %p44, %p45
      %p48 = scmp.ne.s32.totalorder %s31, %s47
      %p49 = scmp.eq.s32.totalorder %s23, 0
      %p50 = por %p48, %p49
      %s52 = sadd.s32 %s51, 1
      %p55 = scmp.eq.s32.totalorder %s17, 1
      %p56 = scmp.ne.s32.totalorder %s51, %s53
      %p57 = scmp.eq.s32.totalorder %s17, 0
      %p58 = por %p56, %p57
      %p59 = scmp.ne.s32.totalorder %s51, %s53
      %p60 = scmp.eq.s32.totalorder %s22, 1
      %p61 = por %p59, %p60
      %p62 = scmp.ne.s32.totalorder %s53, %s54
      %p63 = scmp.eq.s32.totalorder %s22, 0
      %p64 = por %p62, %p63
      %p65 = scmp.ne.s32.totalorder %s53, %s54
      %p66 = scmp.eq.s32.totalorder %s23, 1
      %p67 = por %p65, %p66
      %p69 = scmp.ne.s32.totalorder %s54, %s68
      %p70 = scmp.eq.s32.totalorder %s23, 0
      %p71 = por %p69, %p70
      %s73 = sadd.s32 %s72, 1
      %p76 = scmp.eq.s32.totalorder %s17, 1
      %p77 = scmp.ne.s32.totalorder %s72, %s74
      %p78 = scmp.eq.s32.totalorder %s17, 0
      %p79 = por %p77, %p78
      %p80 = scmp.ne.s32.totalorder %s72, %s74
      %p81 = scmp.eq.s32.totalorder %s22, 1
      %p82 = por %p80, %p81
      %p83 = scmp.ne.s32.totalorder %s74, %s75
      %p84 = scmp.eq.s32.totalorder %s22, 0
      %p85 = por %p83, %p84
      %p86 = scmp.ne.s32.totalorder %s74, %s75
      %p87 = scmp.eq.s32.totalorder %s23, 1
      %p88 = por %p86, %p87
      %p90 = scmp.ne.s32.totalorder %s75, %s89
      %p91 = scmp.eq.s32.totalorder %s23, 0
      %p92 = por %p90, %p91
      %s94 = sadd.s32 %s93, 1
      %p97 = scmp.eq.s32.totalorder %s17, 1
      %p98 = scmp.ne.s32.totalorder %s93, %s95
      %p99 = scmp.eq.s32.totalorder %s17, 0
      %p100 = por %p98, %p99
      %p101 = scmp.ne.s32.totalorder %s93, %s95
      %p102 = scmp.eq.s32.totalorder %s22, 1
      %p103 = por %p101, %p102
      %p104 = scmp.ne.s32.totalorder %s95, %s96
      %p105 = scmp.eq.s32.totalorder %s22, 0
      %p106 = por %p104, %p105
      %p107 = scmp.ne.s32.totalorder %s95, %s96
      %p108 = scmp.eq.s32.totalorder %s23, 1
      %p109 = por %p107, %p108
      %p111 = scmp.ne.s32.totalorder %s96, %s110
      %p112 = scmp.eq.s32.totalorder %s23, 0
      %p113 = por %p111, %p112
      %s115 = sadd.s32 %s114, 1
      %p118 = scmp.eq.s32.totalorder %s17, 1
      %p119 = scmp.ne.s32.totalorder %s114, %s116
      %p120 = scmp.eq.s32.totalorder %s17, 0
      %p121 = por %p119, %p120
      %p122 = scmp.ne.s32.totalorder %s114, %s116
      %p123 = scmp.eq.s32.totalorder %s22, 1
      %p124 = por %p122, %p123
      %p125 = scmp.ne.s32.totalorder %s116, %s117
      %p126 = scmp.eq.s32.totalorder %s22, 0
      %p127 = por %p125, %p126
      %p128 = scmp.ne.s32.totalorder %s116, %s117
      %p129 = scmp.eq.s32.totalorder %s23, 1
      %p130 = por %p128, %p129
      %p132 = scmp.ne.s32.totalorder %s117, %s131
      %p133 = scmp.eq.s32.totalorder %s23, 0
      %p134 = por %p132, %p133
      %s136 = sadd.s32 %s135, 1
      %p139 = scmp.eq.s32.totalorder %s17, 1
      %p140 = scmp.ne.s32.totalorder %s135, %s137
      %p141 = scmp.eq.s32.totalorder %s17, 0
      %p142 = por %p140, %p141
      %p143 = scmp.ne.s32.totalorder %s135, %s137
      %p144 = scmp.eq.s32.totalorder %s22, 1
      %p145 = por %p143, %p144
      %p146 = scmp.ne.s32.totalorder %s137, %s138
      %p147 = scmp.eq.s32.totalorder %s22, 0
      %p148 = por %p146, %p147
      %p149 = scmp.ne.s32.totalorder %s137, %s138
      %p150 = scmp.eq.s32.totalorder %s23, 1
      %p151 = por %p149, %p150
      %p153 = scmp.ne.s32.totalorder %s138, %s152
      %p154 = scmp.eq.s32.totalorder %s23, 0
      %p155 = por %p153, %p154
      %s156 = ssub.s32 %s17, %s24
      %p157 = scmp.eq.s32.totalorder %s156, 0
      %s159 = sadd.s32 %s158, 1
      %s160 = scalar_select %p157, %s158, %s159
      %p163 = pneg %p157
      %p164 = scmp.eq.s32.totalorder %s17, 1
      %p165 = por %p163, %p164
      %p166 = scmp.ne.s32.totalorder %s158, %s161
      %p167 = scmp.eq.s32.totalorder %s17, 0
      %p168 = por %p166, %p167
      %p169 = scmp.ne.s32.totalorder %s158, %s161
      %p170 = scmp.eq.s32.totalorder %s22, 1
      %p171 = por %p169, %p170
      %p172 = scmp.ne.s32.totalorder %s161, %s162
      %p173 = scmp.eq.s32.totalorder %s22, 0
      %p174 = por %p172, %p173
      %p175 = scmp.ne.s32.totalorder %s161, %s162
      %p176 = scmp.eq.s32.totalorder %s23, 1
      %p177 = por %p175, %p176
      %p179 = scmp.ne.s32.totalorder %s162, %s178
      %p180 = scmp.eq.s32.totalorder %s23, 0
      %p181 = por %p179, %p180
      %p182 = scmp.le.s32.totalorder 1, %s17
      %p183 = scmp.lt.s32.totalorder %s17, 3
      %p184 = pnand %p182, %p183
      %p185 = pneg %p184
      // Predicated region
      $region9: #{tpu_custom_call.1} parent=5 // pred_check
        _
      $region10: #{tpu_custom_call.1} parent=5 // pred_check_branch
        %187 = sbr.rel (%p184) target = $region12
      $region11: #{tpu_custom_call.1} parent=5 // pred_region
        %s188 = ssub.s32 %s17, 1
        // Predicated region
        $region13: #{tpu_custom_call.1} parent=11 // pred_check
          %p189 = pneg %p64
        $region14: #{tpu_custom_call.1} parent=11 // pred_check_branch
          %191 = sbr.rel (%p189) target = $region16
        $region15: #{tpu_custom_call.1} parent=11 // pred_region
          _
        $region16: #{tpu_custom_call.1} parent=11 // pred_fallthru
          _
        // Predicated region
        $region17: #{tpu_custom_call.1} parent=11 // pred_check
          %p192 = pneg %p85
        $region18: #{tpu_custom_call.1} parent=11 // pred_check_branch
          %194 = sbr.rel (%p192) target = $region20
        $region19: #{tpu_custom_call.1} parent=11 // pred_region
          _
        $region20: #{tpu_custom_call.1} parent=11 // pred_fallthru
          _
        // Predicated region
        $region21: #{tpu_custom_call.1} parent=11 // pred_check
          %p195 = pneg %p106
        $region22: #{tpu_custom_call.1} parent=11 // pred_check_branch
          %197 = sbr.rel (%p195) target = $region24
        $region23: #{tpu_custom_call.1} parent=11 // pred_region
          %s199 = ssub.s32 2048, 2048
          %200 = vsyncadd [#allocation3], %s199
          %s201 = sshll.u32 [#allocation2], 4
          %s202 = int_to_ptr.vmem [resolvable:$true] %s201
          %207 = dma.hbm_to_vmem [thread:$0]  %s3, 2048, %s202, [#allocation3], 128, 128, 8
        $region24: #{tpu_custom_call.1} parent=11 // pred_fallthru
          _
        // Predicated region
        $region25: #{tpu_custom_call.1} parent=11 // pred_check
          %p208 = pneg %p127
        $region26: #{tpu_custom_call.1} parent=11 // pred_check_branch
          %210 = sbr.rel (%p208) target = $region28
        $region27: #{tpu_custom_call.1} parent=11 // pred_region
          _
        $region28: #{tpu_custom_call.1} parent=11 // pred_fallthru
          _
        // Predicated region
        $region29: #{tpu_custom_call.1} parent=11 // pred_check
          %p211 = pneg %p148
        $region30: #{tpu_custom_call.1} parent=11 // pred_check_branch
          %213 = sbr.rel (%p211) target = $region32
        $region31: #{tpu_custom_call.1} parent=11 // pred_region
          %s215 = ssub.s32 8192, 8192
          %216 = vsyncadd [#allocation6], %s215
          %s217 = sshll.u32 [#allocation5], 4
          %s218 = int_to_ptr.vmem [resolvable:$true] %s217
          %223 = dma.hbm_to_vmem [thread:$0]  %s5, 8192, %s218, [#allocation6], 256, 256, 16
        $region32: #{tpu_custom_call.1} parent=11 // pred_fallthru
          _
      $region12: #{tpu_custom_call.1} parent=5 // pred_fallthru
        _
      %p224 = scmp.lt.s32.totalorder %s17, 2
      // Predicated region
      $region33: #{tpu_custom_call.1} parent=5 // pred_check
        %p225 = pneg %p224
      $region34: #{tpu_custom_call.1} parent=5 // pred_check_branch
        %227 = sbr.rel (%p225) target = $region36
      $region35: #{tpu_custom_call.1} parent=5 // pred_region
        // Predicated region
        $region37: #{tpu_custom_call.1} parent=35 // pred_check
          %p228 = pneg %p37
        $region38: #{tpu_custom_call.1} parent=35 // pred_check_branch
          %230 = sbr.rel (%p228) target = $region40
        $region39: #{tpu_custom_call.1} parent=35 // pred_region
          %s231 = smul.u32 4, %s17
          %p232 = scmp.lt.s32.totalorder %s231, 7
          %s233 = scalar_select %p232, %s231, 7
          %s234 = smul.addr %s233, 8
          %s235 = scalar_lea.vmem %s0, %s234
          %s236 = smul.u32 4, %s17
        $region40: #{tpu_custom_call.1} parent=35 // pred_fallthru
          _
      $region36: #{tpu_custom_call.1} parent=5 // pred_fallthru
        _
      %p237 = scmp.le.s32.totalorder 1, %s17
      %p238 = scmp.lt.s32.totalorder %s17, 3
      %p239 = pnand %p237, %p238
      %p240 = pneg %p239
      // Predicated region
      $region41: #{tpu_custom_call.1} parent=5 // pred_check
        _
      $region42: #{tpu_custom_call.1} parent=5 // pred_check_branch
        %242 = sbr.rel (%p239) target = $region44
      $region43: #{tpu_custom_call.1} parent=5 // pred_region
        %s243 = ssub.s32 %s17, 1
        // Predicated region
        $region45: #{tpu_custom_call.1} parent=43 // pred_check
          %p244 = pneg %p106
        $region46: #{tpu_custom_call.1} parent=43 // pred_check_branch
          %246 = sbr.rel (%p244) target = $region48
        $region47: #{tpu_custom_call.1} parent=43 // pred_region
          %247 = dma.done [#allocation3], 2048
        $region48: #{tpu_custom_call.1} parent=43 // pred_fallthru
          _
        // Predicated region
        $region49: #{tpu_custom_call.1} parent=43 // pred_check
          %p248 = pneg %p148
        $region50: #{tpu_custom_call.1} parent=43 // pred_check_branch
          %250 = sbr.rel (%p248) target = $region52
        $region51: #{tpu_custom_call.1} parent=43 // pred_region
          %251 = dma.done [#allocation6], 8192
        $region52: #{tpu_custom_call.1} parent=43 // pred_fallthru
          _
        %s252 = smul.u32 4, %s22
        %p253 = scmp.lt.s32.totalorder %s252, 7
        %s254 = scalar_select %p253, %s252, 7
        %s255 = smul.addr %s254, 8
        %s256 = scalar_lea.vmem %s0, %s255
        %p257 = pneg %p43
        %p258 = pneg %p40
        %p259 = pneg %p64
        %p260 = pneg %p61
        %p261 = pneg %p85
        %p262 = pneg %p82
        %p263 = pneg %p106
        %p264 = pneg %p103
        %p265 = pneg %p127
        %p266 = pneg %p124
        %p267 = pneg %p148
        %p268 = pneg %p145
        %p269 = pneg %p174
        %p270 = pneg %p171
        %s271 = sand.u32 %s161, 1
        %s272 = scalar_lea.sflag [#allocation4], %s271
        %s273 = sand.u32 %s161, 1
        %s274 = smul.addr %s273, 32
        %s275 = scalar_lea.vmem [#allocation7], %s274
        %s276 = smul.u32 4, %s22
        %p277 = scmp.lt.s32.totalorder %s276, 7
        %s278 = scalar_select %p277, %s276, 7
        %s279 = smul.addr %s278, 8
        %s280 = scalar_lea.vmem %s0, %s279
        %s281 = smul.u32 4, %s22
        %s282 = smul.u32 2, %s22
        %v283 = vld [vmem:[%s280] sm:$0xff]
        %v284 = vld [vmem:[%s280 + $0x8] sm:$0xff]
        %v285 = vld [vmem:[%s280 + $0x10] sm:$0xff]
        %v286 = vld [vmem:[%s280 + $0x18] sm:$0xff]
        %v287 = vld [vmem:[%s1] sm:$0xff]
        %v288 = vld [vmem:[%s1 + $0x8] sm:$0xff]
        %v289 = vld [vmem:[%s1 + $0x10] sm:$0xff]
        %v290 = vld [vmem:[%s1 + $0x18] sm:$0xff]
        %v291 = vld [vmem:[%s2] sm:$0x1]
        %v293 = vlaneseq
        %v294 = vshrl.u32 %v293, 7
        %v295 = vsub.s32 0, %v294
        %v296 = vrot.slane %v291, %v295
        %vm298 = vcmask 261120
        %v300 = vsel %vm298, %v283, 0
        %v303 = vsel %vm298, %v284, 0
        %v306 = vsel %vm298, %v285, 0
        %v309 = vsel %vm298, %v286, 0
        %311 = vmatprep.subr.mxu0 0.0
        %312 = vmatpush1.msra.mxu0 %v287
        %313 = vmatprep.subr.mxu0 0.0
        %314 = vmatpush1.msra.mxu0 %v288
        %315 = vmatprep.subr.mxu0 0.0
        %316 = vmatpush1.msra.mxu0 %v289
        %317 = vmatprep.subr.mxu0 0.0
        %318 = vmatpush1.msra.mxu0 %v290
        %319 = vmatprep.subr.mxu0 0.0
        %320 = vmatpush1.msra.mxu0 0.0
        %321 = vmatprep.subr.mxu0 0.0
        %322 = vmatpush1.msra.mxu0 0.0
        %323 = vmatprep.subr.mxu0 0.0
        %324 = vmatpush1.msra.mxu0 0.0
        %325 = vmatprep.subr.mxu0 0.0
        %326 = vmatpush1.msra.mxu0 0.0
        %327 = vmatprep.subr.mxu0 0.0
        %328 = vmatpush1.msra.mxu0 0.0
        %329 = vmatprep.subr.mxu0 0.0
        %330 = vmatpush1.msra.mxu0 0.0
        %331 = vmatprep.subr.mxu0 0.0
        %332 = vmatpush1.msra.mxu0 0.0
        %333 = vmatprep.subr.mxu0 0.0
        %334 = vmatpush1.msra.mxu0 0.0
        %335 = vmatprep.subr.mxu0 0.0
        %336 = vmatpush1.msra.mxu0 0.0
        %337 = vmatprep.subr.mxu0 0.0
        %338 = vmatpush1.msra.mxu0 0.0
        %339 = vmatprep.subr.mxu0 0.0
        %340 = vmatpush1.msra.mxu0 0.0
        %341 = vmatprep.subr.mxu0 0.0
        %342 = vmatpush1.msra.mxu0 0.0
        %343 = vmatprep.subr.mxu0 0.0
        %344 = vmatpush1.msra.mxu0 0.0
        %345 = vmatprep.subr.mxu0 0.0
        %346 = vmatpush1.msra.mxu0 0.0
        %347 = vmatprep.subr.mxu0 0.0
        %348 = vmatpush1.msra.mxu0 0.0
        %349 = vmatprep.subr.mxu0 0.0
        %350 = vmatpush1.msra.mxu0 0.0
        %351 = vmatprep.subr.mxu0 0.0
        %352 = vmatpush1.msra.mxu0 0.0
        %353 = vmatprep.subr.mxu0 0.0
        %354 = vmatpush1.msra.mxu0 0.0
        %355 = vmatprep.subr.mxu0 0.0
        %356 = vmatpush1.msra.mxu0 0.0
        %357 = vmatprep.subr.mxu0 0.0
        %358 = vmatpush1.msra.mxu0 0.0
        %359 = vmatprep.subr.mxu0 0.0
        %360 = vmatpush1.msra.mxu0 0.0
        %361 = vmatprep.subr.mxu0 0.0
        %362 = vmatpush1.msra.mxu0 0.0
        %363 = vmatprep.subr.mxu0 0.0
        %364 = vmatpush1.msra.mxu0 0.0
        %365 = vmatprep.subr.mxu0 0.0
        %366 = vmatpush1.msra.mxu0 0.0
        %367 = vmatprep.subr.mxu0 0.0
        %368 = vmatpush1.msra.mxu0 0.0
        %369 = vmatprep.subr.mxu0 0.0
        %370 = vmatpush1.msra.mxu0 0.0
        %371 = vmatprep.subr.mxu0 0.0
        %372 = vmatpush1.msra.mxu0 0.0
        %373 = vmatprep.subr.mxu0 0.0
        %374 = vmatpush1.msra.mxu0 0.0
        %375 = vmatprep.mubr.f32.mxu0 0.0
        %376 = vmatmul.mubr.f32.gmra.mrb[0].mxu0 %v300
        %v377 = vpop.f32.mrb[0].mxu0
        %v378 = vadd.f32 %v296, %v377
        %v379 = vpop.f32.mrb[0].mxu0
        %380 = vmatprep.mubr.f32.mxu0 0.0
        %381 = vmatmul.mubr.f32.gmra.mrb[0].mxu0 %v303
        %v382 = vpop.f32.mrb[0].mxu0
        %v383 = vadd.f32 %v296, %v382
        %v384 = vpop.f32.mrb[0].mxu0
        %385 = vmatprep.mubr.f32.mxu0 0.0
        %386 = vmatmul.mubr.f32.gmra.mrb[0].mxu0 %v306
        %v387 = vpop.f32.mrb[0].mxu0
        %v388 = vadd.f32 %v296, %v387
        %v389 = vpop.f32.mrb[0].mxu0
        %390 = vmatprep.mubr.f32.mxu0 0.0
        %391 = vmatmul.mubr.f32.gmra.mrb[0].mxu0 %v309
        %v392 = vpop.f32.mrb[0].mxu0
        %v393 = vadd.f32 %v296, %v392
        %v394 = vpop.f32.mrb[0].mxu0
        %395 = vdwg.mxu0
        %v396 = vmul.f32 %v378, %v378
        %v397 = vmul.f32 %v383, %v383
        %v398 = vmul.f32 %v388, %v388
        %v399 = vmul.f32 %v393, %v393
        %v400 = vmul.f32 %v378, %v396
        %v401 = vmul.f32 %v383, %v397
        %v402 = vmul.f32 %v388, %v398
        %v403 = vmul.f32 %v393, %v399
        %v404 = vmul.f32 %v400, 0.044715
        %v405 = vmul.f32 %v401, 0.044715
        %v406 = vmul.f32 %v402, 0.044715
        %v407 = vmul.f32 %v403, 0.044715
        %v408 = vadd.f32 %v378, %v404
        %v409 = vadd.f32 %v383, %v405
        %v410 = vadd.f32 %v388, %v406
        %v411 = vadd.f32 %v393, %v407
        %v412 = vmul.f32 %v408, 0.7978846
        %v413 = vmul.f32 %v409, 0.7978846
        %v414 = vmul.f32 %v410, 0.7978846
        %v415 = vmul.f32 %v411, 0.7978846
        %v416 = vtanh.pop %v412
        %v417 = vtanh.pop %v413
        %v418 = vtanh.pop %v414
        %v419 = vtanh.pop %v415
        %v420 = vadd.f32 %v416, 1.0
        %v421 = vadd.f32 %v417, 1.0
        %v422 = vadd.f32 %v418, 1.0
        %v423 = vadd.f32 %v419, 1.0
        %v424 = vmul.f32 %v420, 0.5
        %v425 = vmul.f32 %v421, 0.5
        %v426 = vmul.f32 %v422, 0.5
        %v427 = vmul.f32 %v423, 0.5
        %v428 = vmul.f32 %v378, %v424
        %v429 = vmul.f32 %v383, %v425
        %v430 = vmul.f32 %v388, %v426
        %v431 = vmul.f32 %v393, %v427
        %v432 = vld [vmem:[#allocation2] sm:$0xff]
        %v433 = vld [vmem:[#allocation2 + $0x8] sm:$0xff]
        %v434 = vld [vmem:[#allocation2 + $0x10] sm:$0xff]
        %v435 = vld [vmem:[#allocation2 + $0x18] sm:$0xff]
        %v436 = vld [vmem:[#allocation2 + $0x20] sm:$0xff]
        %v437 = vld [vmem:[#allocation2 + $0x28] sm:$0xff]
        %v438 = vld [vmem:[#allocation2 + $0x30] sm:$0xff]
        %v439 = vld [vmem:[#allocation2 + $0x38] sm:$0xff]
        %v440 = vld [vmem:[#allocation2 + $0x40] sm:$0xff]
        %v441 = vld [vmem:[#allocation2 + $0x48] sm:$0xff]
        %v442 = vld [vmem:[#allocation2 + $0x50] sm:$0xff]
        %v443 = vld [vmem:[#allocation2 + $0x58] sm:$0xff]
        %v444 = vld [vmem:[#allocation2 + $0x60] sm:$0xff]
        %v445 = vld [vmem:[#allocation2 + $0x68] sm:$0xff]
        %v446 = vld [vmem:[#allocation2 + $0x70] sm:$0xff]
        %v447 = vld [vmem:[#allocation2 + $0x78] sm:$0xff]
        %v448 = vld [vmem:[%s4] sm:$0x1]
        %v450 = vlaneseq
        %v451 = vshrl.u32 %v450, 7
        %v452 = vsub.s32 0, %v451
        %v453 = vrot.slane %v448, %v452
        %455 = vmatprep.subr.mxu0 0.0
        %456 = vmatpush1.msra.mxu0 %v432
        %457 = vmatprep.subr.mxu0 0.0
        %458 = vmatpush1.msra.mxu0 %v433
        %459 = vmatprep.subr.mxu0 0.0
        %460 = vmatpush1.msra.mxu0 %v434
        %461 = vmatprep.subr.mxu0 0.0
        %462 = vmatpush1.msra.mxu0 %v435
        %463 = vmatprep.subr.mxu0 0.0
        %464 = vmatpush1.msra.mxu0 %v436
        %465 = vmatprep.subr.mxu0 0.0
        %466 = vmatpush1.msra.mxu0 %v437
        %467 = vmatprep.subr.mxu0 0.0
        %468 = vmatpush1.msra.mxu0 %v438
        %469 = vmatprep.subr.mxu0 0.0
        %470 = vmatpush1.msra.mxu0 %v439
        %471 = vmatprep.subr.mxu0 0.0
        %472 = vmatpush1.msra.mxu0 %v440
        %473 = vmatprep.subr.mxu0 0.0
        %474 = vmatpush1.msra.mxu0 %v441
        %475 = vmatprep.subr.mxu0 0.0
        %476 = vmatpush1.msra.mxu0 %v442
        %477 = vmatprep.subr.mxu0 0.0
        %478 = vmatpush1.msra.mxu0 %v443
        %479 = vmatprep.subr.mxu0 0.0
        %480 = vmatpush1.msra.mxu0 %v444
        %481 = vmatprep.subr.mxu0 0.0
        %482 = vmatpush1.msra.mxu0 %v445
        %483 = vmatprep.subr.mxu0 0.0
        %484 = vmatpush1.msra.mxu0 %v446
        %485 = vmatprep.subr.mxu0 0.0
        %486 = vmatpush1.msra.mxu0 %v447
        %487 = vmatprep.subr.mxu0 0.0
        %488 = vmatpush1.msra.mxu0 0.0
        %489 = vmatprep.subr.mxu0 0.0
        %490 = vmatpush1.msra.mxu0 0.0
        %491 = vmatprep.subr.mxu0 0.0
        %492 = vmatpush1.msra.mxu0 0.0
        %493 = vmatprep.subr.mxu0 0.0
        %494 = vmatpush1.msra.mxu0 0.0
        %495 = vmatprep.subr.mxu0 0.0
        %496 = vmatpush1.msra.mxu0 0.0
        %497 = vmatprep.subr.mxu0 0.0
        %498 = vmatpush1.msra.mxu0 0.0
        %499 = vmatprep.subr.mxu0 0.0
        %500 = vmatpush1.msra.mxu0 0.0
        %501 = vmatprep.subr.mxu0 0.0
        %502 = vmatpush1.msra.mxu0 0.0
        %503 = vmatprep.subr.mxu0 0.0
        %504 = vmatpush1.msra.mxu0 0.0
        %505 = vmatprep.subr.mxu0 0.0
        %506 = vmatpush1.msra.mxu0 0.0
        %507 = vmatprep.subr.mxu0 0.0
        %508 = vmatpush1.msra.mxu0 0.0
        %509 = vmatprep.subr.mxu0 0.0
        %510 = vmatpush1.msra.mxu0 0.0
        %511 = vmatprep.subr.mxu0 0.0
        %512 = vmatpush1.msra.mxu0 0.0
        %513 = vmatprep.subr.mxu0 0.0
        %514 = vmatpush1.msra.mxu0 0.0
        %515 = vmatprep.subr.mxu0 0.0
        %516 = vmatpush1.msra.mxu0 0.0
        %517 = vmatprep.subr.mxu0 0.0
        %518 = vmatpush1.msra.mxu0 0.0
        %519 = vmatprep.mubr.f32.mxu0 0.0
        %520 = vmatmul.mubr.f32.gmra.mrb[0].mxu0 %v428
        %v521 = vpop.f32.mrb[0].mxu0
        %v522 = vadd.f32 %v453, %v521
        %v523 = vpop.f32.mrb[0].mxu0
        %524 = vmatprep.mubr.f32.mxu0 0.0
        %525 = vmatmul.mubr.f32.gmra.mrb[0].mxu0 %v429
        %v526 = vpop.f32.mrb[0].mxu0
        %v527 = vadd.f32 %v453, %v526
        %v528 = vpop.f32.mrb[0].mxu0
        %529 = vmatprep.mubr.f32.mxu0 0.0
        %530 = vmatmul.mubr.f32.gmra.mrb[0].mxu0 %v430
        %v531 = vpop.f32.mrb[0].mxu0
        %v532 = vadd.f32 %v453, %v531
        %v533 = vpop.f32.mrb[0].mxu0
        %534 = vmatprep.mubr.f32.mxu0 0.0
        %535 = vmatmul.mubr.f32.gmra.mrb[0].mxu0 %v431
        %v536 = vpop.f32.mrb[0].mxu0
        %v537 = vadd.f32 %v453, %v536
        %v538 = vpop.f32.mrb[0].mxu0
        %539 = vdwg.mxu0
        %v540 = vld [vmem:[#allocation5] sm:$0xff]
        %v541 = vld [vmem:[#allocation5 + $0x8] sm:$0xff]
        %v542 = vld [vmem:[#allocation5 + $0x10] sm:$0xff]
        %v543 = vld [vmem:[#allocation5 + $0x18] sm:$0xff]
        %v544 = vld [vmem:[#allocation5 + $0x20] sm:$0xff]
        %v545 = vld [vmem:[#allocation5 + $0x28] sm:$0xff]
        %v546 = vld [vmem:[#allocation5 + $0x30] sm:$0xff]
        %v547 = vld [vmem:[#allocation5 + $0x38] sm:$0xff]
        %v548 = vld [vmem:[#allocation5 + $0x40] sm:$0xff]
        %v549 = vld [vmem:[#allocation5 + $0x48] sm:$0xff]
        %v550 = vld [vmem:[#allocation5 + $0x50] sm:$0xff]
        %v551 = vld [vmem:[#allocation5 + $0x58] sm:$0xff]
        %v552 = vld [vmem:[#allocation5 + $0x60] sm:$0xff]
        %v553 = vld [vmem:[#allocation5 + $0x68] sm:$0xff]
        %v554 = vld [vmem:[#allocation5 + $0x70] sm:$0xff]
        %v555 = vld [vmem:[#allocation5 + $0x78] sm:$0xff]
        %v556 = vld [vmem:[#allocation5 + $0x80] sm:$0xff]
        %v557 = vld [vmem:[#allocation5 + $0x88] sm:$0xff]
        %v558 = vld [vmem:[#allocation5 + $0x90] sm:$0xff]
        %v559 = vld [vmem:[#allocation5 + $0x98] sm:$0xff]
        %v560 = vld [vmem:[#allocation5 + $0xa0] sm:$0xff]
        %v561 = vld [vmem:[#allocation5 + $0xa8] sm:$0xff]
        %v562 = vld [vmem:[#allocation5 + $0xb0] sm:$0xff]
        %v563 = vld [vmem:[#allocation5 + $0xb8] sm:$0xff]
        %v564 = vld [vmem:[#allocation5 + $0xc0] sm:$0xff]
        %v565 = vld [vmem:[#allocation5 + $0xc8] sm:$0xff]
        %v566 = vld [vmem:[#allocation5 + $0xd0] sm:$0xff]
        %v567 = vld [vmem:[#allocation5 + $0xd8] sm:$0xff]
        %v568 = vld [vmem:[#allocation5 + $0xe0] sm:$0xff]
        %v569 = vld [vmem:[#allocation5 + $0xe8] sm:$0xff]
        %v570 = vld [vmem:[#allocation5 + $0xf0] sm:$0xff]
        %v571 = vld [vmem:[#allocation5 + $0xf8] sm:$0xff]
        %v572 = vld [vmem:[#allocation5 + $0x100] sm:$0xff]
        %v573 = vld [vmem:[#allocation5 + $0x108] sm:$0xff]
        %v574 = vld [vmem:[#allocation5 + $0x110] sm:$0xff]
        %v575 = vld [vmem:[#allocation5 + $0x118] sm:$0xff]
        %v576 = vld [vmem:[#allocation5 + $0x120] sm:$0xff]
        %v577 = vld [vmem:[#allocation5 + $0x128] sm:$0xff]
        %v578 = vld [vmem:[#allocation5 + $0x130] sm:$0xff]
        %v579 = vld [vmem:[#allocation5 + $0x138] sm:$0xff]
        %v580 = vld [vmem:[#allocation5 + $0x140] sm:$0xff]
        %v581 = vld [vmem:[#allocation5 + $0x148] sm:$0xff]
        %v582 = vld [vmem:[#allocation5 + $0x150] sm:$0xff]
        %v583 = vld [vmem:[#allocation5 + $0x158] sm:$0xff]
        %v584 = vld [vmem:[#allocation5 + $0x160] sm:$0xff]
        %v585 = vld [vmem:[#allocation5 + $0x168] sm:$0xff]
        %v586 = vld [vmem:[#allocation5 + $0x170] sm:$0xff]
        %v587 = vld [vmem:[#allocation5 + $0x178] sm:$0xff]
        %v588 = vld [vmem:[#allocation5 + $0x180] sm:$0xff]
        %v589 = vld [vmem:[#allocation5 + $0x188] sm:$0xff]
        %v590 = vld [vmem:[#allocation5 + $0x190] sm:$0xff]
        %v591 = vld [vmem:[#allocation5 + $0x198] sm:$0xff]
        %v592 = vld [vmem:[#allocation5 + $0x1a0] sm:$0xff]
        %v593 = vld [vmem:[#allocation5 + $0x1a8] sm:$0xff]
        %v594 = vld [vmem:[#allocation5 + $0x1b0] sm:$0xff]
        %v595 = vld [vmem:[#allocation5 + $0x1b8] sm:$0xff]
        %v596 = vld [vmem:[#allocation5 + $0x1c0] sm:$0xff]
        %v597 = vld [vmem:[#allocation5 + $0x1c8] sm:$0xff]
        %v598 = vld [vmem:[#allocation5 + $0x1d0] sm:$0xff]
        %v599 = vld [vmem:[#allocation5 + $0x1d8] sm:$0xff]
        %v600 = vld [vmem:[#allocation5 + $0x1e0] sm:$0xff]
        %v601 = vld [vmem:[#allocation5 + $0x1e8] sm:$0xff]
        %v602 = vld [vmem:[#allocation5 + $0x1f0] sm:$0xff]
        %v603 = vld [vmem:[#allocation5 + $0x1f8] sm:$0xff]
        %604 = vxpose.xlu0.b32.start [1/16] %v522, 128
        %605 = vxpose.xlu0.b32.cont [2/16] %v527, 128
        %606 = vxpose.xlu0.b32.cont [3/16] 0.0, 128
        %607 = vxpose.xlu0.b32.cont [4/16] 0.0, 128
        %608 = vxpose.xlu0.b32.cont [5/16] 0.0, 128
        %609 = vxpose.xlu0.b32.cont [6/16] 0.0, 128
        %610 = vxpose.xlu0.b32.cont [7/16] 0.0, 128
        %611 = vxpose.xlu0.b32.cont [8/16] 0.0, 128
        %612 = vxpose.xlu0.b32.cont [9/16] 0.0, 128
        %613 = vxpose.xlu0.b32.cont [10/16] 0.0, 128
        %614 = vxpose.xlu0.b32.cont [11/16] 0.0, 128
        %615 = vxpose.xlu0.b32.cont [12/16] 0.0, 128
        %616 = vxpose.xlu0.b32.cont [13/16] 0.0, 128
        %617 = vxpose.xlu0.b32.cont [14/16] 0.0, 128
        %618 = vxpose.xlu0.b32.cont [15/16] 0.0, 128
        %619 = vxpose.xlu0.b32.end [16/16] 0.0, 128
        %v620 = vpop.trf.xlu0
        %v621 = vpop.trf.xlu0
        %v622 = vpop.trf.xlu0
        %v623 = vpop.trf.xlu0
        %v624 = vpop.trf.xlu0
        %v625 = vpop.trf.xlu0
        %v626 = vpop.trf.xlu0
        %v627 = vpop.trf.xlu0
        %v628 = vpop.trf.xlu0
        %v629 = vpop.trf.xlu0
        %v630 = vpop.trf.xlu0
        %v631 = vpop.trf.xlu0
        %v632 = vpop.trf.xlu0
        %v633 = vpop.trf.xlu0
        %v634 = vpop.trf.xlu0
        %v635 = vpop.trf.xlu0
        %vm636 = vcmask 130048
        %v638 = vsel %vm636, %v620, 0
        %640 = vmatprep.subr.mxu0 %v541
        %641 = vmatpush1.msra.mxu0 %v540
        %642 = vmatprep.subr.mxu0 %v543
        %643 = vmatpush1.msra.mxu0 %v542
        %644 = vmatprep.subr.mxu0 0.0
        %645 = vmatpush1.msra.mxu0 0.0
        %646 = vmatprep.subr.mxu0 0.0
        %647 = vmatpush1.msra.mxu0 0.0
        %648 = vmatprep.subr.mxu0 0.0
        %649 = vmatpush1.msra.mxu0 0.0
        %650 = vmatprep.subr.mxu0 0.0
        %651 = vmatpush1.msra.mxu0 0.0
        %652 = vmatprep.subr.mxu0 0.0
        %653 = vmatpush1.msra.mxu0 0.0
        %654 = vmatprep.subr.mxu0 0.0
        %655 = vmatpush1.msra.mxu0 0.0
        %656 = vmatprep.subr.mxu0 0.0
        %657 = vmatpush1.msra.mxu0 0.0
        %658 = vmatprep.subr.mxu0 0.0
        %659 = vmatpush1.msra.mxu0 0.0
        %660 = vmatprep.subr.mxu0 0.0
        %661 = vmatpush1.msra.mxu0 0.0
        %662 = vmatprep.subr.mxu0 0.0
        %663 = vmatpush1.msra.mxu0 0.0
        %664 = vmatprep.subr.mxu0 0.0
        %665 = vmatpush1.msra.mxu0 0.0
        %666 = vmatprep.subr.mxu0 0.0
        %667 = vmatpush1.msra.mxu0 0.0
        %668 = vmatprep.subr.mxu0 0.0
        %669 = vmatpush1.msra.mxu0 0.0
        %670 = vmatprep.subr.mxu0 0.0
        %671 = vmatpush1.msra.mxu0 0.0
        %672 = vmatprep.subr.mxu0 0.0
        %673 = vmatpush1.msra.mxu0 0.0
        %674 = vmatprep.subr.mxu0 0.0
        %675 = vmatpush1.msra.mxu0 0.0
        %676 = vmatprep.subr.mxu0 0.0
        %677 = vmatpush1.msra.mxu0 0.0
        %678 = vmatprep.subr.mxu0 0.0
        %679 = vmatpush1.msra.mxu0 0.0
        %680 = vmatprep.subr.mxu0 0.0
        %681 = vmatpush1.msra.mxu0 0.0
        %682 = vmatprep.subr.mxu0 0.0
        %683 = vmatpush1.msra.mxu0 0.0
        %684 = vmatprep.subr.mxu0 0.0
        %685 = vmatpush1.msra.mxu0 0.0
        %686 = vmatprep.subr.mxu0 0.0
        %687 = vmatpush1.msra.mxu0 0.0
        %688 = vmatprep.subr.mxu0 0.0
        %689 = vmatpush1.msra.mxu0 0.0
        %690 = vmatprep.subr.mxu0 0.0
        %691 = vmatpush1.msra.mxu0 0.0
        %692 = vmatprep.subr.mxu0 0.0
        %693 = vmatpush1.msra.mxu0 0.0
        %694 = vmatprep.subr.mxu0 0.0
        %695 = vmatpush1.msra.mxu0 0.0
        %696 = vmatprep.subr.mxu0 0.0
        %697 = vmatpush1.msra.mxu0 0.0
        %698 = vmatprep.subr.mxu0 0.0
        %699 = vmatpush1.msra.mxu0 0.0
        %700 = vmatprep.subr.mxu0 0.0
        %701 = vmatpush1.msra.mxu0 0.0
        %702 = vmatprep.subr.mxu0 0.0
        %703 = vmatpush1.msra.mxu0 0.0
        %704 = vmatprep.mubr.f32.mxu0 0.0
        %705 = vmatmul.mubr.f32.gmra.mrb[0].mxu0 %v638
        %v706 = vpop.f32.mrb[0].mxu0
        %v707 = vadd.f32 0.0, %v706
        %v708 = vpop.f32.mrb[0].mxu0
        %v709 = vadd.f32 0.0, %v708
        %710 = vdwg.mxu0
        %v712 = vsel %vm636, %v621, 0
        %714 = vmatprep.subr.mxu0 %v545
        %715 = vmatpush1.msra.mxu0 %v544
        %716 = vmatprep.subr.mxu0 %v547
        %717 = vmatpush1.msra.mxu0 %v546
        %718 = vmatprep.subr.mxu0 0.0
        %719 = vmatpush1.msra.mxu0 0.0
        %720 = vmatprep.subr.mxu0 0.0
        %721 = vmatpush1.msra.mxu0 0.0
        %722 = vmatprep.subr.mxu0 0.0
        %723 = vmatpush1.msra.mxu0 0.0
        %724 = vmatprep.subr.mxu0 0.0
        %725 = vmatpush1.msra.mxu0 0.0
        %726 = vmatprep.subr.mxu0 0.0
        %727 = vmatpush1.msra.mxu0 0.0
        %728 = vmatprep.subr.mxu0 0.0
        %729 = vmatpush1.msra.mxu0 0.0
        %730 = vmatprep.subr.mxu0 0.0
        %731 = vmatpush1.msra.mxu0 0.0
        %732 = vmatprep.subr.mxu0 0.0
        %733 = vmatpush1.msra.mxu0 0.0
        %734 = vmatprep.subr.mxu0 0.0
        %735 = vmatpush1.msra.mxu0 0.0
        %736 = vmatprep.subr.mxu0 0.0
        %737 = vmatpush1.msra.mxu0 0.0
        %738 = vmatprep.subr.mxu0 0.0
        %739 = vmatpush1.msra.mxu0 0.0
        %740 = vmatprep.subr.mxu0 0.0
        %741 = vmatpush1.msra.mxu0 0.0
        %742 = vmatprep.subr.mxu0 0.0
        %743 = vmatpush1.msra.mxu0 0.0
        %744 = vmatprep.subr.mxu0 0.0
        %745 = vmatpush1.msra.mxu0 0.0
        %746 = vmatprep.subr.mxu0 0.0
        %747 = vmatpush1.msra.mxu0 0.0
        %748 = vmatprep.subr.mxu0 0.0
        %749 = vmatpush1.msra.mxu0 0.0
        %750 = vmatprep.subr.mxu0 0.0
        %751 = vmatpush1.msra.mxu0 0.0
        %752 = vmatprep.subr.mxu0 0.0
        %753 = vmatpush1.msra.mxu0 0.0
        %754 = vmatprep.subr.mxu0 0.0
        %755 = vmatpush1.msra.mxu0 0.0
        %756 = vmatprep.subr.mxu0 0.0
        %757 = vmatpush1.msra.mxu0 0.0
        %758 = vmatprep.subr.mxu0 0.0
        %759 = vmatpush1.msra.mxu0 0.0
        %760 = vmatprep.subr.mxu0 0.0
        %761 = vmatpush1.msra.mxu0 0.0
        %762 = vmatprep.subr.mxu0 0.0
        %763 = vmatpush1.msra.mxu0 0.0
        %764 = vmatprep.subr.mxu0 0.0
        %765 = vmatpush1.msra.mxu0 0.0
        %766 = vmatprep.subr.mxu0 0.0
        %767 = vmatpush1.msra.mxu0 0.0
        %768 = vmatprep.subr.mxu0 0.0
        %769 = vmatpush1.msra.mxu0 0.0
        %770 = vmatprep.subr.mxu0 0.0
        %771 = vmatpush1.msra.mxu0 0.0
        %772 = vmatprep.subr.mxu0 0.0
        %773 = vmatpush1.msra.mxu0 0.0
        %774 = vmatprep.subr.mxu0 0.0
        %775 = vmatpush1.msra.mxu0 0.0
        %776 = vmatprep.subr.mxu0 0.0
        %777 = vmatpush1.msra.mxu0 0.0
        %778 = vmatprep.mubr.f32.mxu0 0.0
        %779 = vmatmul.mubr.f32.gmra.mrb[0].mxu0 %v712
        %v780 = vpop.f32.mrb[0].mxu0
        %v781 = vadd.f32 0.0, %v780
        %v782 = vpop.f32.mrb[0].mxu0
        %v783 = vadd.f32 0.0, %v782
        %784 = vdwg.mxu0
        %v786 = vsel %vm636, %v622, 0
        %788 = vmatprep.subr.mxu0 %v549
        %789 = vmatpush1.msra.mxu0 %v548
        %790 = vmatprep.subr.mxu0 %v551
        %791 = vmatpush1.msra.mxu0 %v550
        %792 = vmatprep.subr.mxu0 0.0
        %793 = vmatpush1.msra.mxu0 0.0
        %794 = vmatprep.subr.mxu0 0.0
        %795 = vmatpush1.msra.mxu0 0.0
        %796 = vmatprep.subr.mxu0 0.0
        %797 = vmatpush1.msra.mxu0 0.0
        %798 = vmatprep.subr.mxu0 0.0
        %799 = vmatpush1.msra.mxu0 0.0
        %800 = vmatprep.subr.mxu0 0.0
        %801 = vmatpush1.msra.mxu0 0.0
        %802 = vmatprep.subr.mxu0 0.0
        %803 = vmatpush1.msra.mxu0 0.0
        %804 = vmatprep.subr.mxu0 0.0
        %805 = vmatpush1.msra.mxu0 0.0
        %806 = vmatprep.subr.mxu0 0.0
        %807 = vmatpush1.msra.mxu0 0.0
        %808 = vmatprep.subr.mxu0 0.0
        %809 = vmatpush1.msra.mxu0 0.0
        %810 = vmatprep.subr.mxu0 0.0
        %811 = vmatpush1.msra.mxu0 0.0
        %812 = vmatprep.subr.mxu0 0.0
        %813 = vmatpush1.msra.mxu0 0.0
        %814 = vmatprep.subr.mxu0 0.0
        %815 = vmatpush1.msra.mxu0 0.0
        %816 = vmatprep.subr.mxu0 0.0
        %817 = vmatpush1.msra.mxu0 0.0
        %818 = vmatprep.subr.mxu0 0.0
        %819 = vmatpush1.msra.mxu0 0.0
        %820 = vmatprep.subr.mxu0 0.0
        %821 = vmatpush1.msra.mxu0 0.0
        %822 = vmatprep.subr.mxu0 0.0
        %823 = vmatpush1.msra.mxu0 0.0
        %824 = vmatprep.subr.mxu0 0.0
        %825 = vmatpush1.msra.mxu0 0.0
        %826 = vmatprep.subr.mxu0 0.0
        %827 = vmatpush1.msra.mxu0 0.0
        %828 = vmatprep.subr.mxu0 0.0
        %829 = vmatpush1.msra.mxu0 0.0
        %830 = vmatprep.subr.mxu0 0.0
        %831 = vmatpush1.msra.mxu0 0.0
        %832 = vmatprep.subr.mxu0 0.0
        %833 = vmatpush1.msra.mxu0 0.0
        %834 = vmatprep.subr.mxu0 0.0
        %835 = vmatpush1.msra.mxu0 0.0
        %836 = vmatprep.subr.mxu0 0.0
        %837 = vmatpush1.msra.mxu0 0.0
        %838 = vmatprep.subr.mxu0 0.0
        %839 = vmatpush1.msra.mxu0 0.0
        %840 = vmatprep.subr.mxu0 0.0
        %841 = vmatpush1.msra.mxu0 0.0
        %842 = vmatprep.subr.mxu0 0.0
        %843 = vmatpush1.msra.mxu0 0.0
        %844 = vmatprep.subr.mxu0 0.0
        %845 = vmatpush1.msra.mxu0 0.0
        %846 = vmatprep.subr.mxu0 0.0
        %847 = vmatpush1.msra.mxu0 0.0
        %848 = vmatprep.subr.mxu0 0.0
        %849 = vmatpush1.msra.mxu0 0.0
        %850 = vmatprep.subr.mxu0 0.0
        %851 = vmatpush1.msra.mxu0 0.0
        %852 = vmatprep.mubr.f32.mxu0 0.0
        %853 = vmatmul.mubr.f32.gmra.mrb[0].mxu0 %v786
        %v854 = vpop.f32.mrb[0].mxu0
        %v855 = vadd.f32 0.0, %v854
        %v856 = vpop.f32.mrb[0].mxu0
        %v857 = vadd.f32 0.0, %v856
        %858 = vdwg.mxu0
        %v860 = vsel %vm636, %v623, 0
        %862 = vmatprep.subr.mxu0 %v553
        %863 = vmatpush1.msra.mxu0 %v552
        %864 = vmatprep.subr.mxu0 %v555
        %865 = vmatpush1.msra.mxu0 %v554
        %866 = vmatprep.subr.mxu0 0.0
        %867 = vmatpush1.msra.mxu0 0.0
        %868 = vmatprep.subr.mxu0 0.0
        %869 = vmatpush1.msra.mxu0 0.0
        %870 = vmatprep.subr.mxu0 0.0
        %871 = vmatpush1.msra.mxu0 0.0
        %872 = vmatprep.subr.mxu0 0.0
        %873 = vmatpush1.msra.mxu0 0.0
        %874 = vmatprep.subr.mxu0 0.0
        %875 = vmatpush1.msra.mxu0 0.0
        %876 = vmatprep.subr.mxu0 0.0
        %877 = vmatpush1.msra.mxu0 0.0
        %878 = vmatprep.subr.mxu0 0.0
        %879 = vmatpush1.msra.mxu0 0.0
        %880 = vmatprep.subr.mxu0 0.0
        %881 = vmatpush1.msra.mxu0 0.0
        %882 = vmatprep.subr.mxu0 0.0
        %883 = vmatpush1.msra.mxu0 0.0
        %884 = vmatprep.subr.mxu0 0.0
        %885 = vmatpush1.msra.mxu0 0.0
        %886 = vmatprep.subr.mxu0 0.0
        %887 = vmatpush1.msra.mxu0 0.0
        %888 = vmatprep.subr.mxu0 0.0
        %889 = vmatpush1.msra.mxu0 0.0
        %890 = vmatprep.subr.mxu0 0.0
        %891 = vmatpush1.msra.mxu0 0.0
        %892 = vmatprep.subr.mxu0 0.0
        %893 = vmatpush1.msra.mxu0 0.0
        %894 = vmatprep.subr.mxu0 0.0
        %895 = vmatpush1.msra.mxu0 0.0
        %896 = vmatprep.subr.mxu0 0.0
        %897 = vmatpush1.msra.mxu0 0.0
        %898 = vmatprep.subr.mxu0 0.0
        %899 = vmatpush1.msra.mxu0 0.0
        %900 = vmatprep.subr.mxu0 0.0
        %901 = vmatpush1.msra.mxu0 0.0
        %902 = vmatprep.subr.mxu0 0.0
        %903 = vmatpush1.msra.mxu0 0.0
        %904 = vmatprep.subr.mxu0 0.0
        %905 = vmatpush1.msra.mxu0 0.0
        %906 = vmatprep.subr.mxu0 0.0
        %907 = vmatpush1.msra.mxu0 0.0
        %908 = vmatprep.subr.mxu0 0.0
        %909 = vmatpush1.msra.mxu0 0.0
        %910 = vmatprep.subr.mxu0 0.0
        %911 = vmatpush1.msra.mxu0 0.0
        %912 = vmatprep.subr.mxu0 0.0
        %913 = vmatpush1.msra.mxu0 0.0
        %914 = vmatprep.subr.mxu0 0.0
        %915 = vmatpush1.msra.mxu0 0.0
        %916 = vmatprep.subr.mxu0 0.0
        %917 = vmatpush1.msra.mxu0 0.0
        %918 = vmatprep.subr.mxu0 0.0
        %919 = vmatpush1.msra.mxu0 0.0
        %920 = vmatprep.subr.mxu0 0.0
        %921 = vmatpush1.msra.mxu0 0.0
        %922 = vmatprep.subr.mxu0 0.0
        %923 = vmatpush1.msra.mxu0 0.0
        %924 = vmatprep.subr.mxu0 0.0
        %925 = vmatpush1.msra.mxu0 0.0
        %926 = vmatprep.mubr.f32.mxu0 0.0
        %927 = vmatmul.mubr.f32.gmra.mrb[0].mxu0 %v860
        %v928 = vpop.f32.mrb[0].mxu0
        %v929 = vadd.f32 0.0, %v928
        %v930 = vpop.f32.mrb[0].mxu0
        %v931 = vadd.f32 0.0, %v930
        %932 = vdwg.mxu0
        %v934 = vsel %vm636, %v624, 0
        %936 = vmatprep.subr.mxu0 %v557
        %937 = vmatpush1.msra.mxu0 %v556
        %938 = vmatprep.subr.mxu0 %v559
        %939 = vmatpush1.msra.mxu0 %v558
        %940 = vmatprep.subr.mxu0 0.0
        %941 = vmatpush1.msra.mxu0 0.0
        %942 = vmatprep.subr.mxu0 0.0
        %943 = vmatpush1.msra.mxu0 0.0
        %944 = vmatprep.subr.mxu0 0.0
        %945 = vmatpush1.msra.mxu0 0.0
        %946 = vmatprep.subr.mxu0 0.0
        %947 = vmatpush1.msra.mxu0 0.0
        %948 = vmatprep.subr.mxu0 0.0
        %949 = vmatpush1.msra.mxu0 0.0
        %950 = vmatprep.subr.mxu0 0.0
        %951 = vmatpush1.msra.mxu0 0.0
        %952 = vmatprep.subr.mxu0 0.0
        %953 = vmatpush1.msra.mxu0 0.0
        %954 = vmatprep.subr.mxu0 0.0
        %955 = vmatpush1.msra.mxu0 0.0
        %956 = vmatprep.subr.mxu0 0.0
        %957 = vmatpush1.msra.mxu0 0.0
        %958 = vmatprep.subr.mxu0 0.0
        %959 = vmatpush1.msra.mxu0 0.0
        %960 = vmatprep.subr.mxu0 0.0
        %961 = vmatpush1.msra.mxu0 0.0
        %962 = vmatprep.subr.mxu0 0.0
        %963 = vmatpush1.msra.mxu0 0.0
        %964 = vmatprep.subr.mxu0 0.0
        %965 = vmatpush1.msra.mxu0 0.0
        %966 = vmatprep.subr.mxu0 0.0
        %967 = vmatpush1.msra.mxu0 0.0
        %968 = vmatprep.subr.mxu0 0.0
        %969 = vmatpush1.msra.mxu0 0.0
        %970 = vmatprep.subr.mxu0 0.0
        %971 = vmatpush1.msra.mxu0 0.0
        %972 = vmatprep.subr.mxu0 0.0
        %973 = vmatpush1.msra.mxu0 0.0
        %974 = vmatprep.subr.mxu0 0.0
        %975 = vmatpush1.msra.mxu0 0.0
        %976 = vmatprep.subr.mxu0 0.0
        %977 = vmatpush1.msra.mxu0 0.0
        %978 = vmatprep.subr.mxu0 0.0
        %979 = vmatpush1.msra.mxu0 0.0
        %980 = vmatprep.subr.mxu0 0.0
        %981 = vmatpush1.msra.mxu0 0.0
        %982 = vmatprep.subr.mxu0 0.0
        %983 = vmatpush1.msra.mxu0 0.0
        %984 = vmatprep.subr.mxu0 0.0
        %985 = vmatpush1.msra.mxu0 0.0
        %986 = vmatprep.subr.mxu0 0.0
        %987 = vmatpush1.msra.mxu0 0.0
        %988 = vmatprep.subr.mxu0 0.0
        %989 = vmatpush1.msra.mxu0 0.0
        %990 = vmatprep.subr.mxu0 0.0
        %991 = vmatpush1.msra.mxu0 0.0
        %992 = vmatprep.subr.mxu0 0.0
        %993 = vmatpush1.msra.mxu0 0.0
        %994 = vmatprep.subr.mxu0 0.0
        %995 = vmatpush1.msra.mxu0 0.0
        %996 = vmatprep.subr.mxu0 0.0
        %997 = vmatpush1.msra.mxu0 0.0
        %998 = vmatprep.subr.mxu0 0.0
        %999 = vmatpush1.msra.mxu0 0.0
        %1000 = vmatprep.mubr.f32.mxu0 0.0
        %1001 = vmatmul.mubr.f32.gmra.mrb[0].mxu0 %v934
        %v1002 = vpop.f32.mrb[0].mxu0
        %v1003 = vadd.f32 0.0, %v1002
        %v1004 = vpop.f32.mrb[0].mxu0
        %v1005 = vadd.f32 0.0, %v1004
        %1006 = vdwg.mxu0
        %v1008 = vsel %vm636, %v625, 0
        %1010 = vmatprep.subr.mxu0 %v561
        %1011 = vmatpush1.msra.mxu0 %v560
        %1012 = vmatprep.subr.mxu0 %v563
        %1013 = vmatpush1.msra.mxu0 %v562
        %1014 = vmatprep.subr.mxu0 0.0
        %1015 = vmatpush1.msra.mxu0 0.0
        %1016 = vmatprep.subr.mxu0 0.0
        %1017 = vmatpush1.msra.mxu0 0.0
        %1018 = vmatprep.subr.mxu0 0.0
        %1019 = vmatpush1.msra.mxu0 0.0
        %1020 = vmatprep.subr.mxu0 0.0
        %1021 = vmatpush1.msra.mxu0 0.0
        %1022 = vmatprep.subr.mxu0 0.0
        %1023 = vmatpush1.msra.mxu0 0.0
        %1024 = vmatprep.subr.mxu0 0.0
        %1025 = vmatpush1.msra.mxu0 0.0
        %1026 = vmatprep.subr.mxu0 0.0
        %1027 = vmatpush1.msra.mxu0 0.0
        %1028 = vmatprep.subr.mxu0 0.0
        %1029 = vmatpush1.msra.mxu0 0.0
        %1030 = vmatprep.subr.mxu0 0.0
        %1031 = vmatpush1.msra.mxu0 0.0
        %1032 = vmatprep.subr.mxu0 0.0
        %1033 = vmatpush1.msra.mxu0 0.0
        %1034 = vmatprep.subr.mxu0 0.0
        %1035 = vmatpush1.msra.mxu0 0.0
        %1036 = vmatprep.subr.mxu0 0.0
        %1037 = vmatpush1.msra.mxu0 0.0
        %1038 = vmatprep.subr.mxu0 0.0
        %1039 = vmatpush1.msra.mxu0 0.0
        %1040 = vmatprep.subr.mxu0 0.0
        %1041 = vmatpush1.msra.mxu0 0.0
        %1042 = vmatprep.subr.mxu0 0.0
        %1043 = vmatpush1.msra.mxu0 0.0
        %1044 = vmatprep.subr.mxu0 0.0
        %1045 = vmatpush1.msra.mxu0 0.0
        %1046 = vmatprep.subr.mxu0 0.0
        %1047 = vmatpush1.msra.mxu0 0.0
        %1048 = vmatprep.subr.mxu0 0.0
        %1049 = vmatpush1.msra.mxu0 0.0
        %1050 = vmatprep.subr.mxu0 0.0
        %1051 = vmatpush1.msra.mxu0 0.0
        %1052 = vmatprep.subr.mxu0 0.0
        %1053 = vmatpush1.msra.mxu0 0.0
        %1054 = vmatprep.subr.mxu0 0.0
        %1055 = vmatpush1.msra.mxu0 0.0
        %1056 = vmatprep.subr.mxu0 0.0
        %1057 = vmatpush1.msra.mxu0 0.0
        %1058 = vmatprep.subr.mxu0 0.0
        %1059 = vmatpush1.msra.mxu0 0.0
        %1060 = vmatprep.subr.mxu0 0.0
        %1061 = vmatpush1.msra.mxu0 0.0
        %1062 = vmatprep.subr.mxu0 0.0
        %1063 = vmatpush1.msra.mxu0 0.0
        %1064 = vmatprep.subr.mxu0 0.0
        %1065 = vmatpush1.msra.mxu0 0.0
        %1066 = vmatprep.subr.mxu0 0.0
        %1067 = vmatpush1.msra.mxu0 0.0
        %1068 = vmatprep.subr.mxu0 0.0
        %1069 = vmatpush1.msra.mxu0 0.0
        %1070 = vmatprep.subr.mxu0 0.0
        %1071 = vmatpush1.msra.mxu0 0.0
        %1072 = vmatprep.subr.mxu0 0.0
        %1073 = vmatpush1.msra.mxu0 0.0
        %1074 = vmatprep.mubr.f32.mxu0 0.0
        %1075 = vmatmul.mubr.f32.gmra.mrb[0].mxu0 %v1008
        %v1076 = vpop.f32.mrb[0].mxu0
        %v1077 = vadd.f32 0.0, %v1076
        %v1078 = vpop.f32.mrb[0].mxu0
        %v1079 = vadd.f32 0.0, %v1078
        %1080 = vdwg.mxu0
        %v1082 = vsel %vm636, %v626, 0
        %1084 = vmatprep.subr.mxu0 %v565
        %1085 = vmatpush1.msra.mxu0 %v564
        %1086 = vmatprep.subr.mxu0 %v567
        %1087 = vmatpush1.msra.mxu0 %v566
        %1088 = vmatprep.subr.mxu0 0.0
        %1089 = vmatpush1.msra.mxu0 0.0
        %1090 = vmatprep.subr.mxu0 0.0
        %1091 = vmatpush1.msra.mxu0 0.0
        %1092 = vmatprep.subr.mxu0 0.0
        %1093 = vmatpush1.msra.mxu0 0.0
        %1094 = vmatprep.subr.mxu0 0.0
        %1095 = vmatpush1.msra.mxu0 0.0
        %1096 = vmatprep.subr.mxu0 0.0
        %1097 = vmatpush1.msra.mxu0 0.0
        %1098 = vmatprep.subr.mxu0 0.0
        %1099 = vmatpush1.msra.mxu0 0.0
        %1100 = vmatprep.subr.mxu0 0.0
        %1101 = vmatpush1.msra.mxu0 0.0
        %1102 = vmatprep.subr.mxu0 0.0
        %1103 = vmatpush1.msra.mxu0 0.0
        %1104 = vmatprep.subr.mxu0 0.0
        %1105 = vmatpush1.msra.mxu0 0.0
        %1106 = vmatprep.subr.mxu0 0.0
        %1107 = vmatpush1.msra.mxu0 0.0
        %1108 = vmatprep.subr.mxu0 0.0
        %1109 = vmatpush1.msra.mxu0 0.0
        %1110 = vmatprep.subr.mxu0 0.0
        %1111 = vmatpush1.msra.mxu0 0.0
        %1112 = vmatprep.subr.mxu0 0.0
        %1113 = vmatpush1.msra.mxu0 0.0
        %1114 = vmatprep.subr.mxu0 0.0
        %1115 = vmatpush1.msra.mxu0 0.0
        %1116 = vmatprep.subr.mxu0 0.0
        %1117 = vmatpush1.msra.mxu0 0.0
        %1118 = vmatprep.subr.mxu0 0.0
        %1119 = vmatpush1.msra.mxu0 0.0
        %1120 = vmatprep.subr.mxu0 0.0
        %1121 = vmatpush1.msra.mxu0 0.0
        %1122 = vmatprep.subr.mxu0 0.0
        %1123 = vmatpush1.msra.mxu0 0.0
        %1124 = vmatprep.subr.mxu0 0.0
        %1125 = vmatpush1.msra.mxu0 0.0
        %1126 = vmatprep.subr.mxu0 0.0
        %1127 = vmatpush1.msra.mxu0 0.0
        %1128 = vmatprep.subr.mxu0 0.0
        %1129 = vmatpush1.msra.mxu0 0.0
        %1130 = vmatprep.subr.mxu0 0.0
        %1131 = vmatpush1.msra.mxu0 0.0
        %1132 = vmatprep.subr.mxu0 0.0
        %1133 = vmatpush1.msra.mxu0 0.0
        %1134 = vmatprep.subr.mxu0 0.0
        %1135 = vmatpush1.msra.mxu0 0.0
        %1136 = vmatprep.subr.mxu0 0.0
        %1137 = vmatpush1.msra.mxu0 0.0
        %1138 = vmatprep.subr.mxu0 0.0
        %1139 = vmatpush1.msra.mxu0 0.0
        %1140 = vmatprep.subr.mxu0 0.0
        %1141 = vmatpush1.msra.mxu0 0.0
        %1142 = vmatprep.subr.mxu0 0.0
        %1143 = vmatpush1.msra.mxu0 0.0
        %1144 = vmatprep.subr.mxu0 0.0
        %1145 = vmatpush1.msra.mxu0 0.0
        %1146 = vmatprep.subr.mxu0 0.0
        %1147 = vmatpush1.msra.mxu0 0.0
        %1148 = vmatprep.mubr.f32.mxu0 0.0
        %1149 = vmatmul.mubr.f32.gmra.mrb[0].mxu0 %v1082
        %v1150 = vpop.f32.mrb[0].mxu0
        %v1151 = vadd.f32 0.0, %v1150
        %v1152 = vpop.f32.mrb[0].mxu0
        %v1153 = vadd.f32 0.0, %v1152
        %1154 = vdwg.mxu0
        %v1156 = vsel %vm636, %v627, 0
        %1158 = vmatprep.subr.mxu0 %v569
        %1159 = vmatpush1.msra.mxu0 %v568
        %1160 = vmatprep.subr.mxu0 %v571
        %1161 = vmatpush1.msra.mxu0 %v570
        %1162 = vmatprep.subr.mxu0 0.0
        %1163 = vmatpush1.msra.mxu0 0.0
        %1164 = vmatprep.subr.mxu0 0.0
        %1165 = vmatpush1.msra.mxu0 0.0
        %1166 = vmatprep.subr.mxu0 0.0
        %1167 = vmatpush1.msra.mxu0 0.0
        %1168 = vmatprep.subr.mxu0 0.0
        %1169 = vmatpush1.msra.mxu0 0.0
        %1170 = vmatprep.subr.mxu0 0.0
        %1171 = vmatpush1.msra.mxu0 0.0
        %1172 = vmatprep.subr.mxu0 0.0
        %1173 = vmatpush1.msra.mxu0 0.0
        %1174 = vmatprep.subr.mxu0 0.0
        %1175 = vmatpush1.msra.mxu0 0.0
        %1176 = vmatprep.subr.mxu0 0.0
        %1177 = vmatpush1.msra.mxu0 0.0
        %1178 = vmatprep.subr.mxu0 0.0
        %1179 = vmatpush1.msra.mxu0 0.0
        %1180 = vmatprep.subr.mxu0 0.0
        %1181 = vmatpush1.msra.mxu0 0.0
        %1182 = vmatprep.subr.mxu0 0.0
        %1183 = vmatpush1.msra.mxu0 0.0
        %1184 = vmatprep.subr.mxu0 0.0
        %1185 = vmatpush1.msra.mxu0 0.0
        %1186 = vmatprep.subr.mxu0 0.0
        %1187 = vmatpush1.msra.mxu0 0.0
        %1188 = vmatprep.subr.mxu0 0.0
        %1189 = vmatpush1.msra.mxu0 0.0
        %1190 = vmatprep.subr.mxu0 0.0
        %1191 = vmatpush1.msra.mxu0 0.0
        %1192 = vmatprep.subr.mxu0 0.0
        %1193 = vmatpush1.msra.mxu0 0.0
        %1194 = vmatprep.subr.mxu0 0.0
        %1195 = vmatpush1.msra.mxu0 0.0
        %1196 = vmatprep.subr.mxu0 0.0
        %1197 = vmatpush1.msra.mxu0 0.0
        %1198 = vmatprep.subr.mxu0 0.0
        %1199 = vmatpush1.msra.mxu0 0.0
        %1200 = vmatprep.subr.mxu0 0.0
        %1201 = vmatpush1.msra.mxu0 0.0
        %1202 = vmatprep.subr.mxu0 0.0
        %1203 = vmatpush1.msra.mxu0 0.0
        %1204 = vmatprep.subr.mxu0 0.0
        %1205 = vmatpush1.msra.mxu0 0.0
        %1206 = vmatprep.subr.mxu0 0.0
        %1207 = vmatpush1.msra.mxu0 0.0
        %1208 = vmatprep.subr.mxu0 0.0
        %1209 = vmatpush1.msra.mxu0 0.0
        %1210 = vmatprep.subr.mxu0 0.0
        %1211 = vmatpush1.msra.mxu0 0.0
        %1212 = vmatprep.subr.mxu0 0.0
        %1213 = vmatpush1.msra.mxu0 0.0
        %1214 = vmatprep.subr.mxu0 0.0
        %1215 = vmatpush1.msra.mxu0 0.0
        %1216 = vmatprep.subr.mxu0 0.0
        %1217 = vmatpush1.msra.mxu0 0.0
        %1218 = vmatprep.subr.mxu0 0.0
        %1219 = vmatpush1.msra.mxu0 0.0
        %1220 = vmatprep.subr.mxu0 0.0
        %1221 = vmatpush1.msra.mxu0 0.0
        %1222 = vmatprep.mubr.f32.mxu0 0.0
        %1223 = vmatmul.mubr.f32.gmra.mrb[0].mxu0 %v1156
        %v1224 = vpop.f32.mrb[0].mxu0
        %v1225 = vadd.f32 0.0, %v1224
        %v1226 = vpop.f32.mrb[0].mxu0
        %v1227 = vadd.f32 0.0, %v1226
        %1228 = vdwg.mxu0
        %v1230 = vsel %vm636, %v628, 0
        %1232 = vmatprep.subr.mxu0 %v573
        %1233 = vmatpush1.msra.mxu0 %v572
        %1234 = vmatprep.subr.mxu0 %v575
        %1235 = vmatpush1.msra.mxu0 %v574
        %1236 = vmatprep.subr.mxu0 0.0
        %1237 = vmatpush1.msra.mxu0 0.0
        %1238 = vmatprep.subr.mxu0 0.0
        %1239 = vmatpush1.msra.mxu0 0.0
        %1240 = vmatprep.subr.mxu0 0.0
        %1241 = vmatpush1.msra.mxu0 0.0
        %1242 = vmatprep.subr.mxu0 0.0
        %1243 = vmatpush1.msra.mxu0 0.0
        %1244 = vmatprep.subr.mxu0 0.0
        %1245 = vmatpush1.msra.mxu0 0.0
        %1246 = vmatprep.subr.mxu0 0.0
        %1247 = vmatpush1.msra.mxu0 0.0
        %1248 = vmatprep.subr.mxu0 0.0
        %1249 = vmatpush1.msra.mxu0 0.0
        %1250 = vmatprep.subr.mxu0 0.0
        %1251 = vmatpush1.msra.mxu0 0.0
        %1252 = vmatprep.subr.mxu0 0.0
        %1253 = vmatpush1.msra.mxu0 0.0
        %1254 = vmatprep.subr.mxu0 0.0
        %1255 = vmatpush1.msra.mxu0 0.0
        %1256 = vmatprep.subr.mxu0 0.0
        %1257 = vmatpush1.msra.mxu0 0.0
        %1258 = vmatprep.subr.mxu0 0.0
        %1259 = vmatpush1.msra.mxu0 0.0
        %1260 = vmatprep.subr.mxu0 0.0
        %1261 = vmatpush1.msra.mxu0 0.0
        %1262 = vmatprep.subr.mxu0 0.0
        %1263 = vmatpush1.msra.mxu0 0.0
        %1264 = vmatprep.subr.mxu0 0.0
        %1265 = vmatpush1.msra.mxu0 0.0
        %1266 = vmatprep.subr.mxu0 0.0
        %1267 = vmatpush1.msra.mxu0 0.0
        %1268 = vmatprep.subr.mxu0 0.0
        %1269 = vmatpush1.msra.mxu0 0.0
        %1270 = vmatprep.subr.mxu0 0.0
        %1271 = vmatpush1.msra.mxu0 0.0
        %1272 = vmatprep.subr.mxu0 0.0
        %1273 = vmatpush1.msra.mxu0 0.0
        %1274 = vmatprep.subr.mxu0 0.0
        %1275 = vmatpush1.msra.mxu0 0.0
        %1276 = vmatprep.subr.mxu0 0.0
        %1277 = vmatpush1.msra.mxu0 0.0
        %1278 = vmatprep.subr.mxu0 0.0
        %1279 = vmatpush1.msra.mxu0 0.0
        %1280 = vmatprep.subr.mxu0 0.0
        %1281 = vmatpush1.msra.mxu0 0.0
        %1282 = vmatprep.subr.mxu0 0.0
        %1283 = vmatpush1.msra.mxu0 0.0
        %1284 = vmatprep.subr.mxu0 0.0
        %1285 = vmatpush1.msra.mxu0 0.0
        %1286 = vmatprep.subr.mxu0 0.0
        %1287 = vmatpush1.msra.mxu0 0.0
        %1288 = vmatprep.subr.mxu0 0.0
        %1289 = vmatpush1.msra.mxu0 0.0
        %1290 = vmatprep.subr.mxu0 0.0
        %1291 = vmatpush1.msra.mxu0 0.0
        %1292 = vmatprep.subr.mxu0 0.0
        %1293 = vmatpush1.msra.mxu0 0.0
        %1294 = vmatprep.subr.mxu0 0.0
        %1295 = vmatpush1.msra.mxu0 0.0
        %1296 = vmatprep.mubr.f32.mxu0 0.0
        %1297 = vmatmul.mubr.f32.gmra.mrb[0].mxu0 %v1230
        %v1298 = vpop.f32.mrb[0].mxu0
        %v1299 = vadd.f32 0.0, %v1298
        %v1300 = vpop.f32.mrb[0].mxu0
        %v1301 = vadd.f32 0.0, %v1300
        %1302 = vdwg.mxu0
        %v1304 = vsel %vm636, %v629, 0
        %1306 = vmatprep.subr.mxu0 %v577
        %1307 = vmatpush1.msra.mxu0 %v576
        %1308 = vmatprep.subr.mxu0 %v579
        %1309 = vmatpush1.msra.mxu0 %v578
        %1310 = vmatprep.subr.mxu0 0.0
        %1311 = vmatpush1.msra.mxu0 0.0
        %1312 = vmatprep.subr.mxu0 0.0
        %1313 = vmatpush1.msra.mxu0 0.0
        %1314 = vmatprep.subr.mxu0 0.0
        %1315 = vmatpush1.msra.mxu0 0.0
        %1316 = vmatprep.subr.mxu0 0.0
        %1317 = vmatpush1.msra.mxu0 0.0
        %1318 = vmatprep.subr.mxu0 0.0
        %1319 = vmatpush1.msra.mxu0 0.0
        %1320 = vmatprep.subr.mxu0 0.0
        %1321 = vmatpush1.msra.mxu0 0.0
        %1322 = vmatprep.subr.mxu0 0.0
        %1323 = vmatpush1.msra.mxu0 0.0
        %1324 = vmatprep.subr.mxu0 0.0
        %1325 = vmatpush1.msra.mxu0 0.0
        %1326 = vmatprep.subr.mxu0 0.0
        %1327 = vmatpush1.msra.mxu0 0.0
        %1328 = vmatprep.subr.mxu0 0.0
        %1329 = vmatpush1.msra.mxu0 0.0
        %1330 = vmatprep.subr.mxu0 0.0
        %1331 = vmatpush1.msra.mxu0 0.0
        %1332 = vmatprep.subr.mxu0 0.0
        %1333 = vmatpush1.msra.mxu0 0.0
        %1334 = vmatprep.subr.mxu0 0.0
        %1335 = vmatpush1.msra.mxu0 0.0
        %1336 = vmatprep.subr.mxu0 0.0
        %1337 = vmatpush1.msra.mxu0 0.0
        %1338 = vmatprep.subr.mxu0 0.0
        %1339 = vmatpush1.msra.mxu0 0.0
        %1340 = vmatprep.subr.mxu0 0.0
        %1341 = vmatpush1.msra.mxu0 0.0
        %1342 = vmatprep.subr.mxu0 0.0
        %1343 = vmatpush1.msra.mxu0 0.0
        %1344 = vmatprep.subr.mxu0 0.0
        %1345 = vmatpush1.msra.mxu0 0.0
        %1346 = vmatprep.subr.mxu0 0.0
        %1347 = vmatpush1.msra.mxu0 0.0
        %1348 = vmatprep.subr.mxu0 0.0
        %1349 = vmatpush1.msra.mxu0 0.0
        %1350 = vmatprep.subr.mxu0 0.0
        %1351 = vmatpush1.msra.mxu0 0.0
        %1352 = vmatprep.subr.mxu0 0.0
        %1353 = vmatpush1.msra.mxu0 0.0
        %1354 = vmatprep.subr.mxu0 0.0
        %1355 = vmatpush1.msra.mxu0 0.0
        %1356 = vmatprep.subr.mxu0 0.0
        %1357 = vmatpush1.msra.mxu0 0.0
        %1358 = vmatprep.subr.mxu0 0.0
        %1359 = vmatpush1.msra.mxu0 0.0
        %1360 = vmatprep.subr.mxu0 0.0
        %1361 = vmatpush1.msra.mxu0 0.0
        %1362 = vmatprep.subr.mxu0 0.0
        %1363 = vmatpush1.msra.mxu0 0.0
        %1364 = vmatprep.subr.mxu0 0.0
        %1365 = vmatpush1.msra.mxu0 0.0
        %1366 = vmatprep.subr.mxu0 0.0
        %1367 = vmatpush1.msra.mxu0 0.0
        %1368 = vmatprep.subr.mxu0 0.0
        %1369 = vmatpush1.msra.mxu0 0.0
        %1370 = vmatprep.mubr.f32.mxu0 0.0
        %1371 = vmatmul.mubr.f32.gmra.mrb[0].mxu0 %v1304
        %v1372 = vpop.f32.mrb[0].mxu0
        %v1373 = vadd.f32 0.0, %v1372
        %v1374 = vpop.f32.mrb[0].mxu0
        %v1375 = vadd.f32 0.0, %v1374
        %1376 = vdwg.mxu0
        %v1378 = vsel %vm636, %v630, 0
        %1380 = vmatprep.subr.mxu0 %v581
        %1381 = vmatpush1.msra.mxu0 %v580
        %1382 = vmatprep.subr.mxu0 %v583
        %1383 = vmatpush1.msra.mxu0 %v582
        %1384 = vmatprep.subr.mxu0 0.0
        %1385 = vmatpush1.msra.mxu0 0.0
        %1386 = vmatprep.subr.mxu0 0.0
        %1387 = vmatpush1.msra.mxu0 0.0
        %1388 = vmatprep.subr.mxu0 0.0
        %1389 = vmatpush1.msra.mxu0 0.0
        %1390 = vmatprep.subr.mxu0 0.0
        %1391 = vmatpush1.msra.mxu0 0.0
        %1392 = vmatprep.subr.mxu0 0.0
        %1393 = vmatpush1.msra.mxu0 0.0
        %1394 = vmatprep.subr.mxu0 0.0
        %1395 = vmatpush1.msra.mxu0 0.0
        %1396 = vmatprep.subr.mxu0 0.0
        %1397 = vmatpush1.msra.mxu0 0.0
        %1398 = vmatprep.subr.mxu0 0.0
        %1399 = vmatpush1.msra.mxu0 0.0
        %1400 = vmatprep.subr.mxu0 0.0
        %1401 = vmatpush1.msra.mxu0 0.0
        %1402 = vmatprep.subr.mxu0 0.0
        %1403 = vmatpush1.msra.mxu0 0.0
        %1404 = vmatprep.subr.mxu0 0.0
        %1405 = vmatpush1.msra.mxu0 0.0
        %1406 = vmatprep.subr.mxu0 0.0
        %1407 = vmatpush1.msra.mxu0 0.0
        %1408 = vmatprep.subr.mxu0 0.0
        %1409 = vmatpush1.msra.mxu0 0.0
        %1410 = vmatprep.subr.mxu0 0.0
        %1411 = vmatpush1.msra.mxu0 0.0
        %1412 = vmatprep.subr.mxu0 0.0
        %1413 = vmatpush1.msra.mxu0 0.0
        %1414 = vmatprep.subr.mxu0 0.0
        %1415 = vmatpush1.msra.mxu0 0.0
        %1416 = vmatprep.subr.mxu0 0.0
        %1417 = vmatpush1.msra.mxu0 0.0
        %1418 = vmatprep.subr.mxu0 0.0
        %1419 = vmatpush1.msra.mxu0 0.0
        %1420 = vmatprep.subr.mxu0 0.0
        %1421 = vmatpush1.msra.mxu0 0.0
        %1422 = vmatprep.subr.mxu0 0.0
        %1423 = vmatpush1.msra.mxu0 0.0
        %1424 = vmatprep.subr.mxu0 0.0
        %1425 = vmatpush1.msra.mxu0 0.0
        %1426 = vmatprep.subr.mxu0 0.0
        %1427 = vmatpush1.msra.mxu0 0.0
        %1428 = vmatprep.subr.mxu0 0.0
        %1429 = vmatpush1.msra.mxu0 0.0
        %1430 = vmatprep.subr.mxu0 0.0
        %1431 = vmatpush1.msra.mxu0 0.0
        %1432 = vmatprep.subr.mxu0 0.0
        %1433 = vmatpush1.msra.mxu0 0.0
        %1434 = vmatprep.subr.mxu0 0.0
        %1435 = vmatpush1.msra.mxu0 0.0
        %1436 = vmatprep.subr.mxu0 0.0
        %1437 = vmatpush1.msra.mxu0 0.0
        %1438 = vmatprep.subr.mxu0 0.0
        %1439 = vmatpush1.msra.mxu0 0.0
        %1440 = vmatprep.subr.mxu0 0.0
        %1441 = vmatpush1.msra.mxu0 0.0
        %1442 = vmatprep.subr.mxu0 0.0
        %1443 = vmatpush1.msra.mxu0 0.0
        %1444 = vmatprep.mubr.f32.mxu0 0.0
        %1445 = vmatmul.mubr.f32.gmra.mrb[0].mxu0 %v1378
        %v1446 = vpop.f32.mrb[0].mxu0
        %v1447 = vadd.f32 0.0, %v1446
        %v1448 = vpop.f32.mrb[0].mxu0
        %v1449 = vadd.f32 0.0, %v1448
        %1450 = vdwg.mxu0
        %v1452 = vsel %vm636, %v631, 0
        %1454 = vmatprep.subr.mxu0 %v585
        %1455 = vmatpush1.msra.mxu0 %v584
        %1456 = vmatprep.subr.mxu0 %v587
        %1457 = vmatpush1.msra.mxu0 %v586
        %1458 = vmatprep.subr.mxu0 0.0
        %1459 = vmatpush1.msra.mxu0 0.0
        %1460 = vmatprep.subr.mxu0 0.0
        %1461 = vmatpush1.msra.mxu0 0.0
        %1462 = vmatprep.subr.mxu0 0.0
        %1463 = vmatpush1.msra.mxu0 0.0
        %1464 = vmatprep.subr.mxu0 0.0
        %1465 = vmatpush1.msra.mxu0 0.0
        %1466 = vmatprep.subr.mxu0 0.0
        %1467 = vmatpush1.msra.mxu0 0.0
        %1468 = vmatprep.subr.mxu0 0.0
        %1469 = vmatpush1.msra.mxu0 0.0
        %1470 = vmatprep.subr.mxu0 0.0
        %1471 = vmatpush1.msra.mxu0 0.0
        %1472 = vmatprep.subr.mxu0 0.0
        %1473 = vmatpush1.msra.mxu0 0.0
        %1474 = vmatprep.subr.mxu0 0.0
        %1475 = vmatpush1.msra.mxu0 0.0
        %1476 = vmatprep.subr.mxu0 0.0
        %1477 = vmatpush1.msra.mxu0 0.0
        %1478 = vmatprep.subr.mxu0 0.0
        %1479 = vmatpush1.msra.mxu0 0.0
        %1480 = vmatprep.subr.mxu0 0.0
        %1481 = vmatpush1.msra.mxu0 0.0
        %1482 = vmatprep.subr.mxu0 0.0
        %1483 = vmatpush1.msra.mxu0 0.0
        %1484 = vmatprep.subr.mxu0 0.0
        %1485 = vmatpush1.msra.mxu0 0.0
        %1486 = vmatprep.subr.mxu0 0.0
        %1487 = vmatpush1.msra.mxu0 0.0
        %1488 = vmatprep.subr.mxu0 0.0
        %1489 = vmatpush1.msra.mxu0 0.0
        %1490 = vmatprep.subr.mxu0 0.0
        %1491 = vmatpush1.msra.mxu0 0.0
        %1492 = vmatprep.subr.mxu0 0.0
        %1493 = vmatpush1.msra.mxu0 0.0
        %1494 = vmatprep.subr.mxu0 0.0
        %1495 = vmatpush1.msra.mxu0 0.0
        %1496 = vmatprep.subr.mxu0 0.0
        %1497 = vmatpush1.msra.mxu0 0.0
        %1498 = vmatprep.subr.mxu0 0.0
        %1499 = vmatpush1.msra.mxu0 0.0
        %1500 = vmatprep.subr.mxu0 0.0
        %1501 = vmatpush1.msra.mxu0 0.0
        %1502 = vmatprep.subr.mxu0 0.0
        %1503 = vmatpush1.msra.mxu0 0.0
        %1504 = vmatprep.subr.mxu0 0.0
        %1505 = vmatpush1.msra.mxu0 0.0
        %1506 = vmatprep.subr.mxu0 0.0
        %1507 = vmatpush1.msra.mxu0 0.0
        %1508 = vmatprep.subr.mxu0 0.0
        %1509 = vmatpush1.msra.mxu0 0.0
        %1510 = vmatprep.subr.mxu0 0.0
        %1511 = vmatpush1.msra.mxu0 0.0
        %1512 = vmatprep.subr.mxu0 0.0
        %1513 = vmatpush1.msra.mxu0 0.0
        %1514 = vmatprep.subr.mxu0 0.0
        %1515 = vmatpush1.msra.mxu0 0.0
        %1516 = vmatprep.subr.mxu0 0.0
        %1517 = vmatpush1.msra.mxu0 0.0
        %1518 = vmatprep.mubr.f32.mxu0 0.0
        %1519 = vmatmul.mubr.f32.gmra.mrb[0].mxu0 %v1452
        %v1520 = vpop.f32.mrb[0].mxu0
        %v1521 = vadd.f32 0.0, %v1520
        %v1522 = vpop.f32.mrb[0].mxu0
        %v1523 = vadd.f32 0.0, %v1522
        %1524 = vdwg.mxu0
        %v1526 = vsel %vm636, %v632, 0
        %1528 = vmatprep.subr.mxu0 %v589
        %1529 = vmatpush1.msra.mxu0 %v588
        %1530 = vmatprep.subr.mxu0 %v591
        %1531 = vmatpush1.msra.mxu0 %v590
        %1532 = vmatprep.subr.mxu0 0.0
        %1533 = vmatpush1.msra.mxu0 0.0
        %1534 = vmatprep.subr.mxu0 0.0
        %1535 = vmatpush1.msra.mxu0 0.0
        %1536 = vmatprep.subr.mxu0 0.0
        %1537 = vmatpush1.msra.mxu0 0.0
        %1538 = vmatprep.subr.mxu0 0.0
        %1539 = vmatpush1.msra.mxu0 0.0
        %1540 = vmatprep.subr.mxu0 0.0
        %1541 = vmatpush1.msra.mxu0 0.0
        %1542 = vmatprep.subr.mxu0 0.0
        %1543 = vmatpush1.msra.mxu0 0.0
        %1544 = vmatprep.subr.mxu0 0.0
        %1545 = vmatpush1.msra.mxu0 0.0
        %1546 = vmatprep.subr.mxu0 0.0
        %1547 = vmatpush1.msra.mxu0 0.0
        %1548 = vmatprep.subr.mxu0 0.0
        %1549 = vmatpush1.msra.mxu0 0.0
        %1550 = vmatprep.subr.mxu0 0.0
        %1551 = vmatpush1.msra.mxu0 0.0
        %1552 = vmatprep.subr.mxu0 0.0
        %1553 = vmatpush1.msra.mxu0 0.0
        %1554 = vmatprep.subr.mxu0 0.0
        %1555 = vmatpush1.msra.mxu0 0.0
        %1556 = vmatprep.subr.mxu0 0.0
        %1557 = vmatpush1.msra.mxu0 0.0
        %1558 = vmatprep.subr.mxu0 0.0
        %1559 = vmatpush1.msra.mxu0 0.0
        %1560 = vmatprep.subr.mxu0 0.0
        %1561 = vmatpush1.msra.mxu0 0.0
        %1562 = vmatprep.subr.mxu0 0.0
        %1563 = vmatpush1.msra.mxu0 0.0
        %1564 = vmatprep.subr.mxu0 0.0
        %1565 = vmatpush1.msra.mxu0 0.0
        %1566 = vmatprep.subr.mxu0 0.0
        %1567 = vmatpush1.msra.mxu0 0.0
        %1568 = vmatprep.subr.mxu0 0.0
        %1569 = vmatpush1.msra.mxu0 0.0
        %1570 = vmatprep.subr.mxu0 0.0
        %1571 = vmatpush1.msra.mxu0 0.0
        %1572 = vmatprep.subr.mxu0 0.0
        %1573 = vmatpush1.msra.mxu0 0.0
        %1574 = vmatprep.subr.mxu0 0.0
        %1575 = vmatpush1.msra.mxu0 0.0
        %1576 = vmatprep.subr.mxu0 0.0
        %1577 = vmatpush1.msra.mxu0 0.0
        %1578 = vmatprep.subr.mxu0 0.0
        %1579 = vmatpush1.msra.mxu0 0.0
        %1580 = vmatprep.subr.mxu0 0.0
        %1581 = vmatpush1.msra.mxu0 0.0
        %1582 = vmatprep.subr.mxu0 0.0
        %1583 = vmatpush1.msra.mxu0 0.0
        %1584 = vmatprep.subr.mxu0 0.0
        %1585 = vmatpush1.msra.mxu0 0.0
        %1586 = vmatprep.subr.mxu0 0.0
        %1587 = vmatpush1.msra.mxu0 0.0
        %1588 = vmatprep.subr.mxu0 0.0
        %1589 = vmatpush1.msra.mxu0 0.0
        %1590 = vmatprep.subr.mxu0 0.0
        %1591 = vmatpush1.msra.mxu0 0.0
        %1592 = vmatprep.mubr.f32.mxu0 0.0
        %1593 = vmatmul.mubr.f32.gmra.mrb[0].mxu0 %v1526
        %v1594 = vpop.f32.mrb[0].mxu0
        %v1595 = vadd.f32 0.0, %v1594
        %v1596 = vpop.f32.mrb[0].mxu0
        %v1597 = vadd.f32 0.0, %v1596
        %1598 = vdwg.mxu0
        %v1600 = vsel %vm636, %v633, 0
        %1602 = vmatprep.subr.mxu0 %v593
        %1603 = vmatpush1.msra.mxu0 %v592
        %1604 = vmatprep.subr.mxu0 %v595
        %1605 = vmatpush1.msra.mxu0 %v594
        %1606 = vmatprep.subr.mxu0 0.0
        %1607 = vmatpush1.msra.mxu0 0.0
        %1608 = vmatprep.subr.mxu0 0.0
        %1609 = vmatpush1.msra.mxu0 0.0
        %1610 = vmatprep.subr.mxu0 0.0
        %1611 = vmatpush1.msra.mxu0 0.0
        %1612 = vmatprep.subr.mxu0 0.0
        %1613 = vmatpush1.msra.mxu0 0.0
        %1614 = vmatprep.subr.mxu0 0.0
        %1615 = vmatpush1.msra.mxu0 0.0
        %1616 = vmatprep.subr.mxu0 0.0
        %1617 = vmatpush1.msra.mxu0 0.0
        %1618 = vmatprep.subr.mxu0 0.0
        %1619 = vmatpush1.msra.mxu0 0.0
        %1620 = vmatprep.subr.mxu0 0.0
        %1621 = vmatpush1.msra.mxu0 0.0
        %1622 = vmatprep.subr.mxu0 0.0
        %1623 = vmatpush1.msra.mxu0 0.0
        %1624 = vmatprep.subr.mxu0 0.0
        %1625 = vmatpush1.msra.mxu0 0.0
        %1626 = vmatprep.subr.mxu0 0.0
        %1627 = vmatpush1.msra.mxu0 0.0
        %1628 = vmatprep.subr.mxu0 0.0
        %1629 = vmatpush1.msra.mxu0 0.0
        %1630 = vmatprep.subr.mxu0 0.0
        %1631 = vmatpush1.msra.mxu0 0.0
        %1632 = vmatprep.subr.mxu0 0.0
        %1633 = vmatpush1.msra.mxu0 0.0
        %1634 = vmatprep.subr.mxu0 0.0
        %1635 = vmatpush1.msra.mxu0 0.0
        %1636 = vmatprep.subr.mxu0 0.0
        %1637 = vmatpush1.msra.mxu0 0.0
        %1638 = vmatprep.subr.mxu0 0.0
        %1639 = vmatpush1.msra.mxu0 0.0
        %1640 = vmatprep.subr.mxu0 0.0
        %1641 = vmatpush1.msra.mxu0 0.0
        %1642 = vmatprep.subr.mxu0 0.0
        %1643 = vmatpush1.msra.mxu0 0.0
        %1644 = vmatprep.subr.mxu0 0.0
        %1645 = vmatpush1.msra.mxu0 0.0
        %1646 = vmatprep.subr.mxu0 0.0
        %1647 = vmatpush1.msra.mxu0 0.0
        %1648 = vmatprep.subr.mxu0 0.0
        %1649 = vmatpush1.msra.mxu0 0.0
        %1650 = vmatprep.subr.mxu0 0.0
        %1651 = vmatpush1.msra.mxu0 0.0
        %1652 = vmatprep.subr.mxu0 0.0
        %1653 = vmatpush1.msra.mxu0 0.0
        %1654 = vmatprep.subr.mxu0 0.0
        %1655 = vmatpush1.msra.mxu0 0.0
        %1656 = vmatprep.subr.mxu0 0.0
        %1657 = vmatpush1.msra.mxu0 0.0
        %1658 = vmatprep.subr.mxu0 0.0
        %1659 = vmatpush1.msra.mxu0 0.0
        %1660 = vmatprep.subr.mxu0 0.0
        %1661 = vmatpush1.msra.mxu0 0.0
        %1662 = vmatprep.subr.mxu0 0.0
        %1663 = vmatpush1.msra.mxu0 0.0
        %1664 = vmatprep.subr.mxu0 0.0
        %1665 = vmatpush1.msra.mxu0 0.0
        %1666 = vmatprep.mubr.f32.mxu0 0.0
        %1667 = vmatmul.mubr.f32.gmra.mrb[0].mxu0 %v1600
        %v1668 = vpop.f32.mrb[0].mxu0
        %v1669 = vadd.f32 0.0, %v1668
        %v1670 = vpop.f32.mrb[0].mxu0
        %v1671 = vadd.f32 0.0, %v1670
        %1672 = vdwg.mxu0
        %v1674 = vsel %vm636, %v634, 0
        %1676 = vmatprep.subr.mxu0 %v597
        %1677 = vmatpush1.msra.mxu0 %v596
        %1678 = vmatprep.subr.mxu0 %v599
        %1679 = vmatpush1.msra.mxu0 %v598
        %1680 = vmatprep.subr.mxu0 0.0
        %1681 = vmatpush1.msra.mxu0 0.0
        %1682 = vmatprep.subr.mxu0 0.0
        %1683 = vmatpush1.msra.mxu0 0.0
        %1684 = vmatprep.subr.mxu0 0.0
        %1685 = vmatpush1.msra.mxu0 0.0
        %1686 = vmatprep.subr.mxu0 0.0
        %1687 = vmatpush1.msra.mxu0 0.0
        %1688 = vmatprep.subr.mxu0 0.0
        %1689 = vmatpush1.msra.mxu0 0.0
        %1690 = vmatprep.subr.mxu0 0.0
        %1691 = vmatpush1.msra.mxu0 0.0
        %1692 = vmatprep.subr.mxu0 0.0
        %1693 = vmatpush1.msra.mxu0 0.0
        %1694 = vmatprep.subr.mxu0 0.0
        %1695 = vmatpush1.msra.mxu0 0.0
        %1696 = vmatprep.subr.mxu0 0.0
        %1697 = vmatpush1.msra.mxu0 0.0
        %1698 = vmatprep.subr.mxu0 0.0
        %1699 = vmatpush1.msra.mxu0 0.0
        %1700 = vmatprep.subr.mxu0 0.0
        %1701 = vmatpush1.msra.mxu0 0.0
        %1702 = vmatprep.subr.mxu0 0.0
        %1703 = vmatpush1.msra.mxu0 0.0
        %1704 = vmatprep.subr.mxu0 0.0
        %1705 = vmatpush1.msra.mxu0 0.0
        %1706 = vmatprep.subr.mxu0 0.0
        %1707 = vmatpush1.msra.mxu0 0.0
        %1708 = vmatprep.subr.mxu0 0.0
        %1709 = vmatpush1.msra.mxu0 0.0
        %1710 = vmatprep.subr.mxu0 0.0
        %1711 = vmatpush1.msra.mxu0 0.0
        %1712 = vmatprep.subr.mxu0 0.0
        %1713 = vmatpush1.msra.mxu0 0.0
        %1714 = vmatprep.subr.mxu0 0.0
        %1715 = vmatpush1.msra.mxu0 0.0
        %1716 = vmatprep.subr.mxu0 0.0
        %1717 = vmatpush1.msra.mxu0 0.0
        %1718 = vmatprep.subr.mxu0 0.0
        %1719 = vmatpush1.msra.mxu0 0.0
        %1720 = vmatprep.subr.mxu0 0.0
        %1721 = vmatpush1.msra.mxu0 0.0
        %1722 = vmatprep.subr.mxu0 0.0
        %1723 = vmatpush1.msra.mxu0 0.0
        %1724 = vmatprep.subr.mxu0 0.0
        %1725 = vmatpush1.msra.mxu0 0.0
        %1726 = vmatprep.subr.mxu0 0.0
        %1727 = vmatpush1.msra.mxu0 0.0
        %1728 = vmatprep.subr.mxu0 0.0
        %1729 = vmatpush1.msra.mxu0 0.0
        %1730 = vmatprep.subr.mxu0 0.0
        %1731 = vmatpush1.msra.mxu0 0.0
        %1732 = vmatprep.subr.mxu0 0.0
        %1733 = vmatpush1.msra.mxu0 0.0
        %1734 = vmatprep.subr.mxu0 0.0
        %1735 = vmatpush1.msra.mxu0 0.0
        %1736 = vmatprep.subr.mxu0 0.0
        %1737 = vmatpush1.msra.mxu0 0.0
        %1738 = vmatprep.subr.mxu0 0.0
        %1739 = vmatpush1.msra.mxu0 0.0
        %1740 = vmatprep.mubr.f32.mxu0 0.0
        %1741 = vmatmul.mubr.f32.gmra.mrb[0].mxu0 %v1674
        %v1742 = vpop.f32.mrb[0].mxu0
        %v1743 = vadd.f32 0.0, %v1742
        %v1744 = vpop.f32.mrb[0].mxu0
        %v1745 = vadd.f32 0.0, %v1744
        %1746 = vdwg.mxu0
        %v1748 = vsel %vm636, %v635, 0
        %1750 = vmatprep.subr.mxu0 %v601
        %1751 = vmatpush1.msra.mxu0 %v600
        %1752 = vmatprep.subr.mxu0 %v603
        %1753 = vmatpush1.msra.mxu0 %v602
        %1754 = vmatprep.subr.mxu0 0.0
        %1755 = vmatpush1.msra.mxu0 0.0
        %1756 = vmatprep.subr.mxu0 0.0
        %1757 = vmatpush1.msra.mxu0 0.0
        %1758 = vmatprep.subr.mxu0 0.0
        %1759 = vmatpush1.msra.mxu0 0.0
        %1760 = vmatprep.subr.mxu0 0.0
        %1761 = vmatpush1.msra.mxu0 0.0
        %1762 = vmatprep.subr.mxu0 0.0
        %1763 = vmatpush1.msra.mxu0 0.0
        %1764 = vmatprep.subr.mxu0 0.0
        %1765 = vmatpush1.msra.mxu0 0.0
        %1766 = vmatprep.subr.mxu0 0.0
        %1767 = vmatpush1.msra.mxu0 0.0
        %1768 = vmatprep.subr.mxu0 0.0
        %1769 = vmatpush1.msra.mxu0 0.0
        %1770 = vmatprep.subr.mxu0 0.0
        %1771 = vmatpush1.msra.mxu0 0.0
        %1772 = vmatprep.subr.mxu0 0.0
        %1773 = vmatpush1.msra.mxu0 0.0
        %1774 = vmatprep.subr.mxu0 0.0
        %1775 = vmatpush1.msra.mxu0 0.0
        %1776 = vmatprep.subr.mxu0 0.0
        %1777 = vmatpush1.msra.mxu0 0.0
        %1778 = vmatprep.subr.mxu0 0.0
        %1779 = vmatpush1.msra.mxu0 0.0
        %1780 = vmatprep.subr.mxu0 0.0
        %1781 = vmatpush1.msra.mxu0 0.0
        %1782 = vmatprep.subr.mxu0 0.0
        %1783 = vmatpush1.msra.mxu0 0.0
        %1784 = vmatprep.subr.mxu0 0.0
        %1785 = vmatpush1.msra.mxu0 0.0
        %1786 = vmatprep.subr.mxu0 0.0
        %1787 = vmatpush1.msra.mxu0 0.0
        %1788 = vmatprep.subr.mxu0 0.0
        %1789 = vmatpush1.msra.mxu0 0.0
        %1790 = vmatprep.subr.mxu0 0.0
        %1791 = vmatpush1.msra.mxu0 0.0
        %1792 = vmatprep.subr.mxu0 0.0
        %1793 = vmatpush1.msra.mxu0 0.0
        %1794 = vmatprep.subr.mxu0 0.0
        %1795 = vmatpush1.msra.mxu0 0.0
        %1796 = vmatprep.subr.mxu0 0.0
        %1797 = vmatpush1.msra.mxu0 0.0
        %1798 = vmatprep.subr.mxu0 0.0
        %1799 = vmatpush1.msra.mxu0 0.0
        %1800 = vmatprep.subr.mxu0 0.0
        %1801 = vmatpush1.msra.mxu0 0.0
        %1802 = vmatprep.subr.mxu0 0.0
        %1803 = vmatpush1.msra.mxu0 0.0
        %1804 = vmatprep.subr.mxu0 0.0
        %1805 = vmatpush1.msra.mxu0 0.0
        %1806 = vmatprep.subr.mxu0 0.0
        %1807 = vmatpush1.msra.mxu0 0.0
        %1808 = vmatprep.subr.mxu0 0.0
        %1809 = vmatpush1.msra.mxu0 0.0
        %1810 = vmatprep.subr.mxu0 0.0
        %1811 = vmatpush1.msra.mxu0 0.0
        %1812 = vmatprep.subr.mxu0 0.0
        %1813 = vmatpush1.msra.mxu0 0.0
        %1814 = vmatprep.mubr.f32.mxu0 0.0
        %1815 = vmatmul.mubr.f32.gmra.mrb[0].mxu0 %v1748
        %v1816 = vpop.f32.mrb[0].mxu0
        %v1817 = vadd.f32 0.0, %v1816
        %v1818 = vpop.f32.mrb[0].mxu0
        %v1819 = vadd.f32 0.0, %v1818
        %1820 = vdwg.mxu0
        %v1821 = vadd.f32 %v707, %v781
        %v1822 = vadd.f32 %v1821, %v855
        %v1823 = vadd.f32 %v1822, %v929
        %v1824 = vadd.f32 %v1823, %v1003
        %v1825 = vadd.f32 %v1824, %v1077
        %v1826 = vadd.f32 %v1825, %v1151
        %v1827 = vadd.f32 %v1826, %v1225
        %v1828 = vadd.f32 %v1827, %v1299
        %v1829 = vadd.f32 %v1828, %v1373
        %v1830 = vadd.f32 %v1829, %v1447
        %v1831 = vadd.f32 %v1830, %v1521
        %v1832 = vadd.f32 %v1831, %v1595
        %v1833 = vadd.f32 %v1832, %v1669
        %v1834 = vadd.f32 %v1833, %v1743
        %v1835 = vadd.f32 %v1834, %v1817
        %v1836 = vadd.f32 %v709, %v783
        %v1837 = vadd.f32 %v1836, %v857
        %v1838 = vadd.f32 %v1837, %v931
        %v1839 = vadd.f32 %v1838, %v1005
        %v1840 = vadd.f32 %v1839, %v1079
        %v1841 = vadd.f32 %v1840, %v1153
        %v1842 = vadd.f32 %v1841, %v1227
        %v1843 = vadd.f32 %v1842, %v1301
        %v1844 = vadd.f32 %v1843, %v1375
        %v1845 = vadd.f32 %v1844, %v1449
        %v1846 = vadd.f32 %v1845, %v1523
        %v1847 = vadd.f32 %v1846, %v1597
        %v1848 = vadd.f32 %v1847, %v1671
        %v1849 = vadd.f32 %v1848, %v1745
        %v1850 = vadd.f32 %v1849, %v1819
        %1851 = vst [vmem:[%s275] sm:$0xff] %v1835
        %1852 = vst [vmem:[%s275 + $0x8] sm:$0xff] %v1850
        %1853 = vxpose.xlu0.b32.start [1/16] %v532, 128
        %1854 = vxpose.xlu0.b32.cont [2/16] %v537, 128
        %1855 = vxpose.xlu0.b32.cont [3/16] 0.0, 128
        %1856 = vxpose.xlu0.b32.cont [4/16] 0.0, 128
        %1857 = vxpose.xlu0.b32.cont [5/16] 0.0, 128
        %1858 = vxpose.xlu0.b32.cont [6/16] 0.0, 128
        %1859 = vxpose.xlu0.b32.cont [7/16] 0.0, 128
        %1860 = vxpose.xlu0.b32.cont [8/16] 0.0, 128
        %1861 = vxpose.xlu0.b32.cont [9/16] 0.0, 128
        %1862 = vxpose.xlu0.b32.cont [10/16] 0.0, 128
        %1863 = vxpose.xlu0.b32.cont [11/16] 0.0, 128
        %1864 = vxpose.xlu0.b32.cont [12/16] 0.0, 128
        %1865 = vxpose.xlu0.b32.cont [13/16] 0.0, 128
        %1866 = vxpose.xlu0.b32.cont [14/16] 0.0, 128
        %1867 = vxpose.xlu0.b32.cont [15/16] 0.0, 128
        %1868 = vxpose.xlu0.b32.end [16/16] 0.0, 128
        %v1869 = vpop.trf.xlu0
        %v1870 = vpop.trf.xlu0
        %v1871 = vpop.trf.xlu0
        %v1872 = vpop.trf.xlu0
        %v1873 = vpop.trf.xlu0
        %v1874 = vpop.trf.xlu0
        %v1875 = vpop.trf.xlu0
        %v1876 = vpop.trf.xlu0
        %v1877 = vpop.trf.xlu0
        %v1878 = vpop.trf.xlu0
        %v1879 = vpop.trf.xlu0
        %v1880 = vpop.trf.xlu0
        %v1881 = vpop.trf.xlu0
        %v1882 = vpop.trf.xlu0
        %v1883 = vpop.trf.xlu0
        %v1884 = vpop.trf.xlu0
        %v1886 = vsel %vm636, %v1869, 0
        %1888 = vmatprep.subr.mxu0 %v541
        %1889 = vmatpush1.msra.mxu0 %v540
        %1890 = vmatprep.subr.mxu0 %v543
        %1891 = vmatpush1.msra.mxu0 %v542
        %1892 = vmatprep.subr.mxu0 0.0
        %1893 = vmatpush1.msra.mxu0 0.0
        %1894 = vmatprep.subr.mxu0 0.0
        %1895 = vmatpush1.msra.mxu0 0.0
        %1896 = vmatprep.subr.mxu0 0.0
        %1897 = vmatpush1.msra.mxu0 0.0
        %1898 = vmatprep.subr.mxu0 0.0
        %1899 = vmatpush1.msra.mxu0 0.0
        %1900 = vmatprep.subr.mxu0 0.0
        %1901 = vmatpush1.msra.mxu0 0.0
        %1902 = vmatprep.subr.mxu0 0.0
        %1903 = vmatpush1.msra.mxu0 0.0
        %1904 = vmatprep.subr.mxu0 0.0
        %1905 = vmatpush1.msra.mxu0 0.0
        %1906 = vmatprep.subr.mxu0 0.0
        %1907 = vmatpush1.msra.mxu0 0.0
        %1908 = vmatprep.subr.mxu0 0.0
        %1909 = vmatpush1.msra.mxu0 0.0
        %1910 = vmatprep.subr.mxu0 0.0
        %1911 = vmatpush1.msra.mxu0 0.0
        %1912 = vmatprep.subr.mxu0 0.0
        %1913 = vmatpush1.msra.mxu0 0.0
        %1914 = vmatprep.subr.mxu0 0.0
        %1915 = vmatpush1.msra.mxu0 0.0
        %1916 = vmatprep.subr.mxu0 0.0
        %1917 = vmatpush1.msra.mxu0 0.0
        %1918 = vmatprep.subr.mxu0 0.0
        %1919 = vmatpush1.msra.mxu0 0.0
        %1920 = vmatprep.subr.mxu0 0.0
        %1921 = vmatpush1.msra.mxu0 0.0
        %1922 = vmatprep.subr.mxu0 0.0
        %1923 = vmatpush1.msra.mxu0 0.0
        %1924 = vmatprep.subr.mxu0 0.0
        %1925 = vmatpush1.msra.mxu0 0.0
        %1926 = vmatprep.subr.mxu0 0.0
        %1927 = vmatpush1.msra.mxu0 0.0
        %1928 = vmatprep.subr.mxu0 0.0
        %1929 = vmatpush1.msra.mxu0 0.0
        %1930 = vmatprep.subr.mxu0 0.0
        %1931 = vmatpush1.msra.mxu0 0.0
        %1932 = vmatprep.subr.mxu0 0.0
        %1933 = vmatpush1.msra.mxu0 0.0
        %1934 = vmatprep.subr.mxu0 0.0
        %1935 = vmatpush1.msra.mxu0 0.0
        %1936 = vmatprep.subr.mxu0 0.0
        %1937 = vmatpush1.msra.mxu0 0.0
        %1938 = vmatprep.subr.mxu0 0.0
        %1939 = vmatpush1.msra.mxu0 0.0
        %1940 = vmatprep.subr.mxu0 0.0
        %1941 = vmatpush1.msra.mxu0 0.0
        %1942 = vmatprep.subr.mxu0 0.0
        %1943 = vmatpush1.msra.mxu0 0.0
        %1944 = vmatprep.subr.mxu0 0.0
        %1945 = vmatpush1.msra.mxu0 0.0
        %1946 = vmatprep.subr.mxu0 0.0
        %1947 = vmatpush1.msra.mxu0 0.0
        %1948 = vmatprep.subr.mxu0 0.0
        %1949 = vmatpush1.msra.mxu0 0.0
        %1950 = vmatprep.subr.mxu0 0.0
        %1951 = vmatpush1.msra.mxu0 0.0
        %1952 = vmatprep.mubr.f32.mxu0 0.0
        %1953 = vmatmul.mubr.f32.gmra.mrb[0].mxu0 %v1886
        %v1954 = vpop.f32.mrb[0].mxu0
        %v1955 = vadd.f32 0.0, %v1954
        %v1956 = vpop.f32.mrb[0].mxu0
        %v1957 = vadd.f32 0.0, %v1956
        %1958 = vdwg.mxu0
        %v1960 = vsel %vm636, %v1870, 0
        %1962 = vmatprep.subr.mxu0 %v545
        %1963 = vmatpush1.msra.mxu0 %v544
        %1964 = vmatprep.subr.mxu0 %v547
        %1965 = vmatpush1.msra.mxu0 %v546
        %1966 = vmatprep.subr.mxu0 0.0
        %1967 = vmatpush1.msra.mxu0 0.0
        %1968 = vmatprep.subr.mxu0 0.0
        %1969 = vmatpush1.msra.mxu0 0.0
        %1970 = vmatprep.subr.mxu0 0.0
        %1971 = vmatpush1.msra.mxu0 0.0
        %1972 = vmatprep.subr.mxu0 0.0
        %1973 = vmatpush1.msra.mxu0 0.0
        %1974 = vmatprep.subr.mxu0 0.0
        %1975 = vmatpush1.msra.mxu0 0.0
        %1976 = vmatprep.subr.mxu0 0.0
        %1977 = vmatpush1.msra.mxu0 0.0
        %1978 = vmatprep.subr.mxu0 0.0
        %1979 = vmatpush1.msra.mxu0 0.0
        %1980 = vmatprep.subr.mxu0 0.0
        %1981 = vmatpush1.msra.mxu0 0.0
        %1982 = vmatprep.subr.mxu0 0.0
        %1983 = vmatpush1.msra.mxu0 0.0
        %1984 = vmatprep.subr.mxu0 0.0
        %1985 = vmatpush1.msra.mxu0 0.0
        %1986 = vmatprep.subr.mxu0 0.0
        %1987 = vmatpush1.msra.mxu0 0.0
        %1988 = vmatprep.subr.mxu0 0.0
        %1989 = vmatpush1.msra.mxu0 0.0
        %1990 = vmatprep.subr.mxu0 0.0
        %1991 = vmatpush1.msra.mxu0 0.0
        %1992 = vmatprep.subr.mxu0 0.0
        %1993 = vmatpush1.msra.mxu0 0.0
        %1994 = vmatprep.subr.mxu0 0.0
        %1995 = vmatpush1.msra.mxu0 0.0
        %1996 = vmatprep.subr.mxu0 0.0
        %1997 = vmatpush1.msra.mxu0 0.0
        %1998 = vmatprep.subr.mxu0 0.0
        %1999 = vmatpush1.msra.mxu0 0.0
        %2000 = vmatprep.subr.mxu0 0.0
        %2001 = vmatpush1.msra.mxu0 0.0
        %2002 = vmatprep.subr.mxu0 0.0
        %2003 = vmatpush1.msra.mxu0 0.0
        %2004 = vmatprep.subr.mxu0 0.0
        %2005 = vmatpush1.msra.mxu0 0.0
        %2006 = vmatprep.subr.mxu0 0.0
        %2007 = vmatpush1.msra.mxu0 0.0
        %2008 = vmatprep.subr.mxu0 0.0
        %2009 = vmatpush1.msra.mxu0 0.0
        %2010 = vmatprep.subr.mxu0 0.0
        %2011 = vmatpush1.msra.mxu0 0.0
        %2012 = vmatprep.subr.mxu0 0.0
        %2013 = vmatpush1.msra.mxu0 0.0
        %2014 = vmatprep.subr.mxu0 0.0
        %2015 = vmatpush1.msra.mxu0 0.0
        %2016 = vmatprep.subr.mxu0 0.0
        %2017 = vmatpush1.msra.mxu0 0.0
        %2018 = vmatprep.subr.mxu0 0.0
        %2019 = vmatpush1.msra.mxu0 0.0
        %2020 = vmatprep.subr.mxu0 0.0
        %2021 = vmatpush1.msra.mxu0 0.0
        %2022 = vmatprep.subr.mxu0 0.0
        %2023 = vmatpush1.msra.mxu0 0.0
        %2024 = vmatprep.subr.mxu0 0.0
        %2025 = vmatpush1.msra.mxu0 0.0
        %2026 = vmatprep.mubr.f32.mxu0 0.0
        %2027 = vmatmul.mubr.f32.gmra.mrb[0].mxu0 %v1960
        %v2028 = vpop.f32.mrb[0].mxu0
        %v2029 = vadd.f32 0.0, %v2028
        %v2030 = vpop.f32.mrb[0].mxu0
        %v2031 = vadd.f32 0.0, %v2030
        %2032 = vdwg.mxu0
        %v2034 = vsel %vm636, %v1871, 0
        %2036 = vmatprep.subr.mxu0 %v549
        %2037 = vmatpush1.msra.mxu0 %v548
        %2038 = vmatprep.subr.mxu0 %v551
        %2039 = vmatpush1.msra.mxu0 %v550
        %2040 = vmatprep.subr.mxu0 0.0
        %2041 = vmatpush1.msra.mxu0 0.0
        %2042 = vmatprep.subr.mxu0 0.0
        %2043 = vmatpush1.msra.mxu0 0.0
        %2044 = vmatprep.subr.mxu0 0.0
        %2045 = vmatpush1.msra.mxu0 0.0
        %2046 = vmatprep.subr.mxu0 0.0
        %2047 = vmatpush1.msra.mxu0 0.0
        %2048 = vmatprep.subr.mxu0 0.0
        %2049 = vmatpush1.msra.mxu0 0.0
        %2050 = vmatprep.subr.mxu0 0.0
        %2051 = vmatpush1.msra.mxu0 0.0
        %2052 = vmatprep.subr.mxu0 0.0
        %2053 = vmatpush1.msra.mxu0 0.0
        %2054 = vmatprep.subr.mxu0 0.0
        %2055 = vmatpush1.msra.mxu0 0.0
        %2056 = vmatprep.subr.mxu0 0.0
        %2057 = vmatpush1.msra.mxu0 0.0
        %2058 = vmatprep.subr.mxu0 0.0
        %2059 = vmatpush1.msra.mxu0 0.0
        %2060 = vmatprep.subr.mxu0 0.0
        %2061 = vmatpush1.msra.mxu0 0.0
        %2062 = vmatprep.subr.mxu0 0.0
        %2063 = vmatpush1.msra.mxu0 0.0
        %2064 = vmatprep.subr.mxu0 0.0
        %2065 = vmatpush1.msra.mxu0 0.0
        %2066 = vmatprep.subr.mxu0 0.0
        %2067 = vmatpush1.msra.mxu0 0.0
        %2068 = vmatprep.subr.mxu0 0.0
        %2069 = vmatpush1.msra.mxu0 0.0
        %2070 = vmatprep.subr.mxu0 0.0
        %2071 = vmatpush1.msra.mxu0 0.0
        %2072 = vmatprep.subr.mxu0 0.0
        %2073 = vmatpush1.msra.mxu0 0.0
        %2074 = vmatprep.subr.mxu0 0.0
        %2075 = vmatpush1.msra.mxu0 0.0
        %2076 = vmatprep.subr.mxu0 0.0
        %2077 = vmatpush1.msra.mxu0 0.0
        %2078 = vmatprep.subr.mxu0 0.0
        %2079 = vmatpush1.msra.mxu0 0.0
        %2080 = vmatprep.subr.mxu0 0.0
        %2081 = vmatpush1.msra.mxu0 0.0
        %2082 = vmatprep.subr.mxu0 0.0
        %2083 = vmatpush1.msra.mxu0 0.0
        %2084 = vmatprep.subr.mxu0 0.0
        %2085 = vmatpush1.msra.mxu0 0.0
        %2086 = vmatprep.subr.mxu0 0.0
        %2087 = vmatpush1.msra.mxu0 0.0
        %2088 = vmatprep.subr.mxu0 0.0
        %2089 = vmatpush1.msra.mxu0 0.0
        %2090 = vmatprep.subr.mxu0 0.0
        %2091 = vmatpush1.msra.mxu0 0.0
        %2092 = vmatprep.subr.mxu0 0.0
        %2093 = vmatpush1.msra.mxu0 0.0
        %2094 = vmatprep.subr.mxu0 0.0
        %2095 = vmatpush1.msra.mxu0 0.0
        %2096 = vmatprep.subr.mxu0 0.0
        %2097 = vmatpush1.msra.mxu0 0.0
        %2098 = vmatprep.subr.mxu0 0.0
        %2099 = vmatpush1.msra.mxu0 0.0
        %2100 = vmatprep.mubr.f32.mxu0 0.0
        %2101 = vmatmul.mubr.f32.gmra.mrb[0].mxu0 %v2034
        %v2102 = vpop.f32.mrb[0].mxu0
        %v2103 = vadd.f32 0.0, %v2102
        %v2104 = vpop.f32.mrb[0].mxu0
        %v2105 = vadd.f32 0.0, %v2104
        %2106 = vdwg.mxu0
        %v2108 = vsel %vm636, %v1872, 0
        %2110 = vmatprep.subr.mxu0 %v553
        %2111 = vmatpush1.msra.mxu0 %v552
        %2112 = vmatprep.subr.mxu0 %v555
        %2113 = vmatpush1.msra.mxu0 %v554
        %2114 = vmatprep.subr.mxu0 0.0
        %2115 = vmatpush1.msra.mxu0 0.0
        %2116 = vmatprep.subr.mxu0 0.0
        %2117 = vmatpush1.msra.mxu0 0.0
        %2118 = vmatprep.subr.mxu0 0.0
        %2119 = vmatpush1.msra.mxu0 0.0
        %2120 = vmatprep.subr.mxu0 0.0
        %2121 = vmatpush1.msra.mxu0 0.0
        %2122 = vmatprep.subr.mxu0 0.0
        %2123 = vmatpush1.msra.mxu0 0.0
        %2124 = vmatprep.subr.mxu0 0.0
        %2125 = vmatpush1.msra.mxu0 0.0
        %2126 = vmatprep.subr.mxu0 0.0
        %2127 = vmatpush1.msra.mxu0 0.0
        %2128 = vmatprep.subr.mxu0 0.0
        %2129 = vmatpush1.msra.mxu0 0.0
        %2130 = vmatprep.subr.mxu0 0.0
        %2131 = vmatpush1.msra.mxu0 0.0
        %2132 = vmatprep.subr.mxu0 0.0
        %2133 = vmatpush1.msra.mxu0 0.0
        %2134 = vmatprep.subr.mxu0 0.0
        %2135 = vmatpush1.msra.mxu0 0.0
        %2136 = vmatprep.subr.mxu0 0.0
        %2137 = vmatpush1.msra.mxu0 0.0
        %2138 = vmatprep.subr.mxu0 0.0
        %2139 = vmatpush1.msra.mxu0 0.0
        %2140 = vmatprep.subr.mxu0 0.0
        %2141 = vmatpush1.msra.mxu0 0.0
        %2142 = vmatprep.subr.mxu0 0.0
        %2143 = vmatpush1.msra.mxu0 0.0
        %2144 = vmatprep.subr.mxu0 0.0
        %2145 = vmatpush1.msra.mxu0 0.0
        %2146 = vmatprep.subr.mxu0 0.0
        %2147 = vmatpush1.msra.mxu0 0.0
        %2148 = vmatprep.subr.mxu0 0.0
        %2149 = vmatpush1.msra.mxu0 0.0
        %2150 = vmatprep.subr.mxu0 0.0
        %2151 = vmatpush1.msra.mxu0 0.0
        %2152 = vmatprep.subr.mxu0 0.0
        %2153 = vmatpush1.msra.mxu0 0.0
        %2154 = vmatprep.subr.mxu0 0.0
        %2155 = vmatpush1.msra.mxu0 0.0
        %2156 = vmatprep.subr.mxu0 0.0
        %2157 = vmatpush1.msra.mxu0 0.0
        %2158 = vmatprep.subr.mxu0 0.0
        %2159 = vmatpush1.msra.mxu0 0.0
        %2160 = vmatprep.subr.mxu0 0.0
        %2161 = vmatpush1.msra.mxu0 0.0
        %2162 = vmatprep.subr.mxu0 0.0
        %2163 = vmatpush1.msra.mxu0 0.0
        %2164 = vmatprep.subr.mxu0 0.0
        %2165 = vmatpush1.msra.mxu0 0.0
        %2166 = vmatprep.subr.mxu0 0.0
        %2167 = vmatpush1.msra.mxu0 0.0
        %2168 = vmatprep.subr.mxu0 0.0
        %2169 = vmatpush1.msra.mxu0 0.0
        %2170 = vmatprep.subr.mxu0 0.0
        %2171 = vmatpush1.msra.mxu0 0.0
        %2172 = vmatprep.subr.mxu0 0.0
        %2173 = vmatpush1.msra.mxu0 0.0
        %2174 = vmatprep.mubr.f32.mxu0 0.0
        %2175 = vmatmul.mubr.f32.gmra.mrb[0].mxu0 %v2108
        %v2176 = vpop.f32.mrb[0].mxu0
        %v2177 = vadd.f32 0.0, %v2176
        %v2178 = vpop.f32.mrb[0].mxu0
        %v2179 = vadd.f32 0.0, %v2178
        %2180 = vdwg.mxu0
        %v2182 = vsel %vm636, %v1873, 0
        %2184 = vmatprep.subr.mxu0 %v557
        %2185 = vmatpush1.msra.mxu0 %v556
        %2186 = vmatprep.subr.mxu0 %v559
        %2187 = vmatpush1.msra.mxu0 %v558
        %2188 = vmatprep.subr.mxu0 0.0
        %2189 = vmatpush1.msra.mxu0 0.0
        %2190 = vmatprep.subr.mxu0 0.0
        %2191 = vmatpush1.msra.mxu0 0.0
        %2192 = vmatprep.subr.mxu0 0.0
        %2193 = vmatpush1.msra.mxu0 0.0
        %2194 = vmatprep.subr.mxu0 0.0
        %2195 = vmatpush1.msra.mxu0 0.0
        %2196 = vmatprep.subr.mxu0 0.0
        %2197 = vmatpush1.msra.mxu0 0.0
        %2198 = vmatprep.subr.mxu0 0.0
        %2199 = vmatpush1.msra.mxu0 0.0
        %2200 = vmatprep.subr.mxu0 0.0
        %2201 = vmatpush1.msra.mxu0 0.0
        %2202 = vmatprep.subr.mxu0 0.0
        %2203 = vmatpush1.msra.mxu0 0.0
        %2204 = vmatprep.subr.mxu0 0.0
        %2205 = vmatpush1.msra.mxu0 0.0
        %2206 = vmatprep.subr.mxu0 0.0
        %2207 = vmatpush1.msra.mxu0 0.0
        %2208 = vmatprep.subr.mxu0 0.0
        %2209 = vmatpush1.msra.mxu0 0.0
        %2210 = vmatprep.subr.mxu0 0.0
        %2211 = vmatpush1.msra.mxu0 0.0
        %2212 = vmatprep.subr.mxu0 0.0
        %2213 = vmatpush1.msra.mxu0 0.0
        %2214 = vmatprep.subr.mxu0 0.0
        %2215 = vmatpush1.msra.mxu0 0.0
        %2216 = vmatprep.subr.mxu0 0.0
        %2217 = vmatpush1.msra.mxu0 0.0
        %2218 = vmatprep.subr.mxu0 0.0
        %2219 = vmatpush1.msra.mxu0 0.0
        %2220 = vmatprep.subr.mxu0 0.0
        %2221 = vmatpush1.msra.mxu0 0.0
        %2222 = vmatprep.subr.mxu0 0.0
        %2223 = vmatpush1.msra.mxu0 0.0
        %2224 = vmatprep.subr.mxu0 0.0
        %2225 = vmatpush1.msra.mxu0 0.0
        %2226 = vmatprep.subr.mxu0 0.0
        %2227 = vmatpush1.msra.mxu0 0.0
        %2228 = vmatprep.subr.mxu0 0.0
        %2229 = vmatpush1.msra.mxu0 0.0
        %2230 = vmatprep.subr.mxu0 0.0
        %2231 = vmatpush1.msra.mxu0 0.0
        %2232 = vmatprep.subr.mxu0 0.0
        %2233 = vmatpush1.msra.mxu0 0.0
        %2234 = vmatprep.subr.mxu0 0.0
        %2235 = vmatpush1.msra.mxu0 0.0
        %2236 = vmatprep.subr.mxu0 0.0
        %2237 = vmatpush1.msra.mxu0 0.0
        %2238 = vmatprep.subr.mxu0 0.0
        %2239 = vmatpush1.msra.mxu0 0.0
        %2240 = vmatprep.subr.mxu0 0.0
        %2241 = vmatpush1.msra.mxu0 0.0
        %2242 = vmatprep.subr.mxu0 0.0
        %2243 = vmatpush1.msra.mxu0 0.0
        %2244 = vmatprep.subr.mxu0 0.0
        %2245 = vmatpush1.msra.mxu0 0.0
        %2246 = vmatprep.subr.mxu0 0.0
        %2247 = vmatpush1.msra.mxu0 0.0
        %2248 = vmatprep.mubr.f32.mxu0 0.0
        %2249 = vmatmul.mubr.f32.gmra.mrb[0].mxu0 %v2182
        %v2250 = vpop.f32.mrb[0].mxu0
        %v2251 = vadd.f32 0.0, %v2250
        %v2252 = vpop.f32.mrb[0].mxu0
        %v2253 = vadd.f32 0.0, %v2252
        %2254 = vdwg.mxu0
        %v2256 = vsel %vm636, %v1874, 0
        %2258 = vmatprep.subr.mxu0 %v561
        %2259 = vmatpush1.msra.mxu0 %v560
        %2260 = vmatprep.subr.mxu0 %v563
        %2261 = vmatpush1.msra.mxu0 %v562
        %2262 = vmatprep.subr.mxu0 0.0
        %2263 = vmatpush1.msra.mxu0 0.0
        %2264 = vmatprep.subr.mxu0 0.0
        %2265 = vmatpush1.msra.mxu0 0.0
        %2266 = vmatprep.subr.mxu0 0.0
        %2267 = vmatpush1.msra.mxu0 0.0
        %2268 = vmatprep.subr.mxu0 0.0
        %2269 = vmatpush1.msra.mxu0 0.0
        %2270 = vmatprep.subr.mxu0 0.0
        %2271 = vmatpush1.msra.mxu0 0.0
        %2272 = vmatprep.subr.mxu0 0.0
        %2273 = vmatpush1.msra.mxu0 0.0
        %2274 = vmatprep.subr.mxu0 0.0
        %2275 = vmatpush1.msra.mxu0 0.0
        %2276 = vmatprep.subr.mxu0 0.0
        %2277 = vmatpush1.msra.mxu0 0.0
        %2278 = vmatprep.subr.mxu0 0.0
        %2279 = vmatpush1.msra.mxu0 0.0
        %2280 = vmatprep.subr.mxu0 0.0
        %2281 = vmatpush1.msra.mxu0 0.0
        %2282 = vmatprep.subr.mxu0 0.0
        %2283 = vmatpush1.msra.mxu0 0.0
        %2284 = vmatprep.subr.mxu0 0.0
        %2285 = vmatpush1.msra.mxu0 0.0
        %2286 = vmatprep.subr.mxu0 0.0
        %2287 = vmatpush1.msra.mxu0 0.0
        %2288 = vmatprep.subr.mxu0 0.0
        %2289 = vmatpush1.msra.mxu0 0.0
        %2290 = vmatprep.subr.mxu0 0.0
        %2291 = vmatpush1.msra.mxu0 0.0
        %2292 = vmatprep.subr.mxu0 0.0
        %2293 = vmatpush1.msra.mxu0 0.0
        %2294 = vmatprep.subr.mxu0 0.0
        %2295 = vmatpush1.msra.mxu0 0.0
        %2296 = vmatprep.subr.mxu0 0.0
        %2297 = vmatpush1.msra.mxu0 0.0
        %2298 = vmatprep.subr.mxu0 0.0
        %2299 = vmatpush1.msra.mxu0 0.0
        %2300 = vmatprep.subr.mxu0 0.0
        %2301 = vmatpush1.msra.mxu0 0.0
        %2302 = vmatprep.subr.mxu0 0.0
        %2303 = vmatpush1.msra.mxu0 0.0
        %2304 = vmatprep.subr.mxu0 0.0
        %2305 = vmatpush1.msra.mxu0 0.0
        %2306 = vmatprep.subr.mxu0 0.0
        %2307 = vmatpush1.msra.mxu0 0.0
        %2308 = vmatprep.subr.mxu0 0.0
        %2309 = vmatpush1.msra.mxu0 0.0
        %2310 = vmatprep.subr.mxu0 0.0
        %2311 = vmatpush1.msra.mxu0 0.0
        %2312 = vmatprep.subr.mxu0 0.0
        %2313 = vmatpush1.msra.mxu0 0.0
        %2314 = vmatprep.subr.mxu0 0.0
        %2315 = vmatpush1.msra.mxu0 0.0
        %2316 = vmatprep.subr.mxu0 0.0
        %2317 = vmatpush1.msra.mxu0 0.0
        %2318 = vmatprep.subr.mxu0 0.0
        %2319 = vmatpush1.msra.mxu0 0.0
        %2320 = vmatprep.subr.mxu0 0.0
        %2321 = vmatpush1.msra.mxu0 0.0
        %2322 = vmatprep.mubr.f32.mxu0 0.0
        %2323 = vmatmul.mubr.f32.gmra.mrb[0].mxu0 %v2256
        %v2324 = vpop.f32.mrb[0].mxu0
        %v2325 = vadd.f32 0.0, %v2324
        %v2326 = vpop.f32.mrb[0].mxu0
        %v2327 = vadd.f32 0.0, %v2326
        %2328 = vdwg.mxu0
        %v2330 = vsel %vm636, %v1875, 0
        %2332 = vmatprep.subr.mxu0 %v565
        %2333 = vmatpush1.msra.mxu0 %v564
        %2334 = vmatprep.subr.mxu0 %v567
        %2335 = vmatpush1.msra.mxu0 %v566
        %2336 = vmatprep.subr.mxu0 0.0
        %2337 = vmatpush1.msra.mxu0 0.0
        %2338 = vmatprep.subr.mxu0 0.0
        %2339 = vmatpush1.msra.mxu0 0.0
        %2340 = vmatprep.subr.mxu0 0.0
        %2341 = vmatpush1.msra.mxu0 0.0
        %2342 = vmatprep.subr.mxu0 0.0
        %2343 = vmatpush1.msra.mxu0 0.0
        %2344 = vmatprep.subr.mxu0 0.0
        %2345 = vmatpush1.msra.mxu0 0.0
        %2346 = vmatprep.subr.mxu0 0.0
        %2347 = vmatpush1.msra.mxu0 0.0
        %2348 = vmatprep.subr.mxu0 0.0
        %2349 = vmatpush1.msra.mxu0 0.0
        %2350 = vmatprep.subr.mxu0 0.0
        %2351 = vmatpush1.msra.mxu0 0.0
        %2352 = vmatprep.subr.mxu0 0.0
        %2353 = vmatpush1.msra.mxu0 0.0
        %2354 = vmatprep.subr.mxu0 0.0
        %2355 = vmatpush1.msra.mxu0 0.0
        %2356 = vmatprep.subr.mxu0 0.0
        %2357 = vmatpush1.msra.mxu0 0.0
        %2358 = vmatprep.subr.mxu0 0.0
        %2359 = vmatpush1.msra.mxu0 0.0
        %2360 = vmatprep.subr.mxu0 0.0
        %2361 = vmatpush1.msra.mxu0 0.0
        %2362 = vmatprep.subr.mxu0 0.0
        %2363 = vmatpush1.msra.mxu0 0.0
        %2364 = vmatprep.subr.mxu0 0.0
        %2365 = vmatpush1.msra.mxu0 0.0
        %2366 = vmatprep.subr.mxu0 0.0
        %2367 = vmatpush1.msra.mxu0 0.0
        %2368 = vmatprep.subr.mxu0 0.0
        %2369 = vmatpush1.msra.mxu0 0.0
        %2370 = vmatprep.subr.mxu0 0.0
        %2371 = vmatpush1.msra.mxu0 0.0
        %2372 = vmatprep.subr.mxu0 0.0
        %2373 = vmatpush1.msra.mxu0 0.0
        %2374 = vmatprep.subr.mxu0 0.0
        %2375 = vmatpush1.msra.mxu0 0.0
        %2376 = vmatprep.subr.mxu0 0.0
        %2377 = vmatpush1.msra.mxu0 0.0
        %2378 = vmatprep.subr.mxu0 0.0
        %2379 = vmatpush1.msra.mxu0 0.0
        %2380 = vmatprep.subr.mxu0 0.0
        %2381 = vmatpush1.msra.mxu0 0.0
        %2382 = vmatprep.subr.mxu0 0.0
        %2383 = vmatpush1.msra.mxu0 0.0
        %2384 = vmatprep.subr.mxu0 0.0
        %2385 = vmatpush1.msra.mxu0 0.0
        %2386 = vmatprep.subr.mxu0 0.0
        %2387 = vmatpush1.msra.mxu0 0.0
        %2388 = vmatprep.subr.mxu0 0.0
        %2389 = vmatpush1.msra.mxu0 0.0
        %2390 = vmatprep.subr.mxu0 0.0
        %2391 = vmatpush1.msra.mxu0 0.0
        %2392 = vmatprep.subr.mxu0 0.0
        %2393 = vmatpush1.msra.mxu0 0.0
        %2394 = vmatprep.subr.mxu0 0.0
        %2395 = vmatpush1.msra.mxu0 0.0
        %2396 = vmatprep.mubr.f32.mxu0 0.0
        %2397 = vmatmul.mubr.f32.gmra.mrb[0].mxu0 %v2330
        %v2398 = vpop.f32.mrb[0].mxu0
        %v2399 = vadd.f32 0.0, %v2398
        %v2400 = vpop.f32.mrb[0].mxu0
        %v2401 = vadd.f32 0.0, %v2400
        %2402 = vdwg.mxu0
        %v2404 = vsel %vm636, %v1876, 0
        %2406 = vmatprep.subr.mxu0 %v569
        %2407 = vmatpush1.msra.mxu0 %v568
        %2408 = vmatprep.subr.mxu0 %v571
        %2409 = vmatpush1.msra.mxu0 %v570
        %2410 = vmatprep.subr.mxu0 0.0
        %2411 = vmatpush1.msra.mxu0 0.0
        %2412 = vmatprep.subr.mxu0 0.0
        %2413 = vmatpush1.msra.mxu0 0.0
        %2414 = vmatprep.subr.mxu0 0.0
        %2415 = vmatpush1.msra.mxu0 0.0
        %2416 = vmatprep.subr.mxu0 0.0
        %2417 = vmatpush1.msra.mxu0 0.0
        %2418 = vmatprep.subr.mxu0 0.0
        %2419 = vmatpush1.msra.mxu0 0.0
        %2420 = vmatprep.subr.mxu0 0.0
        %2421 = vmatpush1.msra.mxu0 0.0
        %2422 = vmatprep.subr.mxu0 0.0
        %2423 = vmatpush1.msra.mxu0 0.0
        %2424 = vmatprep.subr.mxu0 0.0
        %2425 = vmatpush1.msra.mxu0 0.0
        %2426 = vmatprep.subr.mxu0 0.0
        %2427 = vmatpush1.msra.mxu0 0.0
        %2428 = vmatprep.subr.mxu0 0.0
        %2429 = vmatpush1.msra.mxu0 0.0
        %2430 = vmatprep.subr.mxu0 0.0
        %2431 = vmatpush1.msra.mxu0 0.0
        %2432 = vmatprep.subr.mxu0 0.0
        %2433 = vmatpush1.msra.mxu0 0.0
        %2434 = vmatprep.subr.mxu0 0.0
        %2435 = vmatpush1.msra.mxu0 0.0
        %2436 = vmatprep.subr.mxu0 0.0
        %2437 = vmatpush1.msra.mxu0 0.0
        %2438 = vmatprep.subr.mxu0 0.0
        %2439 = vmatpush1.msra.mxu0 0.0
        %2440 = vmatprep.subr.mxu0 0.0
        %2441 = vmatpush1.msra.mxu0 0.0
        %2442 = vmatprep.subr.mxu0 0.0
        %2443 = vmatpush1.msra.mxu0 0.0
        %2444 = vmatprep.subr.mxu0 0.0
        %2445 = vmatpush1.msra.mxu0 0.0
        %2446 = vmatprep.subr.mxu0 0.0
        %2447 = vmatpush1.msra.mxu0 0.0
        %2448 = vmatprep.subr.mxu0 0.0
        %2449 = vmatpush1.msra.mxu0 0.0
        %2450 = vmatprep.subr.mxu0 0.0
        %2451 = vmatpush1.msra.mxu0 0.0
        %2452 = vmatprep.subr.mxu0 0.0
        %2453 = vmatpush1.msra.mxu0 0.0
        %2454 = vmatprep.subr.mxu0 0.0
        %2455 = vmatpush1.msra.mxu0 0.0
        %2456 = vmatprep.subr.mxu0 0.0
        %2457 = vmatpush1.msra.mxu0 0.0
        %2458 = vmatprep.subr.mxu0 0.0
        %2459 = vmatpush1.msra.mxu0 0.0
        %2460 = vmatprep.subr.mxu0 0.0
        %2461 = vmatpush1.msra.mxu0 0.0
        %2462 = vmatprep.subr.mxu0 0.0
        %2463 = vmatpush1.msra.mxu0 0.0
        %2464 = vmatprep.subr.mxu0 0.0
        %2465 = vmatpush1.msra.mxu0 0.0
        %2466 = vmatprep.subr.mxu0 0.0
        %2467 = vmatpush1.msra.mxu0 0.0
        %2468 = vmatprep.subr.mxu0 0.0
        %2469 = vmatpush1.msra.mxu0 0.0
        %2470 = vmatprep.mubr.f32.mxu0 0.0
        %2471 = vmatmul.mubr.f32.gmra.mrb[0].mxu0 %v2404
        %v2472 = vpop.f32.mrb[0].mxu0
        %v2473 = vadd.f32 0.0, %v2472
        %v2474 = vpop.f32.mrb[0].mxu0
        %v2475 = vadd.f32 0.0, %v2474
        %2476 = vdwg.mxu0
        %v2478 = vsel %vm636, %v1877, 0
        %2480 = vmatprep.subr.mxu0 %v573
        %2481 = vmatpush1.msra.mxu0 %v572
        %2482 = vmatprep.subr.mxu0 %v575
        %2483 = vmatpush1.msra.mxu0 %v574
        %2484 = vmatprep.subr.mxu0 0.0
        %2485 = vmatpush1.msra.mxu0 0.0
        %2486 = vmatprep.subr.mxu0 0.0
        %2487 = vmatpush1.msra.mxu0 0.0
        %2488 = vmatprep.subr.mxu0 0.0
        %2489 = vmatpush1.msra.mxu0 0.0
        %2490 = vmatprep.subr.mxu0 0.0
        %2491 = vmatpush1.msra.mxu0 0.0
        %2492 = vmatprep.subr.mxu0 0.0
        %2493 = vmatpush1.msra.mxu0 0.0
        %2494 = vmatprep.subr.mxu0 0.0
        %2495 = vmatpush1.msra.mxu0 0.0
        %2496 = vmatprep.subr.mxu0 0.0
        %2497 = vmatpush1.msra.mxu0 0.0
        %2498 = vmatprep.subr.mxu0 0.0
        %2499 = vmatpush1.msra.mxu0 0.0
        %2500 = vmatprep.subr.mxu0 0.0
        %2501 = vmatpush1.msra.mxu0 0.0
        %2502 = vmatprep.subr.mxu0 0.0
        %2503 = vmatpush1.msra.mxu0 0.0
        %2504 = vmatprep.subr.mxu0 0.0
        %2505 = vmatpush1.msra.mxu0 0.0
        %2506 = vmatprep.subr.mxu0 0.0
        %2507 = vmatpush1.msra.mxu0 0.0
        %2508 = vmatprep.subr.mxu0 0.0
        %2509 = vmatpush1.msra.mxu0 0.0
        %2510 = vmatprep.subr.mxu0 0.0
        %2511 = vmatpush1.msra.mxu0 0.0
        %2512 = vmatprep.subr.mxu0 0.0
        %2513 = vmatpush1.msra.mxu0 0.0
        %2514 = vmatprep.subr.mxu0 0.0
        %2515 = vmatpush1.msra.mxu0 0.0
        %2516 = vmatprep.subr.mxu0 0.0
        %2517 = vmatpush1.msra.mxu0 0.0
        %2518 = vmatprep.subr.mxu0 0.0
        %2519 = vmatpush1.msra.mxu0 0.0
        %2520 = vmatprep.subr.mxu0 0.0
        %2521 = vmatpush1.msra.mxu0 0.0
        %2522 = vmatprep.subr.mxu0 0.0
        %2523 = vmatpush1.msra.mxu0 0.0
        %2524 = vmatprep.subr.mxu0 0.0
        %2525 = vmatpush1.msra.mxu0 0.0
        %2526 = vmatprep.subr.mxu0 0.0
        %2527 = vmatpush1.msra.mxu0 0.0
        %2528 = vmatprep.subr.mxu0 0.0
        %2529 = vmatpush1.msra.mxu0 0.0
        %2530 = vmatprep.subr.mxu0 0.0
        %2531 = vmatpush1.msra.mxu0 0.0
        %2532 = vmatprep.subr.mxu0 0.0
        %2533 = vmatpush1.msra.mxu0 0.0
        %2534 = vmatprep.subr.mxu0 0.0
        %2535 = vmatpush1.msra.mxu0 0.0
        %2536 = vmatprep.subr.mxu0 0.0
        %2537 = vmatpush1.msra.mxu0 0.0
        %2538 = vmatprep.subr.mxu0 0.0
        %2539 = vmatpush1.msra.mxu0 0.0
        %2540 = vmatprep.subr.mxu0 0.0
        %2541 = vmatpush1.msra.mxu0 0.0
        %2542 = vmatprep.subr.mxu0 0.0
        %2543 = vmatpush1.msra.mxu0 0.0
        %2544 = vmatprep.mubr.f32.mxu0 0.0
        %2545 = vmatmul.mubr.f32.gmra.mrb[0].mxu0 %v2478
        %v2546 = vpop.f32.mrb[0].mxu0
        %v2547 = vadd.f32 0.0, %v2546
        %v2548 = vpop.f32.mrb[0].mxu0
        %v2549 = vadd.f32 0.0, %v2548
        %2550 = vdwg.mxu0
        %v2552 = vsel %vm636, %v1878, 0
        %2554 = vmatprep.subr.mxu0 %v577
        %2555 = vmatpush1.msra.mxu0 %v576
        %2556 = vmatprep.subr.mxu0 %v579
        %2557 = vmatpush1.msra.mxu0 %v578
        %2558 = vmatprep.subr.mxu0 0.0
        %2559 = vmatpush1.msra.mxu0 0.0
        %2560 = vmatprep.subr.mxu0 0.0
        %2561 = vmatpush1.msra.mxu0 0.0
        %2562 = vmatprep.subr.mxu0 0.0
        %2563 = vmatpush1.msra.mxu0 0.0
        %2564 = vmatprep.subr.mxu0 0.0
        %2565 = vmatpush1.msra.mxu0 0.0
        %2566 = vmatprep.subr.mxu0 0.0
        %2567 = vmatpush1.msra.mxu0 0.0
        %2568 = vmatprep.subr.mxu0 0.0
        %2569 = vmatpush1.msra.mxu0 0.0
        %2570 = vmatprep.subr.mxu0 0.0
        %2571 = vmatpush1.msra.mxu0 0.0
        %2572 = vmatprep.subr.mxu0 0.0
        %2573 = vmatpush1.msra.mxu0 0.0
        %2574 = vmatprep.subr.mxu0 0.0
        %2575 = vmatpush1.msra.mxu0 0.0
        %2576 = vmatprep.subr.mxu0 0.0
        %2577 = vmatpush1.msra.mxu0 0.0
        %2578 = vmatprep.subr.mxu0 0.0
        %2579 = vmatpush1.msra.mxu0 0.0
        %2580 = vmatprep.subr.mxu0 0.0
        %2581 = vmatpush1.msra.mxu0 0.0
        %2582 = vmatprep.subr.mxu0 0.0
        %2583 = vmatpush1.msra.mxu0 0.0
        %2584 = vmatprep.subr.mxu0 0.0
        %2585 = vmatpush1.msra.mxu0 0.0
        %2586 = vmatprep.subr.mxu0 0.0
        %2587 = vmatpush1.msra.mxu0 0.0
        %2588 = vmatprep.subr.mxu0 0.0
        %2589 = vmatpush1.msra.mxu0 0.0
        %2590 = vmatprep.subr.mxu0 0.0
        %2591 = vmatpush1.msra.mxu0 0.0
        %2592 = vmatprep.subr.mxu0 0.0
        %2593 = vmatpush1.msra.mxu0 0.0
        %2594 = vmatprep.subr.mxu0 0.0
        %2595 = vmatpush1.msra.mxu0 0.0
        %2596 = vmatprep.subr.mxu0 0.0
        %2597 = vmatpush1.msra.mxu0 0.0
        %2598 = vmatprep.subr.mxu0 0.0
        %2599 = vmatpush1.msra.mxu0 0.0
        %2600 = vmatprep.subr.mxu0 0.0
        %2601 = vmatpush1.msra.mxu0 0.0
        %2602 = vmatprep.subr.mxu0 0.0
        %2603 = vmatpush1.msra.mxu0 0.0
        %2604 = vmatprep.subr.mxu0 0.0
        %2605 = vmatpush1.msra.mxu0 0.0
        %2606 = vmatprep.subr.mxu0 0.0
        %2607 = vmatpush1.msra.mxu0 0.0
        %2608 = vmatprep.subr.mxu0 0.0
        %2609 = vmatpush1.msra.mxu0 0.0
        %2610 = vmatprep.subr.mxu0 0.0
        %2611 = vmatpush1.msra.mxu0 0.0
        %2612 = vmatprep.subr.mxu0 0.0
        %2613 = vmatpush1.msra.mxu0 0.0
        %2614 = vmatprep.subr.mxu0 0.0
        %2615 = vmatpush1.msra.mxu0 0.0
        %2616 = vmatprep.subr.mxu0 0.0
        %2617 = vmatpush1.msra.mxu0 0.0
        %2618 = vmatprep.mubr.f32.mxu0 0.0
        %2619 = vmatmul.mubr.f32.gmra.mrb[0].mxu0 %v2552
        %v2620 = vpop.f32.mrb[0].mxu0
        %v2621 = vadd.f32 0.0, %v2620
        %v2622 = vpop.f32.mrb[0].mxu0
        %v2623 = vadd.f32 0.0, %v2622
        %2624 = vdwg.mxu0
        %v2626 = vsel %vm636, %v1879, 0
        %2628 = vmatprep.subr.mxu0 %v581
        %2629 = vmatpush1.msra.mxu0 %v580
        %2630 = vmatprep.subr.mxu0 %v583
        %2631 = vmatpush1.msra.mxu0 %v582
        %2632 = vmatprep.subr.mxu0 0.0
        %2633 = vmatpush1.msra.mxu0 0.0
        %2634 = vmatprep.subr.mxu0 0.0
        %2635 = vmatpush1.msra.mxu0 0.0
        %2636 = vmatprep.subr.mxu0 0.0
        %2637 = vmatpush1.msra.mxu0 0.0
        %2638 = vmatprep.subr.mxu0 0.0
        %2639 = vmatpush1.msra.mxu0 0.0
        %2640 = vmatprep.subr.mxu0 0.0
        %2641 = vmatpush1.msra.mxu0 0.0
        %2642 = vmatprep.subr.mxu0 0.0
        %2643 = vmatpush1.msra.mxu0 0.0
        %2644 = vmatprep.subr.mxu0 0.0
        %2645 = vmatpush1.msra.mxu0 0.0
        %2646 = vmatprep.subr.mxu0 0.0
        %2647 = vmatpush1.msra.mxu0 0.0
        %2648 = vmatprep.subr.mxu0 0.0
        %2649 = vmatpush1.msra.mxu0 0.0
        %2650 = vmatprep.subr.mxu0 0.0
        %2651 = vmatpush1.msra.mxu0 0.0
        %2652 = vmatprep.subr.mxu0 0.0
        %2653 = vmatpush1.msra.mxu0 0.0
        %2654 = vmatprep.subr.mxu0 0.0
        %2655 = vmatpush1.msra.mxu0 0.0
        %2656 = vmatprep.subr.mxu0 0.0
        %2657 = vmatpush1.msra.mxu0 0.0
        %2658 = vmatprep.subr.mxu0 0.0
        %2659 = vmatpush1.msra.mxu0 0.0
        %2660 = vmatprep.subr.mxu0 0.0
        %2661 = vmatpush1.msra.mxu0 0.0
        %2662 = vmatprep.subr.mxu0 0.0
        %2663 = vmatpush1.msra.mxu0 0.0
        %2664 = vmatprep.subr.mxu0 0.0
        %2665 = vmatpush1.msra.mxu0 0.0
        %2666 = vmatprep.subr.mxu0 0.0
        %2667 = vmatpush1.msra.mxu0 0.0
        %2668 = vmatprep.subr.mxu0 0.0
        %2669 = vmatpush1.msra.mxu0 0.0
        %2670 = vmatprep.subr.mxu0 0.0
        %2671 = vmatpush1.msra.mxu0 0.0
        %2672 = vmatprep.subr.mxu0 0.0
        %2673 = vmatpush1.msra.mxu0 0.0
        %2674 = vmatprep.subr.mxu0 0.0
        %2675 = vmatpush1.msra.mxu0 0.0
        %2676 = vmatprep.subr.mxu0 0.0
        %2677 = vmatpush1.msra.mxu0 0.0
        %2678 = vmatprep.subr.mxu0 0.0
        %2679 = vmatpush1.msra.mxu0 0.0
        %2680 = vmatprep.subr.mxu0 0.0
        %2681 = vmatpush1.msra.mxu0 0.0
        %2682 = vmatprep.subr.mxu0 0.0
        %2683 = vmatpush1.msra.mxu0 0.0
        %2684 = vmatprep.subr.mxu0 0.0
        %2685 = vmatpush1.msra.mxu0 0.0
        %2686 = vmatprep.subr.mxu0 0.0
        %2687 = vmatpush1.msra.mxu0 0.0
        %2688 = vmatprep.subr.mxu0 0.0
        %2689 = vmatpush1.msra.mxu0 0.0
        %2690 = vmatprep.subr.mxu0 0.0
        %2691 = vmatpush1.msra.mxu0 0.0
        %2692 = vmatprep.mubr.f32.mxu0 0.0
        %2693 = vmatmul.mubr.f32.gmra.mrb[0].mxu0 %v2626
        %v2694 = vpop.f32.mrb[0].mxu0
        %v2695 = vadd.f32 0.0, %v2694
        %v2696 = vpop.f32.mrb[0].mxu0
        %v2697 = vadd.f32 0.0, %v2696
        %2698 = vdwg.mxu0
        %v2700 = vsel %vm636, %v1880, 0
        %2702 = vmatprep.subr.mxu0 %v585
        %2703 = vmatpush1.msra.mxu0 %v584
        %2704 = vmatprep.subr.mxu0 %v587
        %2705 = vmatpush1.msra.mxu0 %v586
        %2706 = vmatprep.subr.mxu0 0.0
        %2707 = vmatpush1.msra.mxu0 0.0
        %2708 = vmatprep.subr.mxu0 0.0
        %2709 = vmatpush1.msra.mxu0 0.0
        %2710 = vmatprep.subr.mxu0 0.0
        %2711 = vmatpush1.msra.mxu0 0.0
        %2712 = vmatprep.subr.mxu0 0.0
        %2713 = vmatpush1.msra.mxu0 0.0
        %2714 = vmatprep.subr.mxu0 0.0
        %2715 = vmatpush1.msra.mxu0 0.0
        %2716 = vmatprep.subr.mxu0 0.0
        %2717 = vmatpush1.msra.mxu0 0.0
        %2718 = vmatprep.subr.mxu0 0.0
        %2719 = vmatpush1.msra.mxu0 0.0
        %2720 = vmatprep.subr.mxu0 0.0
        %2721 = vmatpush1.msra.mxu0 0.0
        %2722 = vmatprep.subr.mxu0 0.0
        %2723 = vmatpush1.msra.mxu0 0.0
        %2724 = vmatprep.subr.mxu0 0.0
        %2725 = vmatpush1.msra.mxu0 0.0
        %2726 = vmatprep.subr.mxu0 0.0
        %2727 = vmatpush1.msra.mxu0 0.0
        %2728 = vmatprep.subr.mxu0 0.0
        %2729 = vmatpush1.msra.mxu0 0.0
        %2730 = vmatprep.subr.mxu0 0.0
        %2731 = vmatpush1.msra.mxu0 0.0
        %2732 = vmatprep.subr.mxu0 0.0
        %2733 = vmatpush1.msra.mxu0 0.0
        %2734 = vmatprep.subr.mxu0 0.0
        %2735 = vmatpush1.msra.mxu0 0.0
        %2736 = vmatprep.subr.mxu0 0.0
        %2737 = vmatpush1.msra.mxu0 0.0
        %2738 = vmatprep.subr.mxu0 0.0
        %2739 = vmatpush1.msra.mxu0 0.0
        %2740 = vmatprep.subr.mxu0 0.0
        %2741 = vmatpush1.msra.mxu0 0.0
        %2742 = vmatprep.subr.mxu0 0.0
        %2743 = vmatpush1.msra.mxu0 0.0
        %2744 = vmatprep.subr.mxu0 0.0
        %2745 = vmatpush1.msra.mxu0 0.0
        %2746 = vmatprep.subr.mxu0 0.0
        %2747 = vmatpush1.msra.mxu0 0.0
        %2748 = vmatprep.subr.mxu0 0.0
        %2749 = vmatpush1.msra.mxu0 0.0
        %2750 = vmatprep.subr.mxu0 0.0
        %2751 = vmatpush1.msra.mxu0 0.0
        %2752 = vmatprep.subr.mxu0 0.0
        %2753 = vmatpush1.msra.mxu0 0.0
        %2754 = vmatprep.subr.mxu0 0.0
        %2755 = vmatpush1.msra.mxu0 0.0
        %2756 = vmatprep.subr.mxu0 0.0
        %2757 = vmatpush1.msra.mxu0 0.0
        %2758 = vmatprep.subr.mxu0 0.0
        %2759 = vmatpush1.msra.mxu0 0.0
        %2760 = vmatprep.subr.mxu0 0.0
        %2761 = vmatpush1.msra.mxu0 0.0
        %2762 = vmatprep.subr.mxu0 0.0
        %2763 = vmatpush1.msra.mxu0 0.0
        %2764 = vmatprep.subr.mxu0 0.0
        %2765 = vmatpush1.msra.mxu0 0.0
        %2766 = vmatprep.mubr.f32.mxu0 0.0
        %2767 = vmatmul.mubr.f32.gmra.mrb[0].mxu0 %v2700
        %v2768 = vpop.f32.mrb[0].mxu0
        %v2769 = vadd.f32 0.0, %v2768
        %v2770 = vpop.f32.mrb[0].mxu0
        %v2771 = vadd.f32 0.0, %v2770
        %2772 = vdwg.mxu0
        %v2774 = vsel %vm636, %v1881, 0
        %2776 = vmatprep.subr.mxu0 %v589
        %2777 = vmatpush1.msra.mxu0 %v588
        %2778 = vmatprep.subr.mxu0 %v591
        %2779 = vmatpush1.msra.mxu0 %v590
        %2780 = vmatprep.subr.mxu0 0.0
        %2781 = vmatpush1.msra.mxu0 0.0
        %2782 = vmatprep.subr.mxu0 0.0
        %2783 = vmatpush1.msra.mxu0 0.0
        %2784 = vmatprep.subr.mxu0 0.0
        %2785 = vmatpush1.msra.mxu0 0.0
        %2786 = vmatprep.subr.mxu0 0.0
        %2787 = vmatpush1.msra.mxu0 0.0
        %2788 = vmatprep.subr.mxu0 0.0
        %2789 = vmatpush1.msra.mxu0 0.0
        %2790 = vmatprep.subr.mxu0 0.0
        %2791 = vmatpush1.msra.mxu0 0.0
        %2792 = vmatprep.subr.mxu0 0.0
        %2793 = vmatpush1.msra.mxu0 0.0
        %2794 = vmatprep.subr.mxu0 0.0
        %2795 = vmatpush1.msra.mxu0 0.0
        %2796 = vmatprep.subr.mxu0 0.0
        %2797 = vmatpush1.msra.mxu0 0.0
        %2798 = vmatprep.subr.mxu0 0.0
        %2799 = vmatpush1.msra.mxu0 0.0
        %2800 = vmatprep.subr.mxu0 0.0
        %2801 = vmatpush1.msra.mxu0 0.0
        %2802 = vmatprep.subr.mxu0 0.0
        %2803 = vmatpush1.msra.mxu0 0.0
        %2804 = vmatprep.subr.mxu0 0.0
        %2805 = vmatpush1.msra.mxu0 0.0
        %2806 = vmatprep.subr.mxu0 0.0
        %2807 = vmatpush1.msra.mxu0 0.0
        %2808 = vmatprep.subr.mxu0 0.0
        %2809 = vmatpush1.msra.mxu0 0.0
        %2810 = vmatprep.subr.mxu0 0.0
        %2811 = vmatpush1.msra.mxu0 0.0
        %2812 = vmatprep.subr.mxu0 0.0
        %2813 = vmatpush1.msra.mxu0 0.0
        %2814 = vmatprep.subr.mxu0 0.0
        %2815 = vmatpush1.msra.mxu0 0.0
        %2816 = vmatprep.subr.mxu0 0.0
        %2817 = vmatpush1.msra.mxu0 0.0
        %2818 = vmatprep.subr.mxu0 0.0
        %2819 = vmatpush1.msra.mxu0 0.0
        %2820 = vmatprep.subr.mxu0 0.0
        %2821 = vmatpush1.msra.mxu0 0.0
        %2822 = vmatprep.subr.mxu0 0.0
        %2823 = vmatpush1.msra.mxu0 0.0
        %2824 = vmatprep.subr.mxu0 0.0
        %2825 = vmatpush1.msra.mxu0 0.0
        %2826 = vmatprep.subr.mxu0 0.0
        %2827 = vmatpush1.msra.mxu0 0.0
        %2828 = vmatprep.subr.mxu0 0.0
        %2829 = vmatpush1.msra.mxu0 0.0
        %2830 = vmatprep.subr.mxu0 0.0
        %2831 = vmatpush1.msra.mxu0 0.0
        %2832 = vmatprep.subr.mxu0 0.0
        %2833 = vmatpush1.msra.mxu0 0.0
        %2834 = vmatprep.subr.mxu0 0.0
        %2835 = vmatpush1.msra.mxu0 0.0
        %2836 = vmatprep.subr.mxu0 0.0
        %2837 = vmatpush1.msra.mxu0 0.0
        %2838 = vmatprep.subr.mxu0 0.0
        %2839 = vmatpush1.msra.mxu0 0.0
        %2840 = vmatprep.mubr.f32.mxu0 0.0
        %2841 = vmatmul.mubr.f32.gmra.mrb[0].mxu0 %v2774
        %v2842 = vpop.f32.mrb[0].mxu0
        %v2843 = vadd.f32 0.0, %v2842
        %v2844 = vpop.f32.mrb[0].mxu0
        %v2845 = vadd.f32 0.0, %v2844
        %2846 = vdwg.mxu0
        %v2848 = vsel %vm636, %v1882, 0
        %2850 = vmatprep.subr.mxu0 %v593
        %2851 = vmatpush1.msra.mxu0 %v592
        %2852 = vmatprep.subr.mxu0 %v595
        %2853 = vmatpush1.msra.mxu0 %v594
        %2854 = vmatprep.subr.mxu0 0.0
        %2855 = vmatpush1.msra.mxu0 0.0
        %2856 = vmatprep.subr.mxu0 0.0
        %2857 = vmatpush1.msra.mxu0 0.0
        %2858 = vmatprep.subr.mxu0 0.0
        %2859 = vmatpush1.msra.mxu0 0.0
        %2860 = vmatprep.subr.mxu0 0.0
        %2861 = vmatpush1.msra.mxu0 0.0
        %2862 = vmatprep.subr.mxu0 0.0
        %2863 = vmatpush1.msra.mxu0 0.0
        %2864 = vmatprep.subr.mxu0 0.0
        %2865 = vmatpush1.msra.mxu0 0.0
        %2866 = vmatprep.subr.mxu0 0.0
        %2867 = vmatpush1.msra.mxu0 0.0
        %2868 = vmatprep.subr.mxu0 0.0
        %2869 = vmatpush1.msra.mxu0 0.0
        %2870 = vmatprep.subr.mxu0 0.0
        %2871 = vmatpush1.msra.mxu0 0.0
        %2872 = vmatprep.subr.mxu0 0.0
        %2873 = vmatpush1.msra.mxu0 0.0
        %2874 = vmatprep.subr.mxu0 0.0
        %2875 = vmatpush1.msra.mxu0 0.0
        %2876 = vmatprep.subr.mxu0 0.0
        %2877 = vmatpush1.msra.mxu0 0.0
        %2878 = vmatprep.subr.mxu0 0.0
        %2879 = vmatpush1.msra.mxu0 0.0
        %2880 = vmatprep.subr.mxu0 0.0
        %2881 = vmatpush1.msra.mxu0 0.0
        %2882 = vmatprep.subr.mxu0 0.0
        %2883 = vmatpush1.msra.mxu0 0.0
        %2884 = vmatprep.subr.mxu0 0.0
        %2885 = vmatpush1.msra.mxu0 0.0
        %2886 = vmatprep.subr.mxu0 0.0
        %2887 = vmatpush1.msra.mxu0 0.0
        %2888 = vmatprep.subr.mxu0 0.0
        %2889 = vmatpush1.msra.mxu0 0.0
        %2890 = vmatprep.subr.mxu0 0.0
        %2891 = vmatpush1.msra.mxu0 0.0
        %2892 = vmatprep.subr.mxu0 0.0
        %2893 = vmatpush1.msra.mxu0 0.0
        %2894 = vmatprep.subr.mxu0 0.0
        %2895 = vmatpush1.msra.mxu0 0.0
        %2896 = vmatprep.subr.mxu0 0.0
        %2897 = vmatpush1.msra.mxu0 0.0
        %2898 = vmatprep.subr.mxu0 0.0
        %2899 = vmatpush1.msra.mxu0 0.0
        %2900 = vmatprep.subr.mxu0 0.0
        %2901 = vmatpush1.msra.mxu0 0.0
        %2902 = vmatprep.subr.mxu0 0.0
        %2903 = vmatpush1.msra.mxu0 0.0
        %2904 = vmatprep.subr.mxu0 0.0
        %2905 = vmatpush1.msra.mxu0 0.0
        %2906 = vmatprep.subr.mxu0 0.0
        %2907 = vmatpush1.msra.mxu0 0.0
        %2908 = vmatprep.subr.mxu0 0.0
        %2909 = vmatpush1.msra.mxu0 0.0
        %2910 = vmatprep.subr.mxu0 0.0
        %2911 = vmatpush1.msra.mxu0 0.0
        %2912 = vmatprep.subr.mxu0 0.0
        %2913 = vmatpush1.msra.mxu0 0.0
        %2914 = vmatprep.mubr.f32.mxu0 0.0
        %2915 = vmatmul.mubr.f32.gmra.mrb[0].mxu0 %v2848
        %v2916 = vpop.f32.mrb[0].mxu0
        %v2917 = vadd.f32 0.0, %v2916
        %v2918 = vpop.f32.mrb[0].mxu0
        %v2919 = vadd.f32 0.0, %v2918
        %2920 = vdwg.mxu0
        %v2922 = vsel %vm636, %v1883, 0
        %2924 = vmatprep.subr.mxu0 %v597
        %2925 = vmatpush1.msra.mxu0 %v596
        %2926 = vmatprep.subr.mxu0 %v599
        %2927 = vmatpush1.msra.mxu0 %v598
        %2928 = vmatprep.subr.mxu0 0.0
        %2929 = vmatpush1.msra.mxu0 0.0
        %2930 = vmatprep.subr.mxu0 0.0
        %2931 = vmatpush1.msra.mxu0 0.0
        %2932 = vmatprep.subr.mxu0 0.0
        %2933 = vmatpush1.msra.mxu0 0.0
        %2934 = vmatprep.subr.mxu0 0.0
        %2935 = vmatpush1.msra.mxu0 0.0
        %2936 = vmatprep.subr.mxu0 0.0
        %2937 = vmatpush1.msra.mxu0 0.0
        %2938 = vmatprep.subr.mxu0 0.0
        %2939 = vmatpush1.msra.mxu0 0.0
        %2940 = vmatprep.subr.mxu0 0.0
        %2941 = vmatpush1.msra.mxu0 0.0
        %2942 = vmatprep.subr.mxu0 0.0
        %2943 = vmatpush1.msra.mxu0 0.0
        %2944 = vmatprep.subr.mxu0 0.0
        %2945 = vmatpush1.msra.mxu0 0.0
        %2946 = vmatprep.subr.mxu0 0.0
        %2947 = vmatpush1.msra.mxu0 0.0
        %2948 = vmatprep.subr.mxu0 0.0
        %2949 = vmatpush1.msra.mxu0 0.0
        %2950 = vmatprep.subr.mxu0 0.0
        %2951 = vmatpush1.msra.mxu0 0.0
        %2952 = vmatprep.subr.mxu0 0.0
        %2953 = vmatpush1.msra.mxu0 0.0
        %2954 = vmatprep.subr.mxu0 0.0
        %2955 = vmatpush1.msra.mxu0 0.0
        %2956 = vmatprep.subr.mxu0 0.0
        %2957 = vmatpush1.msra.mxu0 0.0
        %2958 = vmatprep.subr.mxu0 0.0
        %2959 = vmatpush1.msra.mxu0 0.0
        %2960 = vmatprep.subr.mxu0 0.0
        %2961 = vmatpush1.msra.mxu0 0.0
        %2962 = vmatprep.subr.mxu0 0.0
        %2963 = vmatpush1.msra.mxu0 0.0
        %2964 = vmatprep.subr.mxu0 0.0
        %2965 = vmatpush1.msra.mxu0 0.0
        %2966 = vmatprep.subr.mxu0 0.0
        %2967 = vmatpush1.msra.mxu0 0.0
        %2968 = vmatprep.subr.mxu0 0.0
        %2969 = vmatpush1.msra.mxu0 0.0
        %2970 = vmatprep.subr.mxu0 0.0
        %2971 = vmatpush1.msra.mxu0 0.0
        %2972 = vmatprep.subr.mxu0 0.0
        %2973 = vmatpush1.msra.mxu0 0.0
        %2974 = vmatprep.subr.mxu0 0.0
        %2975 = vmatpush1.msra.mxu0 0.0
        %2976 = vmatprep.subr.mxu0 0.0
        %2977 = vmatpush1.msra.mxu0 0.0
        %2978 = vmatprep.subr.mxu0 0.0
        %2979 = vmatpush1.msra.mxu0 0.0
        %2980 = vmatprep.subr.mxu0 0.0
        %2981 = vmatpush1.msra.mxu0 0.0
        %2982 = vmatprep.subr.mxu0 0.0
        %2983 = vmatpush1.msra.mxu0 0.0
        %2984 = vmatprep.subr.mxu0 0.0
        %2985 = vmatpush1.msra.mxu0 0.0
        %2986 = vmatprep.subr.mxu0 0.0
        %2987 = vmatpush1.msra.mxu0 0.0
        %2988 = vmatprep.mubr.f32.mxu0 0.0
        %2989 = vmatmul.mubr.f32.gmra.mrb[0].mxu0 %v2922
        %v2990 = vpop.f32.mrb[0].mxu0
        %v2991 = vadd.f32 0.0, %v2990
        %v2992 = vpop.f32.mrb[0].mxu0
        %v2993 = vadd.f32 0.0, %v2992
        %2994 = vdwg.mxu0
        %v2996 = vsel %vm636, %v1884, 0
        %2998 = vmatprep.subr.mxu0 %v601
        %2999 = vmatpush1.msra.mxu0 %v600
        %3000 = vmatprep.subr.mxu0 %v603
        %3001 = vmatpush1.msra.mxu0 %v602
        %3002 = vmatprep.subr.mxu0 0.0
        %3003 = vmatpush1.msra.mxu0 0.0
        %3004 = vmatprep.subr.mxu0 0.0
        %3005 = vmatpush1.msra.mxu0 0.0
        %3006 = vmatprep.subr.mxu0 0.0
        %3007 = vmatpush1.msra.mxu0 0.0
        %3008 = vmatprep.subr.mxu0 0.0
        %3009 = vmatpush1.msra.mxu0 0.0
        %3010 = vmatprep.subr.mxu0 0.0
        %3011 = vmatpush1.msra.mxu0 0.0
        %3012 = vmatprep.subr.mxu0 0.0
        %3013 = vmatpush1.msra.mxu0 0.0
        %3014 = vmatprep.subr.mxu0 0.0
        %3015 = vmatpush1.msra.mxu0 0.0
        %3016 = vmatprep.subr.mxu0 0.0
        %3017 = vmatpush1.msra.mxu0 0.0
        %3018 = vmatprep.subr.mxu0 0.0
        %3019 = vmatpush1.msra.mxu0 0.0
        %3020 = vmatprep.subr.mxu0 0.0
        %3021 = vmatpush1.msra.mxu0 0.0
        %3022 = vmatprep.subr.mxu0 0.0
        %3023 = vmatpush1.msra.mxu0 0.0
        %3024 = vmatprep.subr.mxu0 0.0
        %3025 = vmatpush1.msra.mxu0 0.0
        %3026 = vmatprep.subr.mxu0 0.0
        %3027 = vmatpush1.msra.mxu0 0.0
        %3028 = vmatprep.subr.mxu0 0.0
        %3029 = vmatpush1.msra.mxu0 0.0
        %3030 = vmatprep.subr.mxu0 0.0
        %3031 = vmatpush1.msra.mxu0 0.0
        %3032 = vmatprep.subr.mxu0 0.0
        %3033 = vmatpush1.msra.mxu0 0.0
        %3034 = vmatprep.subr.mxu0 0.0
        %3035 = vmatpush1.msra.mxu0 0.0
        %3036 = vmatprep.subr.mxu0 0.0
        %3037 = vmatpush1.msra.mxu0 0.0
        %3038 = vmatprep.subr.mxu0 0.0
        %3039 = vmatpush1.msra.mxu0 0.0
        %3040 = vmatprep.subr.mxu0 0.0
        %3041 = vmatpush1.msra.mxu0 0.0
        %3042 = vmatprep.subr.mxu0 0.0
        %3043 = vmatpush1.msra.mxu0 0.0
        %3044 = vmatprep.subr.mxu0 0.0
        %3045 = vmatpush1.msra.mxu0 0.0
        %3046 = vmatprep.subr.mxu0 0.0
        %3047 = vmatpush1.msra.mxu0 0.0
        %3048 = vmatprep.subr.mxu0 0.0
        %3049 = vmatpush1.msra.mxu0 0.0
        %3050 = vmatprep.subr.mxu0 0.0
        %3051 = vmatpush1.msra.mxu0 0.0
        %3052 = vmatprep.subr.mxu0 0.0
        %3053 = vmatpush1.msra.mxu0 0.0
        %3054 = vmatprep.subr.mxu0 0.0
        %3055 = vmatpush1.msra.mxu0 0.0
        %3056 = vmatprep.subr.mxu0 0.0
        %3057 = vmatpush1.msra.mxu0 0.0
        %3058 = vmatprep.subr.mxu0 0.0
        %3059 = vmatpush1.msra.mxu0 0.0
        %3060 = vmatprep.subr.mxu0 0.0
        %3061 = vmatpush1.msra.mxu0 0.0
        %3062 = vmatprep.mubr.f32.mxu0 0.0
        %3063 = vmatmul.mubr.f32.gmra.mrb[0].mxu0 %v2996
        %v3064 = vpop.f32.mrb[0].mxu0
        %v3065 = vadd.f32 0.0, %v3064
        %v3066 = vpop.f32.mrb[0].mxu0
        %v3067 = vadd.f32 0.0, %v3066
        %3068 = vdwg.mxu0
        %v3069 = vadd.f32 %v1955, %v2029
        %v3070 = vadd.f32 %v3069, %v2103
        %v3071 = vadd.f32 %v3070, %v2177
        %v3072 = vadd.f32 %v3071, %v2251
        %v3073 = vadd.f32 %v3072, %v2325
        %v3074 = vadd.f32 %v3073, %v2399
        %v3075 = vadd.f32 %v3074, %v2473
        %v3076 = vadd.f32 %v3075, %v2547
        %v3077 = vadd.f32 %v3076, %v2621
        %v3078 = vadd.f32 %v3077, %v2695
        %v3079 = vadd.f32 %v3078, %v2769
        %v3080 = vadd.f32 %v3079, %v2843
        %v3081 = vadd.f32 %v3080, %v2917
        %v3082 = vadd.f32 %v3081, %v2991
        %v3083 = vadd.f32 %v3082, %v3065
        %v3084 = vadd.f32 %v1957, %v2031
        %v3085 = vadd.f32 %v3084, %v2105
        %v3086 = vadd.f32 %v3085, %v2179
        %v3087 = vadd.f32 %v3086, %v2253
        %v3088 = vadd.f32 %v3087, %v2327
        %v3089 = vadd.f32 %v3088, %v2401
        %v3090 = vadd.f32 %v3089, %v2475
        %v3091 = vadd.f32 %v3090, %v2549
        %v3092 = vadd.f32 %v3091, %v2623
        %v3093 = vadd.f32 %v3092, %v2697
        %v3094 = vadd.f32 %v3093, %v2771
        %v3095 = vadd.f32 %v3094, %v2845
        %v3096 = vadd.f32 %v3095, %v2919
        %v3097 = vadd.f32 %v3096, %v2993
        %v3098 = vadd.f32 %v3097, %v3067
        %s3099 = scalar_lea.vmem %s275, 16 [#allocation7]
        %3100 = vst [vmem:[%s3099] sm:$0xff] %v3083
        %3101 = vst [vmem:[%s3099 + $0x8] sm:$0xff] %v3098
        %s3102 = sand.u32 %s161, 1
        %s3103 = scalar_lea.sflag [#allocation4], %s3102
        %s3104 = sand.u32 %s161, 1
        %s3105 = smul.addr %s3104, 32
        %s3106 = scalar_lea.vmem [#allocation7], %s3105
        // Predicated region
        $region53: #{tpu_custom_call.1} parent=43 // pred_check
          %p3107 = pneg %p171
        $region54: #{tpu_custom_call.1} parent=43 // pred_check_branch
          %3109 = sbr.rel (%p3107) target = $region56
        $region55: #{tpu_custom_call.1} parent=43 // pred_region
          %s3110 = smul.u32 2, %s22
          %s3112 = ssub.s32 512, 512
          %3113 = vsyncadd %s3103, %s3112
          %s3114 = smul.addr %s3110, 2
          %s3115 = smul.addr %s3114, 128
          %s3116 = scalar_lea.hbm %s6, %s3115
          %s3117 = sshll.u32 %s3106, 4
          %s3118 = int_to_ptr.vmem [resolvable:$true] %s3117
          %3123 = dma.vmem_to_hbm [thread:$0]  %s3118, 512, %s3116, %s3103, 256, 256, 16
        $region56: #{tpu_custom_call.1} parent=43 // pred_fallthru
          _
      $region44: #{tpu_custom_call.1} parent=5 // pred_fallthru
        _
      %p3124 = scmp.le.s32.totalorder 2, %s17
      // Predicated region
      $region57: #{tpu_custom_call.1} parent=5 // pred_check
        %p3125 = pneg %p3124
      $region58: #{tpu_custom_call.1} parent=5 // pred_check_branch
        %3127 = sbr.rel (%p3125) target = $region60
      $region59: #{tpu_custom_call.1} parent=5 // pred_region
        %s3128 = ssub.s32 %s17, 2
        // Predicated region
        $region61: #{tpu_custom_call.1} parent=59 // pred_check
          %p3129 = pneg %p177
        $region62: #{tpu_custom_call.1} parent=59 // pred_check_branch
          %3131 = sbr.rel (%p3129) target = $region64
        $region63: #{tpu_custom_call.1} parent=59 // pred_region
          %s3132 = sand.u32 %s162, 1
          %s3133 = scalar_lea.sflag [#allocation4], %s3132
          %s3134 = sand.u32 %s162, 1
          %s3135 = smul.addr %s3134, 32
          %s3136 = scalar_lea.vmem [#allocation7], %s3135
          %3137 = dma.done %s3133, 512
        $region64: #{tpu_custom_call.1} parent=59 // pred_fallthru
          _
      $region60: #{tpu_custom_call.1} parent=5 // pred_fallthru
        _
    $region6: #{tpu_custom_call.1} parent=1 // loop_footer
      %s21 = sadd.s32 1, %s17
    $region7: #{tpu_custom_call.1} parent=1 // loop_footer_branch
      %16 = sbr.rel target = $region3
    $region8: #{tpu_custom_call.1} parent=1 // loop_exit
      _
    %3138 = vsyncpa [#allocation3], 1
    %s3139 = scalar_lea.sflag [#allocation3], 1
    %3140 = vsyncpa %s3139, 1
    %3141 = vsyncpa [#allocation6], 1
    %3142 = vsyncpa [#allocation4], 1
    %s3143 = scalar_lea.sflag [#allocation4], 1
    %3144 = vsyncpa %s3143, 1

</llo_original>
